<compile_context>
chip_gen: v7x
topology: tpu7x:2x2x1
jax: 0.10.0
libtpu: 0.0.40
codegen_flags: <defaults>
</compile_context>

<pallas_src>
import functools

import jax
import jax.numpy as jnp
from jax import lax
from jax.experimental import pallas as pl
from jax.experimental.pallas import tpu as pltpu

N_EMBD = 384       # hardcoded in the PyTorch module
BLOCK_SIZE = 32    # causal-mask buffer size (T <= BLOCK_SIZE)


def _head_kernel(x_ref, w_ref, o_ref, *, b_blk, seq, head):
    # x_ref: (B_BLK*T, C) bf16, w_ref: (C, 3H) bf16, o_ref: (B_BLK*T, H) f32
    x = x_ref[...]                       # (M, C) bf16
    w = w_ref[...]                       # (C, 3H) bf16  (Wq pre-scaled)

    # Fused QKV projection: one MXU matmul, f32 accumulation.
    qkv = jnp.dot(x, w, preferred_element_type=jnp.float32)   # (M, 3H) f32

    q = qkv[:, 0:head]
    k = qkv[:, head:2 * head]
    v = qkv[:, 2 * head:3 * head]

    # Split the flattened rows back into (B_BLK, T, H) for batched attention.
    # M is a multiple of 8, so this is a tile-aligned sublane regroup (free).
    q = q.reshape(b_blk, seq, head).astype(jnp.bfloat16)
    k = k.reshape(b_blk, seq, head).astype(jnp.bfloat16)
    v = v.reshape(b_blk, seq, head).astype(jnp.bfloat16)

    # Scores: contract last axes directly (no explicit transpose of k).
    s = jnp.einsum('bqd,bkd->bqk', q, k,
                   preferred_element_type=jnp.float32)        # (B_BLK, T, T)

    # Causal (lower-triangular) mask == tril[:T, :T]; one 2-D iota, broadcast
    # over the batch block by jnp.where.
    row = lax.broadcasted_iota(jnp.int32, (seq, seq), 0)
    col = lax.broadcasted_iota(jnp.int32, (seq, seq), 1)
    s = jnp.where(row >= col, s, -jnp.inf)

    # Numerically stable softmax in f32; reciprocal goes to the EUP slot.
    m = jnp.max(s, axis=-1, keepdims=True)
    e = jnp.exp(s - m)
    p = e * pl.reciprocal(jnp.sum(e, axis=-1, keepdims=True), approx=True)

    # dropout -> identity (eval mode)

    out = jnp.einsum('bqk,bkd->bqd', p.astype(jnp.bfloat16), v,
                     preferred_element_type=jnp.float32)      # (B_BLK, T, H)
    o_ref[...] = out.reshape(b_blk * seq, head).astype(o_ref.dtype)


def head_forward(x, wq, wk, wv, *, b_blk=None):
    """x: (B, T, C) f32; w*: (C, H) f32 (pre-transposed nn.Linear weights).

    Returns (B, T, H) f32, matching Head.forward in eval mode.
    """
    B, T, C = x.shape
    H = wq.shape[-1]
    assert C == N_EMBD and T <= BLOCK_SIZE

    # Fold the attention scale into Wq and fuse the three projections:
    # (q*scale) @ k^T == (x @ (Wq*scale)) @ (x @ Wk)^T.
    scale = jnp.float32(H) ** jnp.float32(-0.5)
    w_qkv = jnp.concatenate([wq * scale, wk, wv], axis=-1).astype(jnp.bfloat16)

    # Pick a batch block so M = B_BLK*T approaches 256 (MXU-friendly) while
    # dividing B evenly (keeps >= 2 parallel grid steps for megacore when B
    # is large enough).
    if b_blk is None:
        target = max(1, 256 // T)
        b_blk = max(d for d in range(1, B + 1) if B % d == 0 and d <= target)
    assert B % b_blk == 0
    m_blk = b_blk * T
    assert m_blk % 8 == 0 or b_blk == B, "B_BLK*T must be a multiple of 8"

    # Flatten (B, T, C) -> (B*T, C) in the wrapper (free, row-major) so each
    # grid step sees a dense (M, C) slab; cast to bf16 to halve HBM traffic.
    x2 = x.reshape(B * T, C).astype(jnp.bfloat16)

    grid = (B // b_blk,)
    kernel = functools.partial(_head_kernel, b_blk=b_blk, seq=T, head=H)

    out_flat = pl.pallas_call(
        kernel,
        out_shape=jax.ShapeDtypeStruct((B * T, H), jnp.float32),
        grid_spec=pltpu.PrefetchScalarGridSpec(
            num_scalar_prefetch=0,
            grid=grid,
            in_specs=[
                pl.BlockSpec((m_blk, C), lambda b: (b, 0)),     # x rows
                pl.BlockSpec((C, 3 * H), lambda b: (0, 0)),     # fused QKV W
            ],
            out_specs=pl.BlockSpec((m_blk, H), lambda b: (b, 0)),
        ),
        compiler_params=pltpu.CompilerParams(
            dimension_semantics=("parallel",)),
    )(x2, w_qkv)

    return out_flat.reshape(B, T, H)


def _reference(x, wq, wk, wv):
    # pure-JAX f32 reference mirroring the PyTorch forward (eval-mode dropout)
    q = x @ wq
    k = x @ wk
    v = x @ wv
    wei = (q @ jnp.swapaxes(k, -2, -1)) * (k.shape[-1] ** -0.5)
    T = x.shape[1]
    tril = jnp.tril(jnp.ones((T, T), jnp.float32))
    wei = jnp.where(tril == 0, -jnp.inf, wei)
    wei = jax.nn.softmax(wei, axis=-1)
    return wei @ v


if __name__ == "__main__":
    key = jax.random.PRNGKey(0)
    B, T, C = 64, 8, N_EMBD     # B*T = 512 rows -> 2 parallel grid steps of M=256
    head_size = 32

    kx, kq, kk, kv = jax.random.split(key, 4)
    x = jax.random.normal(kx, (B, T, C), dtype=jnp.float32)
    # deterministic weight init (nn.Linear-like scale), stored as (C, H)
    bound = 1.0 / (C ** 0.5)
    wq = jax.random.uniform(kq, (C, head_size), jnp.float32, -bound, bound)
    wk = jax.random.uniform(kk, (C, head_size), jnp.float32, -bound, bound)
    wv = jax.random.uniform(kv, (C, head_size), jnp.float32, -bound, bound)

    out = head_forward(x, wq, wk, wv)
    out = jax.block_until_ready(out)

    ref = _reference(x, wq, wk, wv)
    assert out.shape == (B, T, head_size)
    # bf16 MXU inputs with f32 accumulation -> loosened tolerance vs f32 ref
    assert jnp.allclose(out, ref, atol=3e-2, rtol=3e-2), (
        f"max abs err {jnp.max(jnp.abs(out - ref))}")

    print("KERNEL_OK")
</pallas_src>

<mosaic_0001>
module attributes {stable_mosaic.version = 11 : i64} {
  func.func @_head_kernel(%arg0: i32, %arg1: memref<256x384xbf16, #tpu.memory_space<vmem>>, %arg2: memref<384x96xbf16, #tpu.memory_space<vmem>>, %arg3: memref<256x32xf32, #tpu.memory_space<vmem>>) attributes {dimension_semantics = [#tpu.dimension_semantics<parallel>], iteration_bounds = array<i64: 2>, scalar_prefetch = 0 : i64, scratch_operands = 0 : i64, tpu.core_type = #tpu.core_type<tc>, window_params = [{transform_indices = @transform_0, window_bounds = array<i64: 256, 384>}, {pipeline_mode = #tpu.pipeline_mode<synchronous>, transform_indices = @transform_1, window_bounds = array<i64: 384, 96>}, {transform_indices = @transform_2, window_bounds = array<i64: 256, 32>}]} {
    %c0 = arith.constant 0 : index
    %c0_0 = arith.constant 0 : index
    %0 = vector.load %arg1[%c0, %c0_0] : memref<256x384xbf16, #tpu.memory_space<vmem>>, vector<256x384xbf16>
    %c0_1 = arith.constant 0 : index
    %c0_2 = arith.constant 0 : index
    %1 = vector.load %arg2[%c0_1, %c0_2] : memref<384x96xbf16, #tpu.memory_space<vmem>>, vector<384x96xbf16>
    %cst = arith.constant dense<0.000000e+00> : vector<256x96xf32>
    %2 = tpu.matmul %0, %1, %cst {dimension_numbers = #tpu.dot_dimension_numbers<[1], [0], [0], [1], [0, 0, 1, 1], [], []>} : vector<256x384xbf16>, vector<384x96xbf16>, vector<256x96xf32> -> vector<256x96xf32>
    %3 = vector.extract_strided_slice %2 {offsets = [0, 0], sizes = [256, 32], strides = [1, 1]} : vector<256x96xf32> to vector<256x32xf32>
    %4 = vector.extract_strided_slice %2 {offsets = [0, 32], sizes = [256, 32], strides = [1, 1]} : vector<256x96xf32> to vector<256x32xf32>
    %5 = vector.extract_strided_slice %2 {offsets = [0, 64], sizes = [256, 32], strides = [1, 1]} : vector<256x96xf32> to vector<256x32xf32>
    %6 = vector.shape_cast %3 : vector<256x32xf32> to vector<32x8x32xf32>
    %7 = arith.truncf %6 : vector<32x8x32xf32> to vector<32x8x32xbf16>
    %8 = vector.shape_cast %4 : vector<256x32xf32> to vector<32x8x32xf32>
    %9 = arith.truncf %8 : vector<32x8x32xf32> to vector<32x8x32xbf16>
    %10 = vector.shape_cast %5 : vector<256x32xf32> to vector<32x8x32xf32>
    %11 = arith.truncf %10 : vector<32x8x32xf32> to vector<32x8x32xbf16>
    "tpu.trace_start"() <{level = 10 : i32, message = "bqd,bkd->bqk"}> : () -> ()
    %cst_3 = arith.constant dense<0.000000e+00> : vector<32x8x8xf32>
    %12 = tpu.matmul %7, %9, %cst_3 {dimension_numbers = #tpu.dot_dimension_numbers<[2], [2], [1], [1], [0, 0, 0, 1, 1, 1], [0], [0]>} : vector<32x8x32xbf16>, vector<32x8x32xbf16>, vector<32x8x8xf32> -> vector<32x8x8xf32>
    "tpu.trace_stop"() : () -> ()
    %13 = tpu.iota {dimensions = array<i32: 0>} : vector<8x8xi32>
    %14 = tpu.iota {dimensions = array<i32: 1>} : vector<8x8xi32>
    %15 = arith.cmpi sge, %13, %14 : vector<8x8xi32>
    %cst_4 = arith.constant 0xFF800000 : f32
    %16 = vector.shape_cast %15 : vector<8x8xi1> to vector<1x8x8xi1>
    %17 = vector.broadcast %16 : vector<1x8x8xi1> to vector<32x8x8xi1>
    %18 = vector.broadcast %cst_4 : f32 to vector<32x8x8xf32>
    %19 = arith.select %17, %12, %18 : vector<32x8x8xi1>, vector<32x8x8xf32>
    %cst_5 = arith.constant dense<0xFF800000> : vector<32x8xf32>
    %20 = vector.multi_reduction <maximumf>, %19, %cst_5 [2] : vector<32x8x8xf32> to vector<32x8xf32>
    %21 = vector.shape_cast %20 : vector<32x8xf32> to vector<32x8x1xf32>
    %22 = vector.broadcast %21 : vector<32x8x1xf32> to vector<32x8x8xf32>
    %23 = arith.subf %19, %22 : vector<32x8x8xf32>
    %24 = math.exp %23 : vector<32x8x8xf32>
    %cst_6 = arith.constant dense<0.000000e+00> : vector<32x8xf32>
    %25 = vector.multi_reduction <add>, %24, %cst_6 [2] : vector<32x8x8xf32> to vector<32x8xf32>
    %26 = vector.shape_cast %25 : vector<32x8xf32> to vector<32x8x1xf32>
    %27 = tpu.reciprocal %26 {approx = true} : vector<32x8x1xf32> -> vector<32x8x1xf32>
    %28 = vector.broadcast %27 : vector<32x8x1xf32> to vector<32x8x8xf32>
    %29 = arith.mulf %24, %28 : vector<32x8x8xf32>
    %30 = arith.truncf %29 : vector<32x8x8xf32> to vector<32x8x8xbf16>
    "tpu.trace_start"() <{level = 10 : i32, message = "bqk,bkd->bqd"}> : () -> ()
    %cst_7 = arith.constant dense<0.000000e+00> : vector<32x8x32xf32>
    %31 = tpu.matmul %30, %11, %cst_7 {dimension_numbers = #tpu.dot_dimension_numbers<[2], [1], [1], [2], [0, 0, 0, 1, 1, 2], [0], [0]>} : vector<32x8x8xbf16>, vector<32x8x32xbf16>, vector<32x8x32xf32> -> vector<32x8x32xf32>
    "tpu.trace_stop"() : () -> ()
    %32 = vector.shape_cast %31 : vector<32x8x32xf32> to vector<256x32xf32>
    %c0_8 = arith.constant 0 : index
    %c0_9 = arith.constant 0 : index
    %33 = vector.load %arg3[%c0_8, %c0_9] : memref<256x32xf32, #tpu.memory_space<vmem>>, vector<256x32xf32>
    tpu.vector_store %arg3[%c0_8, %c0_9], %32 {strides = array<i32>} : memref<256x32xf32, #tpu.memory_space<vmem>>, vector<256x32xf32>,
    return
  }
  func.func @transform_0(%arg0: i32) -> (i32, i32) {
    %c0_i32 = arith.constant 0 : i32
    %c0_i32_0 = arith.constant 0 : i32
    return %arg0, %c0_i32 : i32, i32
  }
  func.func @transform_1(%arg0: i32) -> (i32, i32) {
    %c0_i32 = arith.constant 0 : i32
    %c0_i32_0 = arith.constant 0 : i32
    %c0_i32_1 = arith.constant 0 : i32
    return %c0_i32, %c0_i32_0 : i32, i32
  }
  func.func @transform_2(%arg0: i32) -> (i32, i32) {
    %c0_i32 = arith.constant 0 : i32
    %c0_i32_0 = arith.constant 0 : i32
    return %arg0, %c0_i32 : i32, i32
  }
}

</mosaic_0001>

<llo_original>
// kernel: tpu_custom_call.1
$region0: #{tpu_custom_call.1}
  #allocation0 [shape = 'u32[]', space=smem, size = 0x4, offset = 0x4, fixed_abs, tag = 'smem constant byte address 0x4 - core index']
  #allocation1 [shape = 'u32[144,128]{1,0:T(1,128)}', space=vmem, size = 0x12000, scoped, tag = 'internal scratch']
  %s0 = inlined_call_operand.hbm [shape: bf16[512,384], index: 0, kind: input, shape index: {}]
  %s1 = inlined_call_operand.vmem [shape: bf16[384,96], index: 1, kind: input, shape index: {}]
  %s2 = inlined_call_operand.vmem [shape: f32[512,32], index: 2, kind: output, shape index: {}]
  %s3 = sld [smem:[#allocation0]]
  $region45: #{tpu_custom_call.1} parent=0
    _
  %s5 = ssub.s32 1, %s3
  %s6 = scalar_select 0, %s5, %s3
  $region1: #{tpu_custom_call.1} parent=0
    #allocation2 [shape = 'u8[393216]{0}', space=vmem, size = 0x60000, scoped, tag = 'input window, operand 0']
    #allocation3 [shape = 's32[2]{0}', space=sflag, size = 0x8, scoped, tag = 'scoped memory for tpu_custom_call.1']
    %7 = vsyncpa [#allocation3], 0
    %s8 = scalar_lea.sflag [#allocation3], 1
    %9 = vsyncpa %s8, 0
    loop: start=0, step=1, limit=4
    $region2: #{tpu_custom_call.1} parent=1 // loop_pre_header
      _
    $region3: #{tpu_custom_call.1} parent=1 // loop_header
      %s11 = sphi 0, %s15
      %p12 = scmp.ge.s32.totalorder %s11, 4
      %s21 = sphi 0, %s23
      %s24 = sphi 0, %s21
      %s25 = sphi 0, %s24
      %s41 = sphi 0, %s25
      %s45 = sphi 0, %s45
      %s47 = sphi 0, %s45
      %s48 = sphi 0, %s47
      %s62 = sphi 0, %s48
      %s68 = sphi 0, %s70
      %s71 = sphi 0, %s68
      %s72 = sphi 0, %s71
      %s88 = sphi 0, %s72
    $region4: #{tpu_custom_call.1} parent=1 // loop_header_branch
      %14 = sbr.rel (%p12) target = $region8
    $region5: #{tpu_custom_call.1} parent=1 // loop_body
      %s16 = ssub.s32 %s11, 1
      %s17 = ssub.s32 %s11, 2
      %s18 = sadd.s32 %s11, 1
      %s19 = ssub.s32 %s11, %s18
      %p20 = scmp.eq.s32.totalorder %s19, 0
      %s22 = sadd.s32 %s21, 1
      %s23 = scalar_select %p20, %s21, %s22
      %p26 = pneg %p20
      %p27 = scmp.eq.s32.totalorder %s11, 1
      %p28 = por %p26, %p27
      %p29 = scmp.ne.s32.totalorder %s21, %s24
      %p30 = scmp.eq.s32.totalorder %s11, 0
      %p31 = por %p29, %p30
      %p32 = scmp.ne.s32.totalorder %s21, %s24
      %p33 = scmp.eq.s32.totalorder %s16, 1
      %p34 = por %p32, %p33
      %p35 = scmp.ne.s32.totalorder %s24, %s25
      %p36 = scmp.eq.s32.totalorder %s16, 0
      %p37 = por %p35, %p36
      %p38 = scmp.ne.s32.totalorder %s24, %s25
      %p39 = scmp.eq.s32.totalorder %s17, 1
      %p40 = por %p38, %p39
      %p42 = scmp.ne.s32.totalorder %s25, %s41
      %p43 = scmp.eq.s32.totalorder %s17, 0
      %p44 = por %p42, %p43
      %s46 = sadd.s32 %s45, 1
      %p49 = scmp.eq.s32.totalorder %s11, 1
      %p50 = scmp.ne.s32.totalorder %s45, %s47
      %p51 = scmp.eq.s32.totalorder %s11, 0
      %p52 = por %p50, %p51
      %p53 = scmp.ne.s32.totalorder %s45, %s47
      %p54 = scmp.eq.s32.totalorder %s16, 1
      %p55 = por %p53, %p54
      %p56 = scmp.ne.s32.totalorder %s47, %s48
      %p57 = scmp.eq.s32.totalorder %s16, 0
      %p58 = por %p56, %p57
      %p59 = scmp.ne.s32.totalorder %s47, %s48
      %p60 = scmp.eq.s32.totalorder %s17, 1
      %p61 = por %p59, %p60
      %p63 = scmp.ne.s32.totalorder %s48, %s62
      %p64 = scmp.eq.s32.totalorder %s17, 0
      %p65 = por %p63, %p64
      %s66 = ssub.s32 %s11, %s18
      %p67 = scmp.eq.s32.totalorder %s66, 0
      %s69 = sadd.s32 %s68, 1
      %s70 = scalar_select %p67, %s68, %s69
      %p73 = pneg %p67
      %p74 = scmp.eq.s32.totalorder %s11, 1
      %p75 = por %p73, %p74
      %p76 = scmp.ne.s32.totalorder %s68, %s71
      %p77 = scmp.eq.s32.totalorder %s11, 0
      %p78 = por %p76, %p77
      %p79 = scmp.ne.s32.totalorder %s68, %s71
      %p80 = scmp.eq.s32.totalorder %s16, 1
      %p81 = por %p79, %p80
      %p82 = scmp.ne.s32.totalorder %s71, %s72
      %p83 = scmp.eq.s32.totalorder %s16, 0
      %p84 = por %p82, %p83
      %p85 = scmp.ne.s32.totalorder %s71, %s72
      %p86 = scmp.eq.s32.totalorder %s17, 1
      %p87 = por %p85, %p86
      %p89 = scmp.ne.s32.totalorder %s72, %s88
      %p90 = scmp.eq.s32.totalorder %s17, 0
      %p91 = por %p89, %p90
      %p92 = scmp.le.s32.totalorder 1, %s11
      %p93 = scmp.lt.s32.totalorder %s11, 3
      %p94 = pnand %p92, %p93
      %p95 = pneg %p94
      // Predicated region
      $region9: #{tpu_custom_call.1} parent=5 // pred_check
        _
      $region10: #{tpu_custom_call.1} parent=5 // pred_check_branch
        %97 = sbr.rel (%p94) target = $region12
      $region11: #{tpu_custom_call.1} parent=5 // pred_region
        %s98 = ssub.s32 %s11, 1
        // Predicated region
        $region13: #{tpu_custom_call.1} parent=11 // pred_check
          %p99 = pneg %p58
        $region14: #{tpu_custom_call.1} parent=11 // pred_check_branch
          %101 = sbr.rel (%p99) target = $region16
        $region15: #{tpu_custom_call.1} parent=11 // pred_region
          _
        $region16: #{tpu_custom_call.1} parent=11 // pred_fallthru
          _
      $region12: #{tpu_custom_call.1} parent=5 // pred_fallthru
        _
      %p102 = scmp.lt.s32.totalorder %s11, 2
      // Predicated region
      $region17: #{tpu_custom_call.1} parent=5 // pred_check
        %p103 = pneg %p102
      $region18: #{tpu_custom_call.1} parent=5 // pred_check_branch
        %105 = sbr.rel (%p103) target = $region20
      $region19: #{tpu_custom_call.1} parent=5 // pred_region
        // Predicated region
        $region21: #{tpu_custom_call.1} parent=19 // pred_check
          %p106 = pneg %p31
        $region22: #{tpu_custom_call.1} parent=19 // pred_check_branch
          %108 = sbr.rel (%p106) target = $region24
        $region23: #{tpu_custom_call.1} parent=19 // pred_region
          %s109 = sand.u32 %s21, 1
          %s110 = scalar_lea.sflag [#allocation3], %s109
          %s111 = sand.u32 %s21, 1
          %s112 = smul.addr %s111, 384
          %s113 = scalar_lea.vmem [#allocation2], %s112
          %s114 = smul.u32 32, %s11
          %s116 = ssub.s32 6144, 6144
          %117 = vsyncadd %s110, %s116
          %s118 = smul.addr %s114, 3
          %s119 = smul.addr %s118, 64
          %s120 = scalar_lea.hbm %s0, %s119
          %s121 = sshll.u32 %s113, 4
          %s122 = int_to_ptr.vmem [resolvable:$true] %s121
          %127 = dma.hbm_to_vmem [thread:$0]  %s120, 6144, %s122, %s110, 192, 192, 12
        $region24: #{tpu_custom_call.1} parent=19 // pred_fallthru
          _
      $region20: #{tpu_custom_call.1} parent=5 // pred_fallthru
        _
      %p128 = scmp.le.s32.totalorder 1, %s11
      %p129 = scmp.lt.s32.totalorder %s11, 3
      %p130 = pnand %p128, %p129
      %p131 = pneg %p130
      // Predicated region
      $region25: #{tpu_custom_call.1} parent=5 // pred_check
        _
      $region26: #{tpu_custom_call.1} parent=5 // pred_check_branch
        %133 = sbr.rel (%p130) target = $region28
      $region27: #{tpu_custom_call.1} parent=5 // pred_region
        %s134 = ssub.s32 %s11, 1
        %s135 = sand.u32 %s24, 1
        %s136 = scalar_lea.sflag [#allocation3], %s135
        %s137 = sand.u32 %s24, 1
        %s138 = smul.addr %s137, 384
        %s139 = scalar_lea.vmem [#allocation2], %s138
        // Predicated region
        $region29: #{tpu_custom_call.1} parent=27 // pred_check
          %p140 = pneg %p37
        $region30: #{tpu_custom_call.1} parent=27 // pred_check_branch
          %142 = sbr.rel (%p140) target = $region32
        $region31: #{tpu_custom_call.1} parent=27 // pred_region
          %143 = dma.done %s136, 6144
        $region32: #{tpu_custom_call.1} parent=27 // pred_fallthru
          _
        %s144 = sand.u32 %s24, 1
        %s145 = scalar_lea.sflag [#allocation3], %s144
        %s146 = sand.u32 %s24, 1
        %s147 = smul.addr %s146, 384
        %s148 = scalar_lea.vmem [#allocation2], %s147
        %p149 = pneg %p37
        %p150 = pneg %p34
        %p151 = pneg %p58
        %p152 = pneg %p55
        %p153 = pneg %p84
        %p154 = pneg %p81
        %s155 = smul.u32 32, %s16
        %p156 = scmp.lt.s32.totalorder %s155, 63
        %s157 = scalar_select %p156, %s155, 63
        %s158 = smul.addr %s157, 8
        %s159 = scalar_lea.vmem %s2, %s158
        %s160 = smul.u32 32, %s16
        %s161 = smul.u32 32, %s16
        %p162 = scmp.lt.s32.totalorder %s161, 63
        %s163 = scalar_select %p162, %s161, 63
        %s164 = smul.addr %s163, 8
        %s165 = scalar_lea.vmem %s2, %s164
        %s166 = smul.u32 32, %s16
        %v168 = vld [vmem:[%s139] sm:$0xff]
        %v169 = vld [vmem:[%s139 + $0x8] sm:$0xf]
        %v170 = vld [vmem:[%s139 + $0xc] sm:$0xff]
        %v171 = vld [vmem:[%s139 + $0x14] sm:$0xf]
        %v172 = vld [vmem:[%s139 + $0x18] sm:$0xff]
        %v173 = vld [vmem:[%s139 + $0x20] sm:$0xf]
        %v174 = vld [vmem:[%s139 + $0x24] sm:$0xff]
        %v175 = vld [vmem:[%s139 + $0x2c] sm:$0xf]
        %v176 = vld [vmem:[%s139 + $0x30] sm:$0xff]
        %v177 = vld [vmem:[%s139 + $0x38] sm:$0xf]
        %v178 = vld [vmem:[%s139 + $0x3c] sm:$0xff]
        %v179 = vld [vmem:[%s139 + $0x44] sm:$0xf]
        %v180 = vld [vmem:[%s139 + $0x48] sm:$0xff]
        %v181 = vld [vmem:[%s139 + $0x50] sm:$0xf]
        %v182 = vld [vmem:[%s139 + $0x54] sm:$0xff]
        %v183 = vld [vmem:[%s139 + $0x5c] sm:$0xf]
        %v184 = vld [vmem:[%s139 + $0x60] sm:$0xff]
        %v185 = vld [vmem:[%s139 + $0x68] sm:$0xf]
        %v186 = vld [vmem:[%s139 + $0x6c] sm:$0xff]
        %v187 = vld [vmem:[%s139 + $0x74] sm:$0xf]
        %v188 = vld [vmem:[%s139 + $0x78] sm:$0xff]
        %v189 = vld [vmem:[%s139 + $0x80] sm:$0xf]
        %v190 = vld [vmem:[%s139 + $0x84] sm:$0xff]
        %v191 = vld [vmem:[%s139 + $0x8c] sm:$0xf]
        %v192 = vld [vmem:[%s139 + $0x90] sm:$0xff]
        %v193 = vld [vmem:[%s139 + $0x98] sm:$0xf]
        %v194 = vld [vmem:[%s139 + $0x9c] sm:$0xff]
        %v195 = vld [vmem:[%s139 + $0xa4] sm:$0xf]
        %v196 = vld [vmem:[%s139 + $0xa8] sm:$0xff]
        %v197 = vld [vmem:[%s139 + $0xb0] sm:$0xf]
        %v198 = vld [vmem:[%s139 + $0xb4] sm:$0xff]
        %v199 = vld [vmem:[%s139 + $0xbc] sm:$0xf]
        %v200 = vld [vmem:[%s139 + $0xc0] sm:$0xff]
        %v201 = vld [vmem:[%s139 + $0xc8] sm:$0xf]
        %v202 = vld [vmem:[%s139 + $0xcc] sm:$0xff]
        %v203 = vld [vmem:[%s139 + $0xd4] sm:$0xf]
        %v204 = vld [vmem:[%s139 + $0xd8] sm:$0xff]
        %v205 = vld [vmem:[%s139 + $0xe0] sm:$0xf]
        %v206 = vld [vmem:[%s139 + $0xe4] sm:$0xff]
        %v207 = vld [vmem:[%s139 + $0xec] sm:$0xf]
        %v208 = vld [vmem:[%s139 + $0xf0] sm:$0xff]
        %v209 = vld [vmem:[%s139 + $0xf8] sm:$0xf]
        %v210 = vld [vmem:[%s139 + $0xfc] sm:$0xff]
        %v211 = vld [vmem:[%s139 + $0x104] sm:$0xf]
        %v212 = vld [vmem:[%s139 + $0x108] sm:$0xff]
        %v213 = vld [vmem:[%s139 + $0x110] sm:$0xf]
        %v214 = vld [vmem:[%s139 + $0x114] sm:$0xff]
        %v215 = vld [vmem:[%s139 + $0x11c] sm:$0xf]
        %v216 = vld [vmem:[%s139 + $0x120] sm:$0xff]
        %v217 = vld [vmem:[%s139 + $0x128] sm:$0xf]
        %v218 = vld [vmem:[%s139 + $0x12c] sm:$0xff]
        %v219 = vld [vmem:[%s139 + $0x134] sm:$0xf]
        %v220 = vld [vmem:[%s139 + $0x138] sm:$0xff]
        %v221 = vld [vmem:[%s139 + $0x140] sm:$0xf]
        %v222 = vld [vmem:[%s139 + $0x144] sm:$0xff]
        %v223 = vld [vmem:[%s139 + $0x14c] sm:$0xf]
        %v224 = vld [vmem:[%s139 + $0x150] sm:$0xff]
        %v225 = vld [vmem:[%s139 + $0x158] sm:$0xf]
        %v226 = vld [vmem:[%s139 + $0x15c] sm:$0xff]
        %v227 = vld [vmem:[%s139 + $0x164] sm:$0xf]
        %v228 = vld [vmem:[%s139 + $0x168] sm:$0xff]
        %v229 = vld [vmem:[%s139 + $0x170] sm:$0xf]
        %v230 = vld [vmem:[%s139 + $0x174] sm:$0xff]
        %v231 = vld [vmem:[%s139 + $0x17c] sm:$0xf]
        %v232 = vld [vmem:[%s1] sm:$0xf]
        %v233 = vld [vmem:[%s1 + $0x4] sm:$0xf]
        %v234 = vld [vmem:[%s1 + $0x8] sm:$0xf]
        %v235 = vld [vmem:[%s1 + $0xc] sm:$0xf]
        %v236 = vld [vmem:[%s1 + $0x10] sm:$0xf]
        %v237 = vld [vmem:[%s1 + $0x14] sm:$0xf]
        %v238 = vld [vmem:[%s1 + $0x18] sm:$0xf]
        %v239 = vld [vmem:[%s1 + $0x1c] sm:$0xf]
        %v240 = vld [vmem:[%s1 + $0x20] sm:$0xf]
        %v241 = vld [vmem:[%s1 + $0x24] sm:$0xf]
        %v242 = vld [vmem:[%s1 + $0x28] sm:$0xf]
        %v243 = vld [vmem:[%s1 + $0x2c] sm:$0xf]
        %v244 = vld [vmem:[%s1 + $0x30] sm:$0xf]
        %v245 = vld [vmem:[%s1 + $0x34] sm:$0xf]
        %v246 = vld [vmem:[%s1 + $0x38] sm:$0xf]
        %v247 = vld [vmem:[%s1 + $0x3c] sm:$0xf]
        %v248 = vld [vmem:[%s1 + $0x40] sm:$0xf]
        %v249 = vld [vmem:[%s1 + $0x44] sm:$0xf]
        %v250 = vld [vmem:[%s1 + $0x48] sm:$0xf]
        %v251 = vld [vmem:[%s1 + $0x4c] sm:$0xf]
        %v252 = vld [vmem:[%s1 + $0x50] sm:$0xf]
        %v253 = vld [vmem:[%s1 + $0x54] sm:$0xf]
        %v254 = vld [vmem:[%s1 + $0x58] sm:$0xf]
        %v255 = vld [vmem:[%s1 + $0x5c] sm:$0xf]
        %v256 = vld [vmem:[%s1 + $0x60] sm:$0xf]
        %v257 = vld [vmem:[%s1 + $0x64] sm:$0xf]
        %v258 = vld [vmem:[%s1 + $0x68] sm:$0xf]
        %v259 = vld [vmem:[%s1 + $0x6c] sm:$0xf]
        %v260 = vld [vmem:[%s1 + $0x70] sm:$0xf]
        %v261 = vld [vmem:[%s1 + $0x74] sm:$0xf]
        %v262 = vld [vmem:[%s1 + $0x78] sm:$0xf]
        %v263 = vld [vmem:[%s1 + $0x7c] sm:$0xf]
        %v264 = vld [vmem:[%s1 + $0x80] sm:$0xf]
        %v265 = vld [vmem:[%s1 + $0x84] sm:$0xf]
        %v266 = vld [vmem:[%s1 + $0x88] sm:$0xf]
        %v267 = vld [vmem:[%s1 + $0x8c] sm:$0xf]
        %v268 = vld [vmem:[%s1 + $0x90] sm:$0xf]
        %v269 = vld [vmem:[%s1 + $0x94] sm:$0xf]
        %v270 = vld [vmem:[%s1 + $0x98] sm:$0xf]
        %v271 = vld [vmem:[%s1 + $0x9c] sm:$0xf]
        %v272 = vld [vmem:[%s1 + $0xa0] sm:$0xf]
        %v273 = vld [vmem:[%s1 + $0xa4] sm:$0xf]
        %v274 = vld [vmem:[%s1 + $0xa8] sm:$0xf]
        %v275 = vld [vmem:[%s1 + $0xac] sm:$0xf]
        %v276 = vld [vmem:[%s1 + $0xb0] sm:$0xf]
        %v277 = vld [vmem:[%s1 + $0xb4] sm:$0xf]
        %v278 = vld [vmem:[%s1 + $0xb8] sm:$0xf]
        %v279 = vld [vmem:[%s1 + $0xbc] sm:$0xf]
        %v344 = vunpack.c.l.b16 %v168
        %v345 = vunpack.c.h.b16 %v168
        %v346 = vunpack.c.l.b16 %v169
        %v347 = vunpack.c.l.b16 %v170
        %v348 = vunpack.c.h.b16 %v170
        %v349 = vunpack.c.l.b16 %v171
        %v350 = vunpack.c.l.b16 %v172
        %v351 = vunpack.c.h.b16 %v172
        %v352 = vunpack.c.l.b16 %v173
        %v353 = vunpack.c.l.b16 %v174
        %v354 = vunpack.c.h.b16 %v174
        %v355 = vunpack.c.l.b16 %v175
        %v356 = vunpack.c.l.b16 %v176
        %v357 = vunpack.c.h.b16 %v176
        %v358 = vunpack.c.l.b16 %v177
        %v359 = vunpack.c.l.b16 %v178
        %v360 = vunpack.c.h.b16 %v178
        %v361 = vunpack.c.l.b16 %v179
        %v362 = vunpack.c.l.b16 %v180
        %v363 = vunpack.c.h.b16 %v180
        %v364 = vunpack.c.l.b16 %v181
        %v365 = vunpack.c.l.b16 %v182
        %v366 = vunpack.c.h.b16 %v182
        %v367 = vunpack.c.l.b16 %v183
        %v368 = vunpack.c.l.b16 %v184
        %v369 = vunpack.c.h.b16 %v184
        %v370 = vunpack.c.l.b16 %v185
        %v371 = vunpack.c.l.b16 %v186
        %v372 = vunpack.c.h.b16 %v186
        %v373 = vunpack.c.l.b16 %v187
        %v374 = vunpack.c.l.b16 %v188
        %v375 = vunpack.c.h.b16 %v188
        %v376 = vunpack.c.l.b16 %v189
        %v377 = vunpack.c.l.b16 %v190
        %v378 = vunpack.c.h.b16 %v190
        %v379 = vunpack.c.l.b16 %v191
        %v380 = vunpack.c.l.b16 %v192
        %v381 = vunpack.c.h.b16 %v192
        %v382 = vunpack.c.l.b16 %v193
        %v383 = vunpack.c.l.b16 %v194
        %v384 = vunpack.c.h.b16 %v194
        %v385 = vunpack.c.l.b16 %v195
        %v386 = vunpack.c.l.b16 %v196
        %v387 = vunpack.c.h.b16 %v196
        %v388 = vunpack.c.l.b16 %v197
        %v389 = vunpack.c.l.b16 %v198
        %v390 = vunpack.c.h.b16 %v198
        %v391 = vunpack.c.l.b16 %v199
        %v392 = vunpack.c.l.b16 %v200
        %v393 = vunpack.c.h.b16 %v200
        %v394 = vunpack.c.l.b16 %v201
        %v395 = vunpack.c.l.b16 %v202
        %v396 = vunpack.c.h.b16 %v202
        %v397 = vunpack.c.l.b16 %v203
        %v398 = vunpack.c.l.b16 %v204
        %v399 = vunpack.c.h.b16 %v204
        %v400 = vunpack.c.l.b16 %v205
        %v401 = vunpack.c.l.b16 %v206
        %v402 = vunpack.c.h.b16 %v206
        %v403 = vunpack.c.l.b16 %v207
        %v404 = vunpack.c.l.b16 %v208
        %v405 = vunpack.c.h.b16 %v208
        %v406 = vunpack.c.l.b16 %v209
        %v407 = vunpack.c.l.b16 %v210
        %v408 = vunpack.c.h.b16 %v210
        %v409 = vunpack.c.l.b16 %v211
        %v410 = vunpack.c.l.b16 %v212
        %v411 = vunpack.c.h.b16 %v212
        %v412 = vunpack.c.l.b16 %v213
        %v413 = vunpack.c.l.b16 %v214
        %v414 = vunpack.c.h.b16 %v214
        %v415 = vunpack.c.l.b16 %v215
        %v416 = vunpack.c.l.b16 %v216
        %v417 = vunpack.c.h.b16 %v216
        %v418 = vunpack.c.l.b16 %v217
        %v419 = vunpack.c.l.b16 %v218
        %v420 = vunpack.c.h.b16 %v218
        %v421 = vunpack.c.l.b16 %v219
        %v422 = vunpack.c.l.b16 %v220
        %v423 = vunpack.c.h.b16 %v220
        %v424 = vunpack.c.l.b16 %v221
        %v425 = vunpack.c.l.b16 %v222
        %v426 = vunpack.c.h.b16 %v222
        %v427 = vunpack.c.l.b16 %v223
        %v428 = vunpack.c.l.b16 %v224
        %v429 = vunpack.c.h.b16 %v224
        %v430 = vunpack.c.l.b16 %v225
        %v431 = vunpack.c.l.b16 %v226
        %v432 = vunpack.c.h.b16 %v226
        %v433 = vunpack.c.l.b16 %v227
        %v434 = vunpack.c.l.b16 %v228
        %v435 = vunpack.c.h.b16 %v228
        %v436 = vunpack.c.l.b16 %v229
        %v437 = vunpack.c.l.b16 %v230
        %v438 = vunpack.c.h.b16 %v230
        %v439 = vunpack.c.l.b16 %v231
        %v440 = vpack.c.b16 %v347, %v344
        %v441 = vpack.c.b16 %v348, %v345
        %v442 = vpack.c.b16 %v349, %v346
        %v443 = vpack.c.b16 %v353, %v350
        %v444 = vpack.c.b16 %v354, %v351
        %v445 = vpack.c.b16 %v355, %v352
        %v446 = vpack.c.b16 %v359, %v356
        %v447 = vpack.c.b16 %v360, %v357
        %v448 = vpack.c.b16 %v361, %v358
        %v449 = vpack.c.b16 %v365, %v362
        %v450 = vpack.c.b16 %v366, %v363
        %v451 = vpack.c.b16 %v367, %v364
        %v452 = vpack.c.b16 %v371, %v368
        %v453 = vpack.c.b16 %v372, %v369
        %v454 = vpack.c.b16 %v373, %v370
        %v455 = vpack.c.b16 %v377, %v374
        %v456 = vpack.c.b16 %v378, %v375
        %v457 = vpack.c.b16 %v379, %v376
        %v458 = vpack.c.b16 %v383, %v380
        %v459 = vpack.c.b16 %v384, %v381
        %v460 = vpack.c.b16 %v385, %v382
        %v461 = vpack.c.b16 %v389, %v386
        %v462 = vpack.c.b16 %v390, %v387
        %v463 = vpack.c.b16 %v391, %v388
        %v464 = vpack.c.b16 %v395, %v392
        %v465 = vpack.c.b16 %v396, %v393
        %v466 = vpack.c.b16 %v397, %v394
        %v467 = vpack.c.b16 %v401, %v398
        %v468 = vpack.c.b16 %v402, %v399
        %v469 = vpack.c.b16 %v403, %v400
        %v470 = vpack.c.b16 %v407, %v404
        %v471 = vpack.c.b16 %v408, %v405
        %v472 = vpack.c.b16 %v409, %v406
        %v473 = vpack.c.b16 %v413, %v410
        %v474 = vpack.c.b16 %v414, %v411
        %v475 = vpack.c.b16 %v415, %v412
        %v476 = vpack.c.b16 %v419, %v416
        %v477 = vpack.c.b16 %v420, %v417
        %v478 = vpack.c.b16 %v421, %v418
        %v479 = vpack.c.b16 %v425, %v422
        %v480 = vpack.c.b16 %v426, %v423
        %v481 = vpack.c.b16 %v427, %v424
        %v482 = vpack.c.b16 %v431, %v428
        %v483 = vpack.c.b16 %v432, %v429
        %v484 = vpack.c.b16 %v433, %v430
        %v485 = vpack.c.b16 %v437, %v434
        %v486 = vpack.c.b16 %v438, %v435
        %v487 = vpack.c.b16 %v439, %v436
        %v584 = vunpack.c.l.b16 %v232
        %v585 = vunpack.c.l.b16 %v233
        %v586 = vunpack.c.l.b16 %v234
        %v587 = vunpack.c.l.b16 %v235
        %v588 = vunpack.c.l.b16 %v236
        %v589 = vunpack.c.l.b16 %v237
        %v590 = vunpack.c.l.b16 %v238
        %v591 = vunpack.c.l.b16 %v239
        %v592 = vunpack.c.l.b16 %v240
        %v593 = vunpack.c.l.b16 %v241
        %v594 = vunpack.c.l.b16 %v242
        %v595 = vunpack.c.l.b16 %v243
        %v596 = vunpack.c.l.b16 %v244
        %v597 = vunpack.c.l.b16 %v245
        %v598 = vunpack.c.l.b16 %v246
        %v599 = vunpack.c.l.b16 %v247
        %v600 = vunpack.c.l.b16 %v248
        %v601 = vunpack.c.l.b16 %v249
        %v602 = vunpack.c.l.b16 %v250
        %v603 = vunpack.c.l.b16 %v251
        %v604 = vunpack.c.l.b16 %v252
        %v605 = vunpack.c.l.b16 %v253
        %v606 = vunpack.c.l.b16 %v254
        %v607 = vunpack.c.l.b16 %v255
        %v608 = vunpack.c.l.b16 %v256
        %v609 = vunpack.c.l.b16 %v257
        %v610 = vunpack.c.l.b16 %v258
        %v611 = vunpack.c.l.b16 %v259
        %v612 = vunpack.c.l.b16 %v260
        %v613 = vunpack.c.l.b16 %v261
        %v614 = vunpack.c.l.b16 %v262
        %v615 = vunpack.c.l.b16 %v263
        %v616 = vunpack.c.l.b16 %v264
        %v617 = vunpack.c.l.b16 %v265
        %v618 = vunpack.c.l.b16 %v266
        %v619 = vunpack.c.l.b16 %v267
        %v620 = vunpack.c.l.b16 %v268
        %v621 = vunpack.c.l.b16 %v269
        %v622 = vunpack.c.l.b16 %v270
        %v623 = vunpack.c.l.b16 %v271
        %v624 = vunpack.c.l.b16 %v272
        %v625 = vunpack.c.l.b16 %v273
        %v626 = vunpack.c.l.b16 %v274
        %v627 = vunpack.c.l.b16 %v275
        %v628 = vunpack.c.l.b16 %v276
        %v629 = vunpack.c.l.b16 %v277
        %v630 = vunpack.c.l.b16 %v278
        %v631 = vunpack.c.l.b16 %v279
        %v632 = vpack.c.b16 %v585, %v584
        %v633 = vpack.c.b16 %v587, %v586
        %v634 = vpack.c.b16 %v589, %v588
        %v635 = vpack.c.b16 %v591, %v590
        %v636 = vpack.c.b16 %v593, %v592
        %v637 = vpack.c.b16 %v595, %v594
        %v638 = vpack.c.b16 %v597, %v596
        %v639 = vpack.c.b16 %v599, %v598
        %v640 = vpack.c.b16 %v601, %v600
        %v641 = vpack.c.b16 %v603, %v602
        %v642 = vpack.c.b16 %v605, %v604
        %v643 = vpack.c.b16 %v607, %v606
        %v644 = vpack.c.b16 %v609, %v608
        %v645 = vpack.c.b16 %v611, %v610
        %v646 = vpack.c.b16 %v613, %v612
        %v647 = vpack.c.b16 %v615, %v614
        %v648 = vpack.c.b16 %v617, %v616
        %v649 = vpack.c.b16 %v619, %v618
        %v650 = vpack.c.b16 %v621, %v620
        %v651 = vpack.c.b16 %v623, %v622
        %v652 = vpack.c.b16 %v625, %v624
        %v653 = vpack.c.b16 %v627, %v626
        %v654 = vpack.c.b16 %v629, %v628
        %v655 = vpack.c.b16 %v631, %v630
        %680 = vmatprep.subr.bf16.mxu0 0
        %681 = vmatpush1.bf16.msra.mxu0 %v632
        %682 = vmatprep.subr.bf16.mxu0 0
        %683 = vmatpush1.bf16.msra.mxu0 %v633
        %684 = vmatprep.subr.bf16.mxu0 0
        %685 = vmatpush1.bf16.msra.mxu0 %v634
        %686 = vmatprep.subr.bf16.mxu0 0
        %687 = vmatpush1.bf16.msra.mxu0 %v635
        %688 = vmatprep.subr.bf16.mxu0 0
        %689 = vmatpush1.bf16.msra.mxu0 %v636
        %690 = vmatprep.subr.bf16.mxu0 0
        %691 = vmatpush1.bf16.msra.mxu0 %v637
        %692 = vmatprep.subr.bf16.mxu0 0
        %693 = vmatpush1.bf16.msra.mxu0 %v638
        %694 = vmatprep.subr.bf16.mxu0 0
        %695 = vmatpush1.bf16.msra.mxu0 %v639
        %696 = vmatprep.subr.bf16.mxu0 0
        %697 = vmatpush1.bf16.msra.mxu0 %v640
        %698 = vmatprep.subr.bf16.mxu0 0
        %699 = vmatpush1.bf16.msra.mxu0 %v641
        %700 = vmatprep.subr.bf16.mxu0 0
        %701 = vmatpush1.bf16.msra.mxu0 %v642
        %702 = vmatprep.subr.bf16.mxu0 0
        %703 = vmatpush1.bf16.msra.mxu0 %v643
        %704 = vmatprep.subr.bf16.mxu0 0
        %705 = vmatpush1.bf16.msra.mxu0 %v644
        %706 = vmatprep.subr.bf16.mxu0 0
        %707 = vmatpush1.bf16.msra.mxu0 %v645
        %708 = vmatprep.subr.bf16.mxu0 0
        %709 = vmatpush1.bf16.msra.mxu0 %v646
        %710 = vmatprep.subr.bf16.mxu0 0
        %711 = vmatpush1.bf16.msra.mxu0 %v647
        %712 = vmatprep.mubr.bf16.mxu0 %v441
        %713 = vmatmul.mubr.bf16.gmra.mrb[0].mxu0 %v440
        %v714 = vpop.f32.mrb[0].mxu0
        %v715 = vadd.f32 0.0, %v714
        %v716 = vpop.f32.mrb[0].mxu0
        %v717 = vpop.f32.mrb[0].mxu0
        %v718 = vadd.f32 0.0, %v717
        %v719 = vpop.f32.mrb[0].mxu0
        %720 = vmatprep.mubr.bf16.mxu0 %v444
        %721 = vmatmul.mubr.bf16.gmra.mrb[0].mxu0 %v443
        %v722 = vpop.f32.mrb[0].mxu0
        %v723 = vadd.f32 0.0, %v722
        %v724 = vpop.f32.mrb[0].mxu0
        %v725 = vpop.f32.mrb[0].mxu0
        %v726 = vadd.f32 0.0, %v725
        %v727 = vpop.f32.mrb[0].mxu0
        %728 = vmatprep.mubr.bf16.mxu0 %v447
        %729 = vmatmul.mubr.bf16.gmra.mrb[0].mxu0 %v446
        %v730 = vpop.f32.mrb[0].mxu0
        %v731 = vadd.f32 0.0, %v730
        %v732 = vpop.f32.mrb[0].mxu0
        %v733 = vpop.f32.mrb[0].mxu0
        %v734 = vadd.f32 0.0, %v733
        %v735 = vpop.f32.mrb[0].mxu0
        %736 = vmatprep.mubr.bf16.mxu0 %v450
        %737 = vmatmul.mubr.bf16.gmra.mrb[0].mxu0 %v449
        %v738 = vpop.f32.mrb[0].mxu0
        %v739 = vadd.f32 0.0, %v738
        %v740 = vpop.f32.mrb[0].mxu0
        %v741 = vpop.f32.mrb[0].mxu0
        %v742 = vadd.f32 0.0, %v741
        %v743 = vpop.f32.mrb[0].mxu0
        %744 = vmatprep.mubr.bf16.mxu0 %v453
        %745 = vmatmul.mubr.bf16.gmra.mrb[0].mxu0 %v452
        %v746 = vpop.f32.mrb[0].mxu0
        %v747 = vadd.f32 0.0, %v746
        %v748 = vpop.f32.mrb[0].mxu0
        %v749 = vpop.f32.mrb[0].mxu0
        %v750 = vadd.f32 0.0, %v749
        %v751 = vpop.f32.mrb[0].mxu0
        %752 = vmatprep.mubr.bf16.mxu0 %v456
        %753 = vmatmul.mubr.bf16.gmra.mrb[0].mxu0 %v455
        %v754 = vpop.f32.mrb[0].mxu0
        %v755 = vadd.f32 0.0, %v754
        %v756 = vpop.f32.mrb[0].mxu0
        %v757 = vpop.f32.mrb[0].mxu0
        %v758 = vadd.f32 0.0, %v757
        %v759 = vpop.f32.mrb[0].mxu0
        %760 = vmatprep.mubr.bf16.mxu0 %v459
        %761 = vmatmul.mubr.bf16.gmra.mrb[0].mxu0 %v458
        %v762 = vpop.f32.mrb[0].mxu0
        %v763 = vadd.f32 0.0, %v762
        %v764 = vpop.f32.mrb[0].mxu0
        %v765 = vpop.f32.mrb[0].mxu0
        %v766 = vadd.f32 0.0, %v765
        %v767 = vpop.f32.mrb[0].mxu0
        %768 = vmatprep.mubr.bf16.mxu0 %v462
        %769 = vmatmul.mubr.bf16.gmra.mrb[0].mxu0 %v461
        %v770 = vpop.f32.mrb[0].mxu0
        %v771 = vadd.f32 0.0, %v770
        %v772 = vpop.f32.mrb[0].mxu0
        %v773 = vpop.f32.mrb[0].mxu0
        %v774 = vadd.f32 0.0, %v773
        %v775 = vpop.f32.mrb[0].mxu0
        %776 = vmatprep.mubr.bf16.mxu0 %v465
        %777 = vmatmul.mubr.bf16.gmra.mrb[0].mxu0 %v464
        %v778 = vpop.f32.mrb[0].mxu0
        %v779 = vadd.f32 0.0, %v778
        %v780 = vpop.f32.mrb[0].mxu0
        %v781 = vpop.f32.mrb[0].mxu0
        %v782 = vadd.f32 0.0, %v781
        %v783 = vpop.f32.mrb[0].mxu0
        %784 = vmatprep.mubr.bf16.mxu0 %v468
        %785 = vmatmul.mubr.bf16.gmra.mrb[0].mxu0 %v467
        %v786 = vpop.f32.mrb[0].mxu0
        %v787 = vadd.f32 0.0, %v786
        %v788 = vpop.f32.mrb[0].mxu0
        %v789 = vpop.f32.mrb[0].mxu0
        %v790 = vadd.f32 0.0, %v789
        %v791 = vpop.f32.mrb[0].mxu0
        %792 = vmatprep.mubr.bf16.mxu0 %v471
        %793 = vmatmul.mubr.bf16.gmra.mrb[0].mxu0 %v470
        %v794 = vpop.f32.mrb[0].mxu0
        %v795 = vadd.f32 0.0, %v794
        %v796 = vpop.f32.mrb[0].mxu0
        %v797 = vpop.f32.mrb[0].mxu0
        %v798 = vadd.f32 0.0, %v797
        %v799 = vpop.f32.mrb[0].mxu0
        %800 = vmatprep.mubr.bf16.mxu0 %v474
        %801 = vmatmul.mubr.bf16.gmra.mrb[0].mxu0 %v473
        %v802 = vpop.f32.mrb[0].mxu0
        %v803 = vadd.f32 0.0, %v802
        %v804 = vpop.f32.mrb[0].mxu0
        %v805 = vpop.f32.mrb[0].mxu0
        %v806 = vadd.f32 0.0, %v805
        %v807 = vpop.f32.mrb[0].mxu0
        %808 = vmatprep.mubr.bf16.mxu0 %v477
        %809 = vmatmul.mubr.bf16.gmra.mrb[0].mxu0 %v476
        %v810 = vpop.f32.mrb[0].mxu0
        %v811 = vadd.f32 0.0, %v810
        %v812 = vpop.f32.mrb[0].mxu0
        %v813 = vpop.f32.mrb[0].mxu0
        %v814 = vadd.f32 0.0, %v813
        %v815 = vpop.f32.mrb[0].mxu0
        %816 = vmatprep.mubr.bf16.mxu0 %v480
        %817 = vmatmul.mubr.bf16.gmra.mrb[0].mxu0 %v479
        %v818 = vpop.f32.mrb[0].mxu0
        %v819 = vadd.f32 0.0, %v818
        %v820 = vpop.f32.mrb[0].mxu0
        %v821 = vpop.f32.mrb[0].mxu0
        %v822 = vadd.f32 0.0, %v821
        %v823 = vpop.f32.mrb[0].mxu0
        %824 = vmatprep.mubr.bf16.mxu0 %v483
        %825 = vmatmul.mubr.bf16.gmra.mrb[0].mxu0 %v482
        %v826 = vpop.f32.mrb[0].mxu0
        %v827 = vadd.f32 0.0, %v826
        %v828 = vpop.f32.mrb[0].mxu0
        %v829 = vpop.f32.mrb[0].mxu0
        %v830 = vadd.f32 0.0, %v829
        %v831 = vpop.f32.mrb[0].mxu0
        %832 = vmatprep.mubr.bf16.mxu0 %v486
        %833 = vmatmul.mubr.bf16.gmra.mrb[0].mxu0 %v485
        %v834 = vpop.f32.mrb[0].mxu0
        %v835 = vadd.f32 0.0, %v834
        %v836 = vpop.f32.mrb[0].mxu0
        %v837 = vpop.f32.mrb[0].mxu0
        %v838 = vadd.f32 0.0, %v837
        %v839 = vpop.f32.mrb[0].mxu0
        %840 = vdwg.mxu0
        %841 = vmatprep.subr.bf16.mxu0 0
        %842 = vmatpush1.bf16.msra.mxu0 %v648
        %843 = vmatprep.subr.bf16.mxu0 0
        %844 = vmatpush1.bf16.msra.mxu0 %v649
        %845 = vmatprep.subr.bf16.mxu0 0
        %846 = vmatpush1.bf16.msra.mxu0 %v650
        %847 = vmatprep.subr.bf16.mxu0 0
        %848 = vmatpush1.bf16.msra.mxu0 %v651
        %849 = vmatprep.subr.bf16.mxu0 0
        %850 = vmatpush1.bf16.msra.mxu0 %v652
        %851 = vmatprep.subr.bf16.mxu0 0
        %852 = vmatpush1.bf16.msra.mxu0 %v653
        %853 = vmatprep.subr.bf16.mxu0 0
        %854 = vmatpush1.bf16.msra.mxu0 %v654
        %855 = vmatprep.subr.bf16.mxu0 0
        %856 = vmatpush1.bf16.msra.mxu0 %v655
        %857 = vmatprep.subr.bf16.mxu0 0
        %858 = vmatpush1.bf16.msra.mxu0 0
        %859 = vmatprep.subr.bf16.mxu0 0
        %860 = vmatpush1.bf16.msra.mxu0 0
        %861 = vmatprep.subr.bf16.mxu0 0
        %862 = vmatpush1.bf16.msra.mxu0 0
        %863 = vmatprep.subr.bf16.mxu0 0
        %864 = vmatpush1.bf16.msra.mxu0 0
        %865 = vmatprep.subr.bf16.mxu0 0
        %866 = vmatpush1.bf16.msra.mxu0 0
        %867 = vmatprep.subr.bf16.mxu0 0
        %868 = vmatpush1.bf16.msra.mxu0 0
        %869 = vmatprep.subr.bf16.mxu0 0
        %870 = vmatpush1.bf16.msra.mxu0 0
        %871 = vmatprep.subr.bf16.mxu0 0
        %872 = vmatpush1.bf16.msra.mxu0 0
        %873 = vmatprep.mubr.bf16.mxu0 0
        %874 = vmatmul.mubr.bf16.gmra.mrb[0].mxu0 %v442
        %v875 = vpop.f32.mrb[0].mxu0
        %v876 = vadd.f32 %v715, %v875
        %v877 = vpop.f32.mrb[0].mxu0
        %v878 = vpop.f32.mrb[0].mxu0
        %v879 = vadd.f32 %v718, %v878
        %v880 = vpop.f32.mrb[0].mxu0
        %881 = vmatprep.mubr.bf16.mxu0 0
        %882 = vmatmul.mubr.bf16.gmra.mrb[0].mxu0 %v445
        %v883 = vpop.f32.mrb[0].mxu0
        %v884 = vadd.f32 %v723, %v883
        %v885 = vpop.f32.mrb[0].mxu0
        %v886 = vpop.f32.mrb[0].mxu0
        %v887 = vadd.f32 %v726, %v886
        %v888 = vpop.f32.mrb[0].mxu0
        %889 = vmatprep.mubr.bf16.mxu0 0
        %890 = vmatmul.mubr.bf16.gmra.mrb[0].mxu0 %v448
        %v891 = vpop.f32.mrb[0].mxu0
        %v892 = vadd.f32 %v731, %v891
        %v893 = vpop.f32.mrb[0].mxu0
        %v894 = vpop.f32.mrb[0].mxu0
        %v895 = vadd.f32 %v734, %v894
        %v896 = vpop.f32.mrb[0].mxu0
        %897 = vmatprep.mubr.bf16.mxu0 0
        %898 = vmatmul.mubr.bf16.gmra.mrb[0].mxu0 %v451
        %v899 = vpop.f32.mrb[0].mxu0
        %v900 = vadd.f32 %v739, %v899
        %v901 = vpop.f32.mrb[0].mxu0
        %v902 = vpop.f32.mrb[0].mxu0
        %v903 = vadd.f32 %v742, %v902
        %v904 = vpop.f32.mrb[0].mxu0
        %905 = vmatprep.mubr.bf16.mxu0 0
        %906 = vmatmul.mubr.bf16.gmra.mrb[0].mxu0 %v454
        %v907 = vpop.f32.mrb[0].mxu0
        %v908 = vadd.f32 %v747, %v907
        %v909 = vpop.f32.mrb[0].mxu0
        %v910 = vpop.f32.mrb[0].mxu0
        %v911 = vadd.f32 %v750, %v910
        %v912 = vpop.f32.mrb[0].mxu0
        %913 = vmatprep.mubr.bf16.mxu0 0
        %914 = vmatmul.mubr.bf16.gmra.mrb[0].mxu0 %v457
        %v915 = vpop.f32.mrb[0].mxu0
        %v916 = vadd.f32 %v755, %v915
        %v917 = vpop.f32.mrb[0].mxu0
        %v918 = vpop.f32.mrb[0].mxu0
        %v919 = vadd.f32 %v758, %v918
        %v920 = vpop.f32.mrb[0].mxu0
        %921 = vmatprep.mubr.bf16.mxu0 0
        %922 = vmatmul.mubr.bf16.gmra.mrb[0].mxu0 %v460
        %v923 = vpop.f32.mrb[0].mxu0
        %v924 = vadd.f32 %v763, %v923
        %v925 = vpop.f32.mrb[0].mxu0
        %v926 = vpop.f32.mrb[0].mxu0
        %v927 = vadd.f32 %v766, %v926
        %v928 = vpop.f32.mrb[0].mxu0
        %929 = vmatprep.mubr.bf16.mxu0 0
        %930 = vmatmul.mubr.bf16.gmra.mrb[0].mxu0 %v463
        %v931 = vpop.f32.mrb[0].mxu0
        %v932 = vadd.f32 %v771, %v931
        %v933 = vpop.f32.mrb[0].mxu0
        %v934 = vpop.f32.mrb[0].mxu0
        %v935 = vadd.f32 %v774, %v934
        %v936 = vpop.f32.mrb[0].mxu0
        %937 = vmatprep.mubr.bf16.mxu0 0
        %938 = vmatmul.mubr.bf16.gmra.mrb[0].mxu0 %v466
        %v939 = vpop.f32.mrb[0].mxu0
        %v940 = vadd.f32 %v779, %v939
        %v941 = vpop.f32.mrb[0].mxu0
        %v942 = vpop.f32.mrb[0].mxu0
        %v943 = vadd.f32 %v782, %v942
        %v944 = vpop.f32.mrb[0].mxu0
        %945 = vmatprep.mubr.bf16.mxu0 0
        %946 = vmatmul.mubr.bf16.gmra.mrb[0].mxu0 %v469
        %v947 = vpop.f32.mrb[0].mxu0
        %v948 = vadd.f32 %v787, %v947
        %v949 = vpop.f32.mrb[0].mxu0
        %v950 = vpop.f32.mrb[0].mxu0
        %v951 = vadd.f32 %v790, %v950
        %v952 = vpop.f32.mrb[0].mxu0
        %953 = vmatprep.mubr.bf16.mxu0 0
        %954 = vmatmul.mubr.bf16.gmra.mrb[0].mxu0 %v472
        %v955 = vpop.f32.mrb[0].mxu0
        %v956 = vadd.f32 %v795, %v955
        %v957 = vpop.f32.mrb[0].mxu0
        %v958 = vpop.f32.mrb[0].mxu0
        %v959 = vadd.f32 %v798, %v958
        %v960 = vpop.f32.mrb[0].mxu0
        %961 = vmatprep.mubr.bf16.mxu0 0
        %962 = vmatmul.mubr.bf16.gmra.mrb[0].mxu0 %v475
        %v963 = vpop.f32.mrb[0].mxu0
        %v964 = vadd.f32 %v803, %v963
        %v965 = vpop.f32.mrb[0].mxu0
        %v966 = vpop.f32.mrb[0].mxu0
        %v967 = vadd.f32 %v806, %v966
        %v968 = vpop.f32.mrb[0].mxu0
        %969 = vmatprep.mubr.bf16.mxu0 0
        %970 = vmatmul.mubr.bf16.gmra.mrb[0].mxu0 %v478
        %v971 = vpop.f32.mrb[0].mxu0
        %v972 = vadd.f32 %v811, %v971
        %v973 = vpop.f32.mrb[0].mxu0
        %v974 = vpop.f32.mrb[0].mxu0
        %v975 = vadd.f32 %v814, %v974
        %v976 = vpop.f32.mrb[0].mxu0
        %977 = vmatprep.mubr.bf16.mxu0 0
        %978 = vmatmul.mubr.bf16.gmra.mrb[0].mxu0 %v481
        %v979 = vpop.f32.mrb[0].mxu0
        %v980 = vadd.f32 %v819, %v979
        %v981 = vpop.f32.mrb[0].mxu0
        %v982 = vpop.f32.mrb[0].mxu0
        %v983 = vadd.f32 %v822, %v982
        %v984 = vpop.f32.mrb[0].mxu0
        %985 = vmatprep.mubr.bf16.mxu0 0
        %986 = vmatmul.mubr.bf16.gmra.mrb[0].mxu0 %v484
        %v987 = vpop.f32.mrb[0].mxu0
        %v988 = vadd.f32 %v827, %v987
        %v989 = vpop.f32.mrb[0].mxu0
        %v990 = vpop.f32.mrb[0].mxu0
        %v991 = vadd.f32 %v830, %v990
        %v992 = vpop.f32.mrb[0].mxu0
        %993 = vmatprep.mubr.bf16.mxu0 0
        %994 = vmatmul.mubr.bf16.gmra.mrb[0].mxu0 %v487
        %v995 = vpop.f32.mrb[0].mxu0
        %v996 = vadd.f32 %v835, %v995
        %v997 = vpop.f32.mrb[0].mxu0
        %v998 = vpop.f32.mrb[0].mxu0
        %v999 = vadd.f32 %v838, %v998
        %v1000 = vpop.f32.mrb[0].mxu0
        %1001 = vdwg.mxu0
        %v1002 = vpack.c.bf16 %v876, %v876
        %v1003 = vpack.c.bf16 %v879, %v879
        %v1004 = vpack.c.bf16 %v884, %v884
        %v1005 = vpack.c.bf16 %v887, %v887
        %v1006 = vpack.c.bf16 %v892, %v892
        %v1007 = vpack.c.bf16 %v895, %v895
        %v1008 = vpack.c.bf16 %v900, %v900
        %v1009 = vpack.c.bf16 %v903, %v903
        %v1010 = vpack.c.bf16 %v908, %v908
        %v1011 = vpack.c.bf16 %v911, %v911
        %v1012 = vpack.c.bf16 %v916, %v916
        %v1013 = vpack.c.bf16 %v919, %v919
        %v1014 = vpack.c.bf16 %v924, %v924
        %v1015 = vpack.c.bf16 %v927, %v927
        %v1016 = vpack.c.bf16 %v932, %v932
        %v1017 = vpack.c.bf16 %v935, %v935
        %v1018 = vpack.c.bf16 %v940, %v940
        %v1019 = vpack.c.bf16 %v943, %v943
        %v1020 = vpack.c.bf16 %v948, %v948
        %v1021 = vpack.c.bf16 %v951, %v951
        %v1022 = vpack.c.bf16 %v956, %v956
        %v1023 = vpack.c.bf16 %v959, %v959
        %v1024 = vpack.c.bf16 %v964, %v964
        %v1025 = vpack.c.bf16 %v967, %v967
        %v1026 = vpack.c.bf16 %v972, %v972
        %v1027 = vpack.c.bf16 %v975, %v975
        %v1028 = vpack.c.bf16 %v980, %v980
        %v1029 = vpack.c.bf16 %v983, %v983
        %v1030 = vpack.c.bf16 %v988, %v988
        %v1031 = vpack.c.bf16 %v991, %v991
        %v1032 = vpack.c.bf16 %v996, %v996
        %v1033 = vpack.c.bf16 %v999, %v999
        %1035 = vrot.lane.b32.xlu0 %v1002, 96
        %v1036 = vpop.permute.xlu0 %1035
        %vm1037 = vcmask 261120
        %v1039 = vsel %vm1037, %v1002, 0
        %v1042 = vsel %vm1037, %v1036, 0
        %1044 = vmatprep.subr.bf16.mxu0 0
        %1045 = vmatpush1.bf16.xpose.msra.mxu0 %v1042
        %1046 = vmatprep.subr.bf16.mxu0 0
        %1047 = vmatpush1.bf16.xpose.msra.mxu0 0
        %1048 = vmatprep.subr.bf16.mxu0 0
        %1049 = vmatpush1.bf16.xpose.msra.mxu0 0
        %1050 = vmatprep.subr.bf16.mxu0 0
        %1051 = vmatpush1.bf16.xpose.msra.mxu0 0
        %1052 = vmatprep.subr.bf16.mxu0 0
        %1053 = vmatpush1.bf16.xpose.msra.mxu0 0
        %1054 = vmatprep.subr.bf16.mxu0 0
        %1055 = vmatpush1.bf16.xpose.msra.mxu0 0
        %1056 = vmatprep.subr.bf16.mxu0 0
        %1057 = vmatpush1.bf16.xpose.msra.mxu0 0
        %1058 = vmatprep.subr.bf16.mxu0 0
        %1059 = vmatpush1.bf16.xpose.msra.mxu0 0
        %1060 = vmatprep.subr.bf16.mxu0 0
        %1061 = vmatpush1.bf16.xpose.msra.mxu0 0
        %1062 = vmatprep.subr.bf16.mxu0 0
        %1063 = vmatpush1.bf16.xpose.msra.mxu0 0
        %1064 = vmatprep.subr.bf16.mxu0 0
        %1065 = vmatpush1.bf16.xpose.msra.mxu0 0
        %1066 = vmatprep.subr.bf16.mxu0 0
        %1067 = vmatpush1.bf16.xpose.msra.mxu0 0
        %1068 = vmatprep.subr.bf16.mxu0 0
        %1069 = vmatpush1.bf16.xpose.msra.mxu0 0
        %1070 = vmatprep.subr.bf16.mxu0 0
        %1071 = vmatpush1.bf16.xpose.msra.mxu0 0
        %1072 = vmatprep.subr.bf16.mxu0 0
        %1073 = vmatpush1.bf16.xpose.msra.mxu0 0
        %1074 = vmatprep.subr.bf16.mxu0 0
        %1075 = vmatpush1.bf16.xpose.msra.mxu0 0
        %1076 = vmatprep.mubr.bf16.mxu0 0
        %1077 = vmatmul.mubr.bf16.gmra.mrb[0].mxu0 %v1039
        %v1078 = vpop.f32.mrb[0].mxu0
        %v1079 = vadd.f32 0.0, %v1078
        %v1080 = vpop.f32.mrb[0].mxu0
        %v1081 = vpop.f32.mrb[0].mxu0
        %v1082 = vpop.f32.mrb[0].mxu0
        %1083 = vdwg.mxu0
        %1085 = vrot.lane.b32.xlu0 %v1003, 96
        %v1086 = vpop.permute.xlu0 %1085
        %v1088 = vsel %vm1037, %v1003, 0
        %v1091 = vsel %vm1037, %v1086, 0
        %1093 = vmatprep.subr.bf16.mxu0 0
        %1094 = vmatpush1.bf16.xpose.msra.mxu0 %v1091
        %1095 = vmatprep.subr.bf16.mxu0 0
        %1096 = vmatpush1.bf16.xpose.msra.mxu0 0
        %1097 = vmatprep.subr.bf16.mxu0 0
        %1098 = vmatpush1.bf16.xpose.msra.mxu0 0
        %1099 = vmatprep.subr.bf16.mxu0 0
        %1100 = vmatpush1.bf16.xpose.msra.mxu0 0
        %1101 = vmatprep.subr.bf16.mxu0 0
        %1102 = vmatpush1.bf16.xpose.msra.mxu0 0
        %1103 = vmatprep.subr.bf16.mxu0 0
        %1104 = vmatpush1.bf16.xpose.msra.mxu0 0
        %1105 = vmatprep.subr.bf16.mxu0 0
        %1106 = vmatpush1.bf16.xpose.msra.mxu0 0
        %1107 = vmatprep.subr.bf16.mxu0 0
        %1108 = vmatpush1.bf16.xpose.msra.mxu0 0
        %1109 = vmatprep.subr.bf16.mxu0 0
        %1110 = vmatpush1.bf16.xpose.msra.mxu0 0
        %1111 = vmatprep.subr.bf16.mxu0 0
        %1112 = vmatpush1.bf16.xpose.msra.mxu0 0
        %1113 = vmatprep.subr.bf16.mxu0 0
        %1114 = vmatpush1.bf16.xpose.msra.mxu0 0
        %1115 = vmatprep.subr.bf16.mxu0 0
        %1116 = vmatpush1.bf16.xpose.msra.mxu0 0
        %1117 = vmatprep.subr.bf16.mxu0 0
        %1118 = vmatpush1.bf16.xpose.msra.mxu0 0
        %1119 = vmatprep.subr.bf16.mxu0 0
        %1120 = vmatpush1.bf16.xpose.msra.mxu0 0
        %1121 = vmatprep.subr.bf16.mxu0 0
        %1122 = vmatpush1.bf16.xpose.msra.mxu0 0
        %1123 = vmatprep.subr.bf16.mxu0 0
        %1124 = vmatpush1.bf16.xpose.msra.mxu0 0
        %1125 = vmatprep.mubr.bf16.mxu0 0
        %1126 = vmatmul.mubr.bf16.gmra.mrb[0].mxu0 %v1088
        %v1127 = vpop.f32.mrb[0].mxu0
        %v1128 = vadd.f32 0.0, %v1127
        %v1129 = vpop.f32.mrb[0].mxu0
        %v1130 = vpop.f32.mrb[0].mxu0
        %v1131 = vpop.f32.mrb[0].mxu0
        %1132 = vdwg.mxu0
        %1134 = vrot.lane.b32.xlu0 %v1004, 96
        %v1135 = vpop.permute.xlu0 %1134
        %v1137 = vsel %vm1037, %v1004, 0
        %v1140 = vsel %vm1037, %v1135, 0
        %1142 = vmatprep.subr.bf16.mxu0 0
        %1143 = vmatpush1.bf16.xpose.msra.mxu0 %v1140
        %1144 = vmatprep.subr.bf16.mxu0 0
        %1145 = vmatpush1.bf16.xpose.msra.mxu0 0
        %1146 = vmatprep.subr.bf16.mxu0 0
        %1147 = vmatpush1.bf16.xpose.msra.mxu0 0
        %1148 = vmatprep.subr.bf16.mxu0 0
        %1149 = vmatpush1.bf16.xpose.msra.mxu0 0
        %1150 = vmatprep.subr.bf16.mxu0 0
        %1151 = vmatpush1.bf16.xpose.msra.mxu0 0
        %1152 = vmatprep.subr.bf16.mxu0 0
        %1153 = vmatpush1.bf16.xpose.msra.mxu0 0
        %1154 = vmatprep.subr.bf16.mxu0 0
        %1155 = vmatpush1.bf16.xpose.msra.mxu0 0
        %1156 = vmatprep.subr.bf16.mxu0 0
        %1157 = vmatpush1.bf16.xpose.msra.mxu0 0
        %1158 = vmatprep.subr.bf16.mxu0 0
        %1159 = vmatpush1.bf16.xpose.msra.mxu0 0
        %1160 = vmatprep.subr.bf16.mxu0 0
        %1161 = vmatpush1.bf16.xpose.msra.mxu0 0
        %1162 = vmatprep.subr.bf16.mxu0 0
        %1163 = vmatpush1.bf16.xpose.msra.mxu0 0
        %1164 = vmatprep.subr.bf16.mxu0 0
        %1165 = vmatpush1.bf16.xpose.msra.mxu0 0
        %1166 = vmatprep.subr.bf16.mxu0 0
        %1167 = vmatpush1.bf16.xpose.msra.mxu0 0
        %1168 = vmatprep.subr.bf16.mxu0 0
        %1169 = vmatpush1.bf16.xpose.msra.mxu0 0
        %1170 = vmatprep.subr.bf16.mxu0 0
        %1171 = vmatpush1.bf16.xpose.msra.mxu0 0
        %1172 = vmatprep.subr.bf16.mxu0 0
        %1173 = vmatpush1.bf16.xpose.msra.mxu0 0
        %1174 = vmatprep.mubr.bf16.mxu0 0
        %1175 = vmatmul.mubr.bf16.gmra.mrb[0].mxu0 %v1137
        %v1176 = vpop.f32.mrb[0].mxu0
        %v1177 = vadd.f32 0.0, %v1176
        %v1178 = vpop.f32.mrb[0].mxu0
        %v1179 = vpop.f32.mrb[0].mxu0
        %v1180 = vpop.f32.mrb[0].mxu0
        %1181 = vdwg.mxu0
        %1183 = vrot.lane.b32.xlu0 %v1005, 96
        %v1184 = vpop.permute.xlu0 %1183
        %v1186 = vsel %vm1037, %v1005, 0
        %v1189 = vsel %vm1037, %v1184, 0
        %1191 = vmatprep.subr.bf16.mxu0 0
        %1192 = vmatpush1.bf16.xpose.msra.mxu0 %v1189
        %1193 = vmatprep.subr.bf16.mxu0 0
        %1194 = vmatpush1.bf16.xpose.msra.mxu0 0
        %1195 = vmatprep.subr.bf16.mxu0 0
        %1196 = vmatpush1.bf16.xpose.msra.mxu0 0
        %1197 = vmatprep.subr.bf16.mxu0 0
        %1198 = vmatpush1.bf16.xpose.msra.mxu0 0
        %1199 = vmatprep.subr.bf16.mxu0 0
        %1200 = vmatpush1.bf16.xpose.msra.mxu0 0
        %1201 = vmatprep.subr.bf16.mxu0 0
        %1202 = vmatpush1.bf16.xpose.msra.mxu0 0
        %1203 = vmatprep.subr.bf16.mxu0 0
        %1204 = vmatpush1.bf16.xpose.msra.mxu0 0
        %1205 = vmatprep.subr.bf16.mxu0 0
        %1206 = vmatpush1.bf16.xpose.msra.mxu0 0
        %1207 = vmatprep.subr.bf16.mxu0 0
        %1208 = vmatpush1.bf16.xpose.msra.mxu0 0
        %1209 = vmatprep.subr.bf16.mxu0 0
        %1210 = vmatpush1.bf16.xpose.msra.mxu0 0
        %1211 = vmatprep.subr.bf16.mxu0 0
        %1212 = vmatpush1.bf16.xpose.msra.mxu0 0
        %1213 = vmatprep.subr.bf16.mxu0 0
        %1214 = vmatpush1.bf16.xpose.msra.mxu0 0
        %1215 = vmatprep.subr.bf16.mxu0 0
        %1216 = vmatpush1.bf16.xpose.msra.mxu0 0
        %1217 = vmatprep.subr.bf16.mxu0 0
        %1218 = vmatpush1.bf16.xpose.msra.mxu0 0
        %1219 = vmatprep.subr.bf16.mxu0 0
        %1220 = vmatpush1.bf16.xpose.msra.mxu0 0
        %1221 = vmatprep.subr.bf16.mxu0 0
        %1222 = vmatpush1.bf16.xpose.msra.mxu0 0
        %1223 = vmatprep.mubr.bf16.mxu0 0
        %1224 = vmatmul.mubr.bf16.gmra.mrb[0].mxu0 %v1186
        %v1225 = vpop.f32.mrb[0].mxu0
        %v1226 = vadd.f32 0.0, %v1225
        %v1227 = vpop.f32.mrb[0].mxu0
        %v1228 = vpop.f32.mrb[0].mxu0
        %v1229 = vpop.f32.mrb[0].mxu0
        %1230 = vdwg.mxu0
        %1232 = vrot.lane.b32.xlu0 %v1006, 96
        %v1233 = vpop.permute.xlu0 %1232
        %v1235 = vsel %vm1037, %v1006, 0
        %v1238 = vsel %vm1037, %v1233, 0
        %1240 = vmatprep.subr.bf16.mxu0 0
        %1241 = vmatpush1.bf16.xpose.msra.mxu0 %v1238
        %1242 = vmatprep.subr.bf16.mxu0 0
        %1243 = vmatpush1.bf16.xpose.msra.mxu0 0
        %1244 = vmatprep.subr.bf16.mxu0 0
        %1245 = vmatpush1.bf16.xpose.msra.mxu0 0
        %1246 = vmatprep.subr.bf16.mxu0 0
        %1247 = vmatpush1.bf16.xpose.msra.mxu0 0
        %1248 = vmatprep.subr.bf16.mxu0 0
        %1249 = vmatpush1.bf16.xpose.msra.mxu0 0
        %1250 = vmatprep.subr.bf16.mxu0 0
        %1251 = vmatpush1.bf16.xpose.msra.mxu0 0
        %1252 = vmatprep.subr.bf16.mxu0 0
        %1253 = vmatpush1.bf16.xpose.msra.mxu0 0
        %1254 = vmatprep.subr.bf16.mxu0 0
        %1255 = vmatpush1.bf16.xpose.msra.mxu0 0
        %1256 = vmatprep.subr.bf16.mxu0 0
        %1257 = vmatpush1.bf16.xpose.msra.mxu0 0
        %1258 = vmatprep.subr.bf16.mxu0 0
        %1259 = vmatpush1.bf16.xpose.msra.mxu0 0
        %1260 = vmatprep.subr.bf16.mxu0 0
        %1261 = vmatpush1.bf16.xpose.msra.mxu0 0
        %1262 = vmatprep.subr.bf16.mxu0 0
        %1263 = vmatpush1.bf16.xpose.msra.mxu0 0
        %1264 = vmatprep.subr.bf16.mxu0 0
        %1265 = vmatpush1.bf16.xpose.msra.mxu0 0
        %1266 = vmatprep.subr.bf16.mxu0 0
        %1267 = vmatpush1.bf16.xpose.msra.mxu0 0
        %1268 = vmatprep.subr.bf16.mxu0 0
        %1269 = vmatpush1.bf16.xpose.msra.mxu0 0
        %1270 = vmatprep.subr.bf16.mxu0 0
        %1271 = vmatpush1.bf16.xpose.msra.mxu0 0
        %1272 = vmatprep.mubr.bf16.mxu0 0
        %1273 = vmatmul.mubr.bf16.gmra.mrb[0].mxu0 %v1235
        %v1274 = vpop.f32.mrb[0].mxu0
        %v1275 = vadd.f32 0.0, %v1274
        %v1276 = vpop.f32.mrb[0].mxu0
        %v1277 = vpop.f32.mrb[0].mxu0
        %v1278 = vpop.f32.mrb[0].mxu0
        %1279 = vdwg.mxu0
        %1281 = vrot.lane.b32.xlu0 %v1007, 96
        %v1282 = vpop.permute.xlu0 %1281
        %v1284 = vsel %vm1037, %v1007, 0
        %v1287 = vsel %vm1037, %v1282, 0
        %1289 = vmatprep.subr.bf16.mxu0 0
        %1290 = vmatpush1.bf16.xpose.msra.mxu0 %v1287
        %1291 = vmatprep.subr.bf16.mxu0 0
        %1292 = vmatpush1.bf16.xpose.msra.mxu0 0
        %1293 = vmatprep.subr.bf16.mxu0 0
        %1294 = vmatpush1.bf16.xpose.msra.mxu0 0
        %1295 = vmatprep.subr.bf16.mxu0 0
        %1296 = vmatpush1.bf16.xpose.msra.mxu0 0
        %1297 = vmatprep.subr.bf16.mxu0 0
        %1298 = vmatpush1.bf16.xpose.msra.mxu0 0
        %1299 = vmatprep.subr.bf16.mxu0 0
        %1300 = vmatpush1.bf16.xpose.msra.mxu0 0
        %1301 = vmatprep.subr.bf16.mxu0 0
        %1302 = vmatpush1.bf16.xpose.msra.mxu0 0
        %1303 = vmatprep.subr.bf16.mxu0 0
        %1304 = vmatpush1.bf16.xpose.msra.mxu0 0
        %1305 = vmatprep.subr.bf16.mxu0 0
        %1306 = vmatpush1.bf16.xpose.msra.mxu0 0
        %1307 = vmatprep.subr.bf16.mxu0 0
        %1308 = vmatpush1.bf16.xpose.msra.mxu0 0
        %1309 = vmatprep.subr.bf16.mxu0 0
        %1310 = vmatpush1.bf16.xpose.msra.mxu0 0
        %1311 = vmatprep.subr.bf16.mxu0 0
        %1312 = vmatpush1.bf16.xpose.msra.mxu0 0
        %1313 = vmatprep.subr.bf16.mxu0 0
        %1314 = vmatpush1.bf16.xpose.msra.mxu0 0
        %1315 = vmatprep.subr.bf16.mxu0 0
        %1316 = vmatpush1.bf16.xpose.msra.mxu0 0
        %1317 = vmatprep.subr.bf16.mxu0 0
        %1318 = vmatpush1.bf16.xpose.msra.mxu0 0
        %1319 = vmatprep.subr.bf16.mxu0 0
        %1320 = vmatpush1.bf16.xpose.msra.mxu0 0
        %1321 = vmatprep.mubr.bf16.mxu0 0
        %1322 = vmatmul.mubr.bf16.gmra.mrb[0].mxu0 %v1284
        %v1323 = vpop.f32.mrb[0].mxu0
        %v1324 = vadd.f32 0.0, %v1323
        %v1325 = vpop.f32.mrb[0].mxu0
        %v1326 = vpop.f32.mrb[0].mxu0
        %v1327 = vpop.f32.mrb[0].mxu0
        %1328 = vdwg.mxu0
        %1330 = vrot.lane.b32.xlu0 %v1008, 96
        %v1331 = vpop.permute.xlu0 %1330
        %v1333 = vsel %vm1037, %v1008, 0
        %v1336 = vsel %vm1037, %v1331, 0
        %1338 = vmatprep.subr.bf16.mxu0 0
        %1339 = vmatpush1.bf16.xpose.msra.mxu0 %v1336
        %1340 = vmatprep.subr.bf16.mxu0 0
        %1341 = vmatpush1.bf16.xpose.msra.mxu0 0
        %1342 = vmatprep.subr.bf16.mxu0 0
        %1343 = vmatpush1.bf16.xpose.msra.mxu0 0
        %1344 = vmatprep.subr.bf16.mxu0 0
        %1345 = vmatpush1.bf16.xpose.msra.mxu0 0
        %1346 = vmatprep.subr.bf16.mxu0 0
        %1347 = vmatpush1.bf16.xpose.msra.mxu0 0
        %1348 = vmatprep.subr.bf16.mxu0 0
        %1349 = vmatpush1.bf16.xpose.msra.mxu0 0
        %1350 = vmatprep.subr.bf16.mxu0 0
        %1351 = vmatpush1.bf16.xpose.msra.mxu0 0
        %1352 = vmatprep.subr.bf16.mxu0 0
        %1353 = vmatpush1.bf16.xpose.msra.mxu0 0
        %1354 = vmatprep.subr.bf16.mxu0 0
        %1355 = vmatpush1.bf16.xpose.msra.mxu0 0
        %1356 = vmatprep.subr.bf16.mxu0 0
        %1357 = vmatpush1.bf16.xpose.msra.mxu0 0
        %1358 = vmatprep.subr.bf16.mxu0 0
        %1359 = vmatpush1.bf16.xpose.msra.mxu0 0
        %1360 = vmatprep.subr.bf16.mxu0 0
        %1361 = vmatpush1.bf16.xpose.msra.mxu0 0
        %1362 = vmatprep.subr.bf16.mxu0 0
        %1363 = vmatpush1.bf16.xpose.msra.mxu0 0
        %1364 = vmatprep.subr.bf16.mxu0 0
        %1365 = vmatpush1.bf16.xpose.msra.mxu0 0
        %1366 = vmatprep.subr.bf16.mxu0 0
        %1367 = vmatpush1.bf16.xpose.msra.mxu0 0
        %1368 = vmatprep.subr.bf16.mxu0 0
        %1369 = vmatpush1.bf16.xpose.msra.mxu0 0
        %1370 = vmatprep.mubr.bf16.mxu0 0
        %1371 = vmatmul.mubr.bf16.gmra.mrb[0].mxu0 %v1333
        %v1372 = vpop.f32.mrb[0].mxu0
        %v1373 = vadd.f32 0.0, %v1372
        %v1374 = vpop.f32.mrb[0].mxu0
        %v1375 = vpop.f32.mrb[0].mxu0
        %v1376 = vpop.f32.mrb[0].mxu0
        %1377 = vdwg.mxu0
        %1379 = vrot.lane.b32.xlu0 %v1009, 96
        %v1380 = vpop.permute.xlu0 %1379
        %v1382 = vsel %vm1037, %v1009, 0
        %v1385 = vsel %vm1037, %v1380, 0
        %1387 = vmatprep.subr.bf16.mxu0 0
        %1388 = vmatpush1.bf16.xpose.msra.mxu0 %v1385
        %1389 = vmatprep.subr.bf16.mxu0 0
        %1390 = vmatpush1.bf16.xpose.msra.mxu0 0
        %1391 = vmatprep.subr.bf16.mxu0 0
        %1392 = vmatpush1.bf16.xpose.msra.mxu0 0
        %1393 = vmatprep.subr.bf16.mxu0 0
        %1394 = vmatpush1.bf16.xpose.msra.mxu0 0
        %1395 = vmatprep.subr.bf16.mxu0 0
        %1396 = vmatpush1.bf16.xpose.msra.mxu0 0
        %1397 = vmatprep.subr.bf16.mxu0 0
        %1398 = vmatpush1.bf16.xpose.msra.mxu0 0
        %1399 = vmatprep.subr.bf16.mxu0 0
        %1400 = vmatpush1.bf16.xpose.msra.mxu0 0
        %1401 = vmatprep.subr.bf16.mxu0 0
        %1402 = vmatpush1.bf16.xpose.msra.mxu0 0
        %1403 = vmatprep.subr.bf16.mxu0 0
        %1404 = vmatpush1.bf16.xpose.msra.mxu0 0
        %1405 = vmatprep.subr.bf16.mxu0 0
        %1406 = vmatpush1.bf16.xpose.msra.mxu0 0
        %1407 = vmatprep.subr.bf16.mxu0 0
        %1408 = vmatpush1.bf16.xpose.msra.mxu0 0
        %1409 = vmatprep.subr.bf16.mxu0 0
        %1410 = vmatpush1.bf16.xpose.msra.mxu0 0
        %1411 = vmatprep.subr.bf16.mxu0 0
        %1412 = vmatpush1.bf16.xpose.msra.mxu0 0
        %1413 = vmatprep.subr.bf16.mxu0 0
        %1414 = vmatpush1.bf16.xpose.msra.mxu0 0
        %1415 = vmatprep.subr.bf16.mxu0 0
        %1416 = vmatpush1.bf16.xpose.msra.mxu0 0
        %1417 = vmatprep.subr.bf16.mxu0 0
        %1418 = vmatpush1.bf16.xpose.msra.mxu0 0
        %1419 = vmatprep.mubr.bf16.mxu0 0
        %1420 = vmatmul.mubr.bf16.gmra.mrb[0].mxu0 %v1382
        %v1421 = vpop.f32.mrb[0].mxu0
        %v1422 = vadd.f32 0.0, %v1421
        %v1423 = vpop.f32.mrb[0].mxu0
        %v1424 = vpop.f32.mrb[0].mxu0
        %v1425 = vpop.f32.mrb[0].mxu0
        %1426 = vdwg.mxu0
        %1428 = vrot.lane.b32.xlu0 %v1010, 96
        %v1429 = vpop.permute.xlu0 %1428
        %v1431 = vsel %vm1037, %v1010, 0
        %v1434 = vsel %vm1037, %v1429, 0
        %1436 = vmatprep.subr.bf16.mxu0 0
        %1437 = vmatpush1.bf16.xpose.msra.mxu0 %v1434
        %1438 = vmatprep.subr.bf16.mxu0 0
        %1439 = vmatpush1.bf16.xpose.msra.mxu0 0
        %1440 = vmatprep.subr.bf16.mxu0 0
        %1441 = vmatpush1.bf16.xpose.msra.mxu0 0
        %1442 = vmatprep.subr.bf16.mxu0 0
        %1443 = vmatpush1.bf16.xpose.msra.mxu0 0
        %1444 = vmatprep.subr.bf16.mxu0 0
        %1445 = vmatpush1.bf16.xpose.msra.mxu0 0
        %1446 = vmatprep.subr.bf16.mxu0 0
        %1447 = vmatpush1.bf16.xpose.msra.mxu0 0
        %1448 = vmatprep.subr.bf16.mxu0 0
        %1449 = vmatpush1.bf16.xpose.msra.mxu0 0
        %1450 = vmatprep.subr.bf16.mxu0 0
        %1451 = vmatpush1.bf16.xpose.msra.mxu0 0
        %1452 = vmatprep.subr.bf16.mxu0 0
        %1453 = vmatpush1.bf16.xpose.msra.mxu0 0
        %1454 = vmatprep.subr.bf16.mxu0 0
        %1455 = vmatpush1.bf16.xpose.msra.mxu0 0
        %1456 = vmatprep.subr.bf16.mxu0 0
        %1457 = vmatpush1.bf16.xpose.msra.mxu0 0
        %1458 = vmatprep.subr.bf16.mxu0 0
        %1459 = vmatpush1.bf16.xpose.msra.mxu0 0
        %1460 = vmatprep.subr.bf16.mxu0 0
        %1461 = vmatpush1.bf16.xpose.msra.mxu0 0
        %1462 = vmatprep.subr.bf16.mxu0 0
        %1463 = vmatpush1.bf16.xpose.msra.mxu0 0
        %1464 = vmatprep.subr.bf16.mxu0 0
        %1465 = vmatpush1.bf16.xpose.msra.mxu0 0
        %1466 = vmatprep.subr.bf16.mxu0 0
        %1467 = vmatpush1.bf16.xpose.msra.mxu0 0
        %1468 = vmatprep.mubr.bf16.mxu0 0
        %1469 = vmatmul.mubr.bf16.gmra.mrb[0].mxu0 %v1431
        %v1470 = vpop.f32.mrb[0].mxu0
        %v1471 = vadd.f32 0.0, %v1470
        %v1472 = vpop.f32.mrb[0].mxu0
        %v1473 = vpop.f32.mrb[0].mxu0
        %v1474 = vpop.f32.mrb[0].mxu0
        %1475 = vdwg.mxu0
        %1477 = vrot.lane.b32.xlu0 %v1011, 96
        %v1478 = vpop.permute.xlu0 %1477
        %v1480 = vsel %vm1037, %v1011, 0
        %v1483 = vsel %vm1037, %v1478, 0
        %1485 = vmatprep.subr.bf16.mxu0 0
        %1486 = vmatpush1.bf16.xpose.msra.mxu0 %v1483
        %1487 = vmatprep.subr.bf16.mxu0 0
        %1488 = vmatpush1.bf16.xpose.msra.mxu0 0
        %1489 = vmatprep.subr.bf16.mxu0 0
        %1490 = vmatpush1.bf16.xpose.msra.mxu0 0
        %1491 = vmatprep.subr.bf16.mxu0 0
        %1492 = vmatpush1.bf16.xpose.msra.mxu0 0
        %1493 = vmatprep.subr.bf16.mxu0 0
        %1494 = vmatpush1.bf16.xpose.msra.mxu0 0
        %1495 = vmatprep.subr.bf16.mxu0 0
        %1496 = vmatpush1.bf16.xpose.msra.mxu0 0
        %1497 = vmatprep.subr.bf16.mxu0 0
        %1498 = vmatpush1.bf16.xpose.msra.mxu0 0
        %1499 = vmatprep.subr.bf16.mxu0 0
        %1500 = vmatpush1.bf16.xpose.msra.mxu0 0
        %1501 = vmatprep.subr.bf16.mxu0 0
        %1502 = vmatpush1.bf16.xpose.msra.mxu0 0
        %1503 = vmatprep.subr.bf16.mxu0 0
        %1504 = vmatpush1.bf16.xpose.msra.mxu0 0
        %1505 = vmatprep.subr.bf16.mxu0 0
        %1506 = vmatpush1.bf16.xpose.msra.mxu0 0
        %1507 = vmatprep.subr.bf16.mxu0 0
        %1508 = vmatpush1.bf16.xpose.msra.mxu0 0
        %1509 = vmatprep.subr.bf16.mxu0 0
        %1510 = vmatpush1.bf16.xpose.msra.mxu0 0
        %1511 = vmatprep.subr.bf16.mxu0 0
        %1512 = vmatpush1.bf16.xpose.msra.mxu0 0
        %1513 = vmatprep.subr.bf16.mxu0 0
        %1514 = vmatpush1.bf16.xpose.msra.mxu0 0
        %1515 = vmatprep.subr.bf16.mxu0 0
        %1516 = vmatpush1.bf16.xpose.msra.mxu0 0
        %1517 = vmatprep.mubr.bf16.mxu0 0
        %1518 = vmatmul.mubr.bf16.gmra.mrb[0].mxu0 %v1480
        %v1519 = vpop.f32.mrb[0].mxu0
        %v1520 = vadd.f32 0.0, %v1519
        %v1521 = vpop.f32.mrb[0].mxu0
        %v1522 = vpop.f32.mrb[0].mxu0
        %v1523 = vpop.f32.mrb[0].mxu0
        %1524 = vdwg.mxu0
        %1526 = vrot.lane.b32.xlu0 %v1012, 96
        %v1527 = vpop.permute.xlu0 %1526
        %v1529 = vsel %vm1037, %v1012, 0
        %v1532 = vsel %vm1037, %v1527, 0
        %1534 = vmatprep.subr.bf16.mxu0 0
        %1535 = vmatpush1.bf16.xpose.msra.mxu0 %v1532
        %1536 = vmatprep.subr.bf16.mxu0 0
        %1537 = vmatpush1.bf16.xpose.msra.mxu0 0
        %1538 = vmatprep.subr.bf16.mxu0 0
        %1539 = vmatpush1.bf16.xpose.msra.mxu0 0
        %1540 = vmatprep.subr.bf16.mxu0 0
        %1541 = vmatpush1.bf16.xpose.msra.mxu0 0
        %1542 = vmatprep.subr.bf16.mxu0 0
        %1543 = vmatpush1.bf16.xpose.msra.mxu0 0
        %1544 = vmatprep.subr.bf16.mxu0 0
        %1545 = vmatpush1.bf16.xpose.msra.mxu0 0
        %1546 = vmatprep.subr.bf16.mxu0 0
        %1547 = vmatpush1.bf16.xpose.msra.mxu0 0
        %1548 = vmatprep.subr.bf16.mxu0 0
        %1549 = vmatpush1.bf16.xpose.msra.mxu0 0
        %1550 = vmatprep.subr.bf16.mxu0 0
        %1551 = vmatpush1.bf16.xpose.msra.mxu0 0
        %1552 = vmatprep.subr.bf16.mxu0 0
        %1553 = vmatpush1.bf16.xpose.msra.mxu0 0
        %1554 = vmatprep.subr.bf16.mxu0 0
        %1555 = vmatpush1.bf16.xpose.msra.mxu0 0
        %1556 = vmatprep.subr.bf16.mxu0 0
        %1557 = vmatpush1.bf16.xpose.msra.mxu0 0
        %1558 = vmatprep.subr.bf16.mxu0 0
        %1559 = vmatpush1.bf16.xpose.msra.mxu0 0
        %1560 = vmatprep.subr.bf16.mxu0 0
        %1561 = vmatpush1.bf16.xpose.msra.mxu0 0
        %1562 = vmatprep.subr.bf16.mxu0 0
        %1563 = vmatpush1.bf16.xpose.msra.mxu0 0
        %1564 = vmatprep.subr.bf16.mxu0 0
        %1565 = vmatpush1.bf16.xpose.msra.mxu0 0
        %1566 = vmatprep.mubr.bf16.mxu0 0
        %1567 = vmatmul.mubr.bf16.gmra.mrb[0].mxu0 %v1529
        %v1568 = vpop.f32.mrb[0].mxu0
        %v1569 = vadd.f32 0.0, %v1568
        %v1570 = vpop.f32.mrb[0].mxu0
        %v1571 = vpop.f32.mrb[0].mxu0
        %v1572 = vpop.f32.mrb[0].mxu0
        %1573 = vdwg.mxu0
        %1575 = vrot.lane.b32.xlu0 %v1013, 96
        %v1576 = vpop.permute.xlu0 %1575
        %v1578 = vsel %vm1037, %v1013, 0
        %v1581 = vsel %vm1037, %v1576, 0
        %1583 = vmatprep.subr.bf16.mxu0 0
        %1584 = vmatpush1.bf16.xpose.msra.mxu0 %v1581
        %1585 = vmatprep.subr.bf16.mxu0 0
        %1586 = vmatpush1.bf16.xpose.msra.mxu0 0
        %1587 = vmatprep.subr.bf16.mxu0 0
        %1588 = vmatpush1.bf16.xpose.msra.mxu0 0
        %1589 = vmatprep.subr.bf16.mxu0 0
        %1590 = vmatpush1.bf16.xpose.msra.mxu0 0
        %1591 = vmatprep.subr.bf16.mxu0 0
        %1592 = vmatpush1.bf16.xpose.msra.mxu0 0
        %1593 = vmatprep.subr.bf16.mxu0 0
        %1594 = vmatpush1.bf16.xpose.msra.mxu0 0
        %1595 = vmatprep.subr.bf16.mxu0 0
        %1596 = vmatpush1.bf16.xpose.msra.mxu0 0
        %1597 = vmatprep.subr.bf16.mxu0 0
        %1598 = vmatpush1.bf16.xpose.msra.mxu0 0
        %1599 = vmatprep.subr.bf16.mxu0 0
        %1600 = vmatpush1.bf16.xpose.msra.mxu0 0
        %1601 = vmatprep.subr.bf16.mxu0 0
        %1602 = vmatpush1.bf16.xpose.msra.mxu0 0
        %1603 = vmatprep.subr.bf16.mxu0 0
        %1604 = vmatpush1.bf16.xpose.msra.mxu0 0
        %1605 = vmatprep.subr.bf16.mxu0 0
        %1606 = vmatpush1.bf16.xpose.msra.mxu0 0
        %1607 = vmatprep.subr.bf16.mxu0 0
        %1608 = vmatpush1.bf16.xpose.msra.mxu0 0
        %1609 = vmatprep.subr.bf16.mxu0 0
        %1610 = vmatpush1.bf16.xpose.msra.mxu0 0
        %1611 = vmatprep.subr.bf16.mxu0 0
        %1612 = vmatpush1.bf16.xpose.msra.mxu0 0
        %1613 = vmatprep.subr.bf16.mxu0 0
        %1614 = vmatpush1.bf16.xpose.msra.mxu0 0
        %1615 = vmatprep.mubr.bf16.mxu0 0
        %1616 = vmatmul.mubr.bf16.gmra.mrb[0].mxu0 %v1578
        %v1617 = vpop.f32.mrb[0].mxu0
        %v1618 = vadd.f32 0.0, %v1617
        %v1619 = vpop.f32.mrb[0].mxu0
        %v1620 = vpop.f32.mrb[0].mxu0
        %v1621 = vpop.f32.mrb[0].mxu0
        %1622 = vdwg.mxu0
        %1624 = vrot.lane.b32.xlu0 %v1014, 96
        %v1625 = vpop.permute.xlu0 %1624
        %v1627 = vsel %vm1037, %v1014, 0
        %v1630 = vsel %vm1037, %v1625, 0
        %1632 = vmatprep.subr.bf16.mxu0 0
        %1633 = vmatpush1.bf16.xpose.msra.mxu0 %v1630
        %1634 = vmatprep.subr.bf16.mxu0 0
        %1635 = vmatpush1.bf16.xpose.msra.mxu0 0
        %1636 = vmatprep.subr.bf16.mxu0 0
        %1637 = vmatpush1.bf16.xpose.msra.mxu0 0
        %1638 = vmatprep.subr.bf16.mxu0 0
        %1639 = vmatpush1.bf16.xpose.msra.mxu0 0
        %1640 = vmatprep.subr.bf16.mxu0 0
        %1641 = vmatpush1.bf16.xpose.msra.mxu0 0
        %1642 = vmatprep.subr.bf16.mxu0 0
        %1643 = vmatpush1.bf16.xpose.msra.mxu0 0
        %1644 = vmatprep.subr.bf16.mxu0 0
        %1645 = vmatpush1.bf16.xpose.msra.mxu0 0
        %1646 = vmatprep.subr.bf16.mxu0 0
        %1647 = vmatpush1.bf16.xpose.msra.mxu0 0
        %1648 = vmatprep.subr.bf16.mxu0 0
        %1649 = vmatpush1.bf16.xpose.msra.mxu0 0
        %1650 = vmatprep.subr.bf16.mxu0 0
        %1651 = vmatpush1.bf16.xpose.msra.mxu0 0
        %1652 = vmatprep.subr.bf16.mxu0 0
        %1653 = vmatpush1.bf16.xpose.msra.mxu0 0
        %1654 = vmatprep.subr.bf16.mxu0 0
        %1655 = vmatpush1.bf16.xpose.msra.mxu0 0
        %1656 = vmatprep.subr.bf16.mxu0 0
        %1657 = vmatpush1.bf16.xpose.msra.mxu0 0
        %1658 = vmatprep.subr.bf16.mxu0 0
        %1659 = vmatpush1.bf16.xpose.msra.mxu0 0
        %1660 = vmatprep.subr.bf16.mxu0 0
        %1661 = vmatpush1.bf16.xpose.msra.mxu0 0
        %1662 = vmatprep.subr.bf16.mxu0 0
        %1663 = vmatpush1.bf16.xpose.msra.mxu0 0
        %1664 = vmatprep.mubr.bf16.mxu0 0
        %1665 = vmatmul.mubr.bf16.gmra.mrb[0].mxu0 %v1627
        %v1666 = vpop.f32.mrb[0].mxu0
        %v1667 = vadd.f32 0.0, %v1666
        %v1668 = vpop.f32.mrb[0].mxu0
        %v1669 = vpop.f32.mrb[0].mxu0
        %v1670 = vpop.f32.mrb[0].mxu0
        %1671 = vdwg.mxu0
        %1673 = vrot.lane.b32.xlu0 %v1015, 96
        %v1674 = vpop.permute.xlu0 %1673
        %v1676 = vsel %vm1037, %v1015, 0
        %v1679 = vsel %vm1037, %v1674, 0
        %1681 = vmatprep.subr.bf16.mxu0 0
        %1682 = vmatpush1.bf16.xpose.msra.mxu0 %v1679
        %1683 = vmatprep.subr.bf16.mxu0 0
        %1684 = vmatpush1.bf16.xpose.msra.mxu0 0
        %1685 = vmatprep.subr.bf16.mxu0 0
        %1686 = vmatpush1.bf16.xpose.msra.mxu0 0
        %1687 = vmatprep.subr.bf16.mxu0 0
        %1688 = vmatpush1.bf16.xpose.msra.mxu0 0
        %1689 = vmatprep.subr.bf16.mxu0 0
        %1690 = vmatpush1.bf16.xpose.msra.mxu0 0
        %1691 = vmatprep.subr.bf16.mxu0 0
        %1692 = vmatpush1.bf16.xpose.msra.mxu0 0
        %1693 = vmatprep.subr.bf16.mxu0 0
        %1694 = vmatpush1.bf16.xpose.msra.mxu0 0
        %1695 = vmatprep.subr.bf16.mxu0 0
        %1696 = vmatpush1.bf16.xpose.msra.mxu0 0
        %1697 = vmatprep.subr.bf16.mxu0 0
        %1698 = vmatpush1.bf16.xpose.msra.mxu0 0
        %1699 = vmatprep.subr.bf16.mxu0 0
        %1700 = vmatpush1.bf16.xpose.msra.mxu0 0
        %1701 = vmatprep.subr.bf16.mxu0 0
        %1702 = vmatpush1.bf16.xpose.msra.mxu0 0
        %1703 = vmatprep.subr.bf16.mxu0 0
        %1704 = vmatpush1.bf16.xpose.msra.mxu0 0
        %1705 = vmatprep.subr.bf16.mxu0 0
        %1706 = vmatpush1.bf16.xpose.msra.mxu0 0
        %1707 = vmatprep.subr.bf16.mxu0 0
        %1708 = vmatpush1.bf16.xpose.msra.mxu0 0
        %1709 = vmatprep.subr.bf16.mxu0 0
        %1710 = vmatpush1.bf16.xpose.msra.mxu0 0
        %1711 = vmatprep.subr.bf16.mxu0 0
        %1712 = vmatpush1.bf16.xpose.msra.mxu0 0
        %1713 = vmatprep.mubr.bf16.mxu0 0
        %1714 = vmatmul.mubr.bf16.gmra.mrb[0].mxu0 %v1676
        %v1715 = vpop.f32.mrb[0].mxu0
        %v1716 = vadd.f32 0.0, %v1715
        %v1717 = vpop.f32.mrb[0].mxu0
        %v1718 = vpop.f32.mrb[0].mxu0
        %v1719 = vpop.f32.mrb[0].mxu0
        %1720 = vdwg.mxu0
        %1722 = vrot.lane.b32.xlu0 %v1016, 96
        %v1723 = vpop.permute.xlu0 %1722
        %v1725 = vsel %vm1037, %v1016, 0
        %v1728 = vsel %vm1037, %v1723, 0
        %1730 = vmatprep.subr.bf16.mxu0 0
        %1731 = vmatpush1.bf16.xpose.msra.mxu0 %v1728
        %1732 = vmatprep.subr.bf16.mxu0 0
        %1733 = vmatpush1.bf16.xpose.msra.mxu0 0
        %1734 = vmatprep.subr.bf16.mxu0 0
        %1735 = vmatpush1.bf16.xpose.msra.mxu0 0
        %1736 = vmatprep.subr.bf16.mxu0 0
        %1737 = vmatpush1.bf16.xpose.msra.mxu0 0
        %1738 = vmatprep.subr.bf16.mxu0 0
        %1739 = vmatpush1.bf16.xpose.msra.mxu0 0
        %1740 = vmatprep.subr.bf16.mxu0 0
        %1741 = vmatpush1.bf16.xpose.msra.mxu0 0
        %1742 = vmatprep.subr.bf16.mxu0 0
        %1743 = vmatpush1.bf16.xpose.msra.mxu0 0
        %1744 = vmatprep.subr.bf16.mxu0 0
        %1745 = vmatpush1.bf16.xpose.msra.mxu0 0
        %1746 = vmatprep.subr.bf16.mxu0 0
        %1747 = vmatpush1.bf16.xpose.msra.mxu0 0
        %1748 = vmatprep.subr.bf16.mxu0 0
        %1749 = vmatpush1.bf16.xpose.msra.mxu0 0
        %1750 = vmatprep.subr.bf16.mxu0 0
        %1751 = vmatpush1.bf16.xpose.msra.mxu0 0
        %1752 = vmatprep.subr.bf16.mxu0 0
        %1753 = vmatpush1.bf16.xpose.msra.mxu0 0
        %1754 = vmatprep.subr.bf16.mxu0 0
        %1755 = vmatpush1.bf16.xpose.msra.mxu0 0
        %1756 = vmatprep.subr.bf16.mxu0 0
        %1757 = vmatpush1.bf16.xpose.msra.mxu0 0
        %1758 = vmatprep.subr.bf16.mxu0 0
        %1759 = vmatpush1.bf16.xpose.msra.mxu0 0
        %1760 = vmatprep.subr.bf16.mxu0 0
        %1761 = vmatpush1.bf16.xpose.msra.mxu0 0
        %1762 = vmatprep.mubr.bf16.mxu0 0
        %1763 = vmatmul.mubr.bf16.gmra.mrb[0].mxu0 %v1725
        %v1764 = vpop.f32.mrb[0].mxu0
        %v1765 = vadd.f32 0.0, %v1764
        %v1766 = vpop.f32.mrb[0].mxu0
        %v1767 = vpop.f32.mrb[0].mxu0
        %v1768 = vpop.f32.mrb[0].mxu0
        %1769 = vdwg.mxu0
        %1771 = vrot.lane.b32.xlu0 %v1017, 96
        %v1772 = vpop.permute.xlu0 %1771
        %v1774 = vsel %vm1037, %v1017, 0
        %v1777 = vsel %vm1037, %v1772, 0
        %1779 = vmatprep.subr.bf16.mxu0 0
        %1780 = vmatpush1.bf16.xpose.msra.mxu0 %v1777
        %1781 = vmatprep.subr.bf16.mxu0 0
        %1782 = vmatpush1.bf16.xpose.msra.mxu0 0
        %1783 = vmatprep.subr.bf16.mxu0 0
        %1784 = vmatpush1.bf16.xpose.msra.mxu0 0
        %1785 = vmatprep.subr.bf16.mxu0 0
        %1786 = vmatpush1.bf16.xpose.msra.mxu0 0
        %1787 = vmatprep.subr.bf16.mxu0 0
        %1788 = vmatpush1.bf16.xpose.msra.mxu0 0
        %1789 = vmatprep.subr.bf16.mxu0 0
        %1790 = vmatpush1.bf16.xpose.msra.mxu0 0
        %1791 = vmatprep.subr.bf16.mxu0 0
        %1792 = vmatpush1.bf16.xpose.msra.mxu0 0
        %1793 = vmatprep.subr.bf16.mxu0 0
        %1794 = vmatpush1.bf16.xpose.msra.mxu0 0
        %1795 = vmatprep.subr.bf16.mxu0 0
        %1796 = vmatpush1.bf16.xpose.msra.mxu0 0
        %1797 = vmatprep.subr.bf16.mxu0 0
        %1798 = vmatpush1.bf16.xpose.msra.mxu0 0
        %1799 = vmatprep.subr.bf16.mxu0 0
        %1800 = vmatpush1.bf16.xpose.msra.mxu0 0
        %1801 = vmatprep.subr.bf16.mxu0 0
        %1802 = vmatpush1.bf16.xpose.msra.mxu0 0
        %1803 = vmatprep.subr.bf16.mxu0 0
        %1804 = vmatpush1.bf16.xpose.msra.mxu0 0
        %1805 = vmatprep.subr.bf16.mxu0 0
        %1806 = vmatpush1.bf16.xpose.msra.mxu0 0
        %1807 = vmatprep.subr.bf16.mxu0 0
        %1808 = vmatpush1.bf16.xpose.msra.mxu0 0
        %1809 = vmatprep.subr.bf16.mxu0 0
        %1810 = vmatpush1.bf16.xpose.msra.mxu0 0
        %1811 = vmatprep.mubr.bf16.mxu0 0
        %1812 = vmatmul.mubr.bf16.gmra.mrb[0].mxu0 %v1774
        %v1813 = vpop.f32.mrb[0].mxu0
        %v1814 = vadd.f32 0.0, %v1813
        %v1815 = vpop.f32.mrb[0].mxu0
        %v1816 = vpop.f32.mrb[0].mxu0
        %v1817 = vpop.f32.mrb[0].mxu0
        %1818 = vdwg.mxu0
        %1820 = vrot.lane.b32.xlu0 %v1018, 96
        %v1821 = vpop.permute.xlu0 %1820
        %v1823 = vsel %vm1037, %v1018, 0
        %v1826 = vsel %vm1037, %v1821, 0
        %1828 = vmatprep.subr.bf16.mxu0 0
        %1829 = vmatpush1.bf16.xpose.msra.mxu0 %v1826
        %1830 = vmatprep.subr.bf16.mxu0 0
        %1831 = vmatpush1.bf16.xpose.msra.mxu0 0
        %1832 = vmatprep.subr.bf16.mxu0 0
        %1833 = vmatpush1.bf16.xpose.msra.mxu0 0
        %1834 = vmatprep.subr.bf16.mxu0 0
        %1835 = vmatpush1.bf16.xpose.msra.mxu0 0
        %1836 = vmatprep.subr.bf16.mxu0 0
        %1837 = vmatpush1.bf16.xpose.msra.mxu0 0
        %1838 = vmatprep.subr.bf16.mxu0 0
        %1839 = vmatpush1.bf16.xpose.msra.mxu0 0
        %1840 = vmatprep.subr.bf16.mxu0 0
        %1841 = vmatpush1.bf16.xpose.msra.mxu0 0
        %1842 = vmatprep.subr.bf16.mxu0 0
        %1843 = vmatpush1.bf16.xpose.msra.mxu0 0
        %1844 = vmatprep.subr.bf16.mxu0 0
        %1845 = vmatpush1.bf16.xpose.msra.mxu0 0
        %1846 = vmatprep.subr.bf16.mxu0 0
        %1847 = vmatpush1.bf16.xpose.msra.mxu0 0
        %1848 = vmatprep.subr.bf16.mxu0 0
        %1849 = vmatpush1.bf16.xpose.msra.mxu0 0
        %1850 = vmatprep.subr.bf16.mxu0 0
        %1851 = vmatpush1.bf16.xpose.msra.mxu0 0
        %1852 = vmatprep.subr.bf16.mxu0 0
        %1853 = vmatpush1.bf16.xpose.msra.mxu0 0
        %1854 = vmatprep.subr.bf16.mxu0 0
        %1855 = vmatpush1.bf16.xpose.msra.mxu0 0
        %1856 = vmatprep.subr.bf16.mxu0 0
        %1857 = vmatpush1.bf16.xpose.msra.mxu0 0
        %1858 = vmatprep.subr.bf16.mxu0 0
        %1859 = vmatpush1.bf16.xpose.msra.mxu0 0
        %1860 = vmatprep.mubr.bf16.mxu0 0
        %1861 = vmatmul.mubr.bf16.gmra.mrb[0].mxu0 %v1823
        %v1862 = vpop.f32.mrb[0].mxu0
        %v1863 = vadd.f32 0.0, %v1862
        %v1864 = vpop.f32.mrb[0].mxu0
        %v1865 = vpop.f32.mrb[0].mxu0
        %v1866 = vpop.f32.mrb[0].mxu0
        %1867 = vdwg.mxu0
        %1869 = vrot.lane.b32.xlu0 %v1019, 96
        %v1870 = vpop.permute.xlu0 %1869
        %v1872 = vsel %vm1037, %v1019, 0
        %v1875 = vsel %vm1037, %v1870, 0
        %1877 = vmatprep.subr.bf16.mxu0 0
        %1878 = vmatpush1.bf16.xpose.msra.mxu0 %v1875
        %1879 = vmatprep.subr.bf16.mxu0 0
        %1880 = vmatpush1.bf16.xpose.msra.mxu0 0
        %1881 = vmatprep.subr.bf16.mxu0 0
        %1882 = vmatpush1.bf16.xpose.msra.mxu0 0
        %1883 = vmatprep.subr.bf16.mxu0 0
        %1884 = vmatpush1.bf16.xpose.msra.mxu0 0
        %1885 = vmatprep.subr.bf16.mxu0 0
        %1886 = vmatpush1.bf16.xpose.msra.mxu0 0
        %1887 = vmatprep.subr.bf16.mxu0 0
        %1888 = vmatpush1.bf16.xpose.msra.mxu0 0
        %1889 = vmatprep.subr.bf16.mxu0 0
        %1890 = vmatpush1.bf16.xpose.msra.mxu0 0
        %1891 = vmatprep.subr.bf16.mxu0 0
        %1892 = vmatpush1.bf16.xpose.msra.mxu0 0
        %1893 = vmatprep.subr.bf16.mxu0 0
        %1894 = vmatpush1.bf16.xpose.msra.mxu0 0
        %1895 = vmatprep.subr.bf16.mxu0 0
        %1896 = vmatpush1.bf16.xpose.msra.mxu0 0
        %1897 = vmatprep.subr.bf16.mxu0 0
        %1898 = vmatpush1.bf16.xpose.msra.mxu0 0
        %1899 = vmatprep.subr.bf16.mxu0 0
        %1900 = vmatpush1.bf16.xpose.msra.mxu0 0
        %1901 = vmatprep.subr.bf16.mxu0 0
        %1902 = vmatpush1.bf16.xpose.msra.mxu0 0
        %1903 = vmatprep.subr.bf16.mxu0 0
        %1904 = vmatpush1.bf16.xpose.msra.mxu0 0
        %1905 = vmatprep.subr.bf16.mxu0 0
        %1906 = vmatpush1.bf16.xpose.msra.mxu0 0
        %1907 = vmatprep.subr.bf16.mxu0 0
        %1908 = vmatpush1.bf16.xpose.msra.mxu0 0
        %1909 = vmatprep.mubr.bf16.mxu0 0
        %1910 = vmatmul.mubr.bf16.gmra.mrb[0].mxu0 %v1872
        %v1911 = vpop.f32.mrb[0].mxu0
        %v1912 = vadd.f32 0.0, %v1911
        %v1913 = vpop.f32.mrb[0].mxu0
        %v1914 = vpop.f32.mrb[0].mxu0
        %v1915 = vpop.f32.mrb[0].mxu0
        %1916 = vdwg.mxu0
        %1918 = vrot.lane.b32.xlu0 %v1020, 96
        %v1919 = vpop.permute.xlu0 %1918
        %v1921 = vsel %vm1037, %v1020, 0
        %v1924 = vsel %vm1037, %v1919, 0
        %1926 = vmatprep.subr.bf16.mxu0 0
        %1927 = vmatpush1.bf16.xpose.msra.mxu0 %v1924
        %1928 = vmatprep.subr.bf16.mxu0 0
        %1929 = vmatpush1.bf16.xpose.msra.mxu0 0
        %1930 = vmatprep.subr.bf16.mxu0 0
        %1931 = vmatpush1.bf16.xpose.msra.mxu0 0
        %1932 = vmatprep.subr.bf16.mxu0 0
        %1933 = vmatpush1.bf16.xpose.msra.mxu0 0
        %1934 = vmatprep.subr.bf16.mxu0 0
        %1935 = vmatpush1.bf16.xpose.msra.mxu0 0
        %1936 = vmatprep.subr.bf16.mxu0 0
        %1937 = vmatpush1.bf16.xpose.msra.mxu0 0
        %1938 = vmatprep.subr.bf16.mxu0 0
        %1939 = vmatpush1.bf16.xpose.msra.mxu0 0
        %1940 = vmatprep.subr.bf16.mxu0 0
        %1941 = vmatpush1.bf16.xpose.msra.mxu0 0
        %1942 = vmatprep.subr.bf16.mxu0 0
        %1943 = vmatpush1.bf16.xpose.msra.mxu0 0
        %1944 = vmatprep.subr.bf16.mxu0 0
        %1945 = vmatpush1.bf16.xpose.msra.mxu0 0
        %1946 = vmatprep.subr.bf16.mxu0 0
        %1947 = vmatpush1.bf16.xpose.msra.mxu0 0
        %1948 = vmatprep.subr.bf16.mxu0 0
        %1949 = vmatpush1.bf16.xpose.msra.mxu0 0
        %1950 = vmatprep.subr.bf16.mxu0 0
        %1951 = vmatpush1.bf16.xpose.msra.mxu0 0
        %1952 = vmatprep.subr.bf16.mxu0 0
        %1953 = vmatpush1.bf16.xpose.msra.mxu0 0
        %1954 = vmatprep.subr.bf16.mxu0 0
        %1955 = vmatpush1.bf16.xpose.msra.mxu0 0
        %1956 = vmatprep.subr.bf16.mxu0 0
        %1957 = vmatpush1.bf16.xpose.msra.mxu0 0
        %1958 = vmatprep.mubr.bf16.mxu0 0
        %1959 = vmatmul.mubr.bf16.gmra.mrb[0].mxu0 %v1921
        %v1960 = vpop.f32.mrb[0].mxu0
        %v1961 = vadd.f32 0.0, %v1960
        %v1962 = vpop.f32.mrb[0].mxu0
        %v1963 = vpop.f32.mrb[0].mxu0
        %v1964 = vpop.f32.mrb[0].mxu0
        %1965 = vdwg.mxu0
        %1967 = vrot.lane.b32.xlu0 %v1021, 96
        %v1968 = vpop.permute.xlu0 %1967
        %v1970 = vsel %vm1037, %v1021, 0
        %v1973 = vsel %vm1037, %v1968, 0
        %1975 = vmatprep.subr.bf16.mxu0 0
        %1976 = vmatpush1.bf16.xpose.msra.mxu0 %v1973
        %1977 = vmatprep.subr.bf16.mxu0 0
        %1978 = vmatpush1.bf16.xpose.msra.mxu0 0
        %1979 = vmatprep.subr.bf16.mxu0 0
        %1980 = vmatpush1.bf16.xpose.msra.mxu0 0
        %1981 = vmatprep.subr.bf16.mxu0 0
        %1982 = vmatpush1.bf16.xpose.msra.mxu0 0
        %1983 = vmatprep.subr.bf16.mxu0 0
        %1984 = vmatpush1.bf16.xpose.msra.mxu0 0
        %1985 = vmatprep.subr.bf16.mxu0 0
        %1986 = vmatpush1.bf16.xpose.msra.mxu0 0
        %1987 = vmatprep.subr.bf16.mxu0 0
        %1988 = vmatpush1.bf16.xpose.msra.mxu0 0
        %1989 = vmatprep.subr.bf16.mxu0 0
        %1990 = vmatpush1.bf16.xpose.msra.mxu0 0
        %1991 = vmatprep.subr.bf16.mxu0 0
        %1992 = vmatpush1.bf16.xpose.msra.mxu0 0
        %1993 = vmatprep.subr.bf16.mxu0 0
        %1994 = vmatpush1.bf16.xpose.msra.mxu0 0
        %1995 = vmatprep.subr.bf16.mxu0 0
        %1996 = vmatpush1.bf16.xpose.msra.mxu0 0
        %1997 = vmatprep.subr.bf16.mxu0 0
        %1998 = vmatpush1.bf16.xpose.msra.mxu0 0
        %1999 = vmatprep.subr.bf16.mxu0 0
        %2000 = vmatpush1.bf16.xpose.msra.mxu0 0
        %2001 = vmatprep.subr.bf16.mxu0 0
        %2002 = vmatpush1.bf16.xpose.msra.mxu0 0
        %2003 = vmatprep.subr.bf16.mxu0 0
        %2004 = vmatpush1.bf16.xpose.msra.mxu0 0
        %2005 = vmatprep.subr.bf16.mxu0 0
        %2006 = vmatpush1.bf16.xpose.msra.mxu0 0
        %2007 = vmatprep.mubr.bf16.mxu0 0
        %2008 = vmatmul.mubr.bf16.gmra.mrb[0].mxu0 %v1970
        %v2009 = vpop.f32.mrb[0].mxu0
        %v2010 = vadd.f32 0.0, %v2009
        %v2011 = vpop.f32.mrb[0].mxu0
        %v2012 = vpop.f32.mrb[0].mxu0
        %v2013 = vpop.f32.mrb[0].mxu0
        %2014 = vdwg.mxu0
        %2016 = vrot.lane.b32.xlu0 %v1022, 96
        %v2017 = vpop.permute.xlu0 %2016
        %v2019 = vsel %vm1037, %v1022, 0
        %v2022 = vsel %vm1037, %v2017, 0
        %2024 = vmatprep.subr.bf16.mxu0 0
        %2025 = vmatpush1.bf16.xpose.msra.mxu0 %v2022
        %2026 = vmatprep.subr.bf16.mxu0 0
        %2027 = vmatpush1.bf16.xpose.msra.mxu0 0
        %2028 = vmatprep.subr.bf16.mxu0 0
        %2029 = vmatpush1.bf16.xpose.msra.mxu0 0
        %2030 = vmatprep.subr.bf16.mxu0 0
        %2031 = vmatpush1.bf16.xpose.msra.mxu0 0
        %2032 = vmatprep.subr.bf16.mxu0 0
        %2033 = vmatpush1.bf16.xpose.msra.mxu0 0
        %2034 = vmatprep.subr.bf16.mxu0 0
        %2035 = vmatpush1.bf16.xpose.msra.mxu0 0
        %2036 = vmatprep.subr.bf16.mxu0 0
        %2037 = vmatpush1.bf16.xpose.msra.mxu0 0
        %2038 = vmatprep.subr.bf16.mxu0 0
        %2039 = vmatpush1.bf16.xpose.msra.mxu0 0
        %2040 = vmatprep.subr.bf16.mxu0 0
        %2041 = vmatpush1.bf16.xpose.msra.mxu0 0
        %2042 = vmatprep.subr.bf16.mxu0 0
        %2043 = vmatpush1.bf16.xpose.msra.mxu0 0
        %2044 = vmatprep.subr.bf16.mxu0 0
        %2045 = vmatpush1.bf16.xpose.msra.mxu0 0
        %2046 = vmatprep.subr.bf16.mxu0 0
        %2047 = vmatpush1.bf16.xpose.msra.mxu0 0
        %2048 = vmatprep.subr.bf16.mxu0 0
        %2049 = vmatpush1.bf16.xpose.msra.mxu0 0
        %2050 = vmatprep.subr.bf16.mxu0 0
        %2051 = vmatpush1.bf16.xpose.msra.mxu0 0
        %2052 = vmatprep.subr.bf16.mxu0 0
        %2053 = vmatpush1.bf16.xpose.msra.mxu0 0
        %2054 = vmatprep.subr.bf16.mxu0 0
        %2055 = vmatpush1.bf16.xpose.msra.mxu0 0
        %2056 = vmatprep.mubr.bf16.mxu0 0
        %2057 = vmatmul.mubr.bf16.gmra.mrb[0].mxu0 %v2019
        %v2058 = vpop.f32.mrb[0].mxu0
        %v2059 = vadd.f32 0.0, %v2058
        %v2060 = vpop.f32.mrb[0].mxu0
        %v2061 = vpop.f32.mrb[0].mxu0
        %v2062 = vpop.f32.mrb[0].mxu0
        %2063 = vdwg.mxu0
        %2065 = vrot.lane.b32.xlu0 %v1023, 96
        %v2066 = vpop.permute.xlu0 %2065
        %v2068 = vsel %vm1037, %v1023, 0
        %v2071 = vsel %vm1037, %v2066, 0
        %2073 = vmatprep.subr.bf16.mxu0 0
        %2074 = vmatpush1.bf16.xpose.msra.mxu0 %v2071
        %2075 = vmatprep.subr.bf16.mxu0 0
        %2076 = vmatpush1.bf16.xpose.msra.mxu0 0
        %2077 = vmatprep.subr.bf16.mxu0 0
        %2078 = vmatpush1.bf16.xpose.msra.mxu0 0
        %2079 = vmatprep.subr.bf16.mxu0 0
        %2080 = vmatpush1.bf16.xpose.msra.mxu0 0
        %2081 = vmatprep.subr.bf16.mxu0 0
        %2082 = vmatpush1.bf16.xpose.msra.mxu0 0
        %2083 = vmatprep.subr.bf16.mxu0 0
        %2084 = vmatpush1.bf16.xpose.msra.mxu0 0
        %2085 = vmatprep.subr.bf16.mxu0 0
        %2086 = vmatpush1.bf16.xpose.msra.mxu0 0
        %2087 = vmatprep.subr.bf16.mxu0 0
        %2088 = vmatpush1.bf16.xpose.msra.mxu0 0
        %2089 = vmatprep.subr.bf16.mxu0 0
        %2090 = vmatpush1.bf16.xpose.msra.mxu0 0
        %2091 = vmatprep.subr.bf16.mxu0 0
        %2092 = vmatpush1.bf16.xpose.msra.mxu0 0
        %2093 = vmatprep.subr.bf16.mxu0 0
        %2094 = vmatpush1.bf16.xpose.msra.mxu0 0
        %2095 = vmatprep.subr.bf16.mxu0 0
        %2096 = vmatpush1.bf16.xpose.msra.mxu0 0
        %2097 = vmatprep.subr.bf16.mxu0 0
        %2098 = vmatpush1.bf16.xpose.msra.mxu0 0
        %2099 = vmatprep.subr.bf16.mxu0 0
        %2100 = vmatpush1.bf16.xpose.msra.mxu0 0
        %2101 = vmatprep.subr.bf16.mxu0 0
        %2102 = vmatpush1.bf16.xpose.msra.mxu0 0
        %2103 = vmatprep.subr.bf16.mxu0 0
        %2104 = vmatpush1.bf16.xpose.msra.mxu0 0
        %2105 = vmatprep.mubr.bf16.mxu0 0
        %2106 = vmatmul.mubr.bf16.gmra.mrb[0].mxu0 %v2068
        %v2107 = vpop.f32.mrb[0].mxu0
        %v2108 = vadd.f32 0.0, %v2107
        %v2109 = vpop.f32.mrb[0].mxu0
        %v2110 = vpop.f32.mrb[0].mxu0
        %v2111 = vpop.f32.mrb[0].mxu0
        %2112 = vdwg.mxu0
        %2114 = vrot.lane.b32.xlu0 %v1024, 96
        %v2115 = vpop.permute.xlu0 %2114
        %v2117 = vsel %vm1037, %v1024, 0
        %v2120 = vsel %vm1037, %v2115, 0
        %2122 = vmatprep.subr.bf16.mxu0 0
        %2123 = vmatpush1.bf16.xpose.msra.mxu0 %v2120
        %2124 = vmatprep.subr.bf16.mxu0 0
        %2125 = vmatpush1.bf16.xpose.msra.mxu0 0
        %2126 = vmatprep.subr.bf16.mxu0 0
        %2127 = vmatpush1.bf16.xpose.msra.mxu0 0
        %2128 = vmatprep.subr.bf16.mxu0 0
        %2129 = vmatpush1.bf16.xpose.msra.mxu0 0
        %2130 = vmatprep.subr.bf16.mxu0 0
        %2131 = vmatpush1.bf16.xpose.msra.mxu0 0
        %2132 = vmatprep.subr.bf16.mxu0 0
        %2133 = vmatpush1.bf16.xpose.msra.mxu0 0
        %2134 = vmatprep.subr.bf16.mxu0 0
        %2135 = vmatpush1.bf16.xpose.msra.mxu0 0
        %2136 = vmatprep.subr.bf16.mxu0 0
        %2137 = vmatpush1.bf16.xpose.msra.mxu0 0
        %2138 = vmatprep.subr.bf16.mxu0 0
        %2139 = vmatpush1.bf16.xpose.msra.mxu0 0
        %2140 = vmatprep.subr.bf16.mxu0 0
        %2141 = vmatpush1.bf16.xpose.msra.mxu0 0
        %2142 = vmatprep.subr.bf16.mxu0 0
        %2143 = vmatpush1.bf16.xpose.msra.mxu0 0
        %2144 = vmatprep.subr.bf16.mxu0 0
        %2145 = vmatpush1.bf16.xpose.msra.mxu0 0
        %2146 = vmatprep.subr.bf16.mxu0 0
        %2147 = vmatpush1.bf16.xpose.msra.mxu0 0
        %2148 = vmatprep.subr.bf16.mxu0 0
        %2149 = vmatpush1.bf16.xpose.msra.mxu0 0
        %2150 = vmatprep.subr.bf16.mxu0 0
        %2151 = vmatpush1.bf16.xpose.msra.mxu0 0
        %2152 = vmatprep.subr.bf16.mxu0 0
        %2153 = vmatpush1.bf16.xpose.msra.mxu0 0
        %2154 = vmatprep.mubr.bf16.mxu0 0
        %2155 = vmatmul.mubr.bf16.gmra.mrb[0].mxu0 %v2117
        %v2156 = vpop.f32.mrb[0].mxu0
        %v2157 = vadd.f32 0.0, %v2156
        %v2158 = vpop.f32.mrb[0].mxu0
        %v2159 = vpop.f32.mrb[0].mxu0
        %v2160 = vpop.f32.mrb[0].mxu0
        %2161 = vdwg.mxu0
        %2163 = vrot.lane.b32.xlu0 %v1025, 96
        %v2164 = vpop.permute.xlu0 %2163
        %v2166 = vsel %vm1037, %v1025, 0
        %v2169 = vsel %vm1037, %v2164, 0
        %2171 = vmatprep.subr.bf16.mxu0 0
        %2172 = vmatpush1.bf16.xpose.msra.mxu0 %v2169
        %2173 = vmatprep.subr.bf16.mxu0 0
        %2174 = vmatpush1.bf16.xpose.msra.mxu0 0
        %2175 = vmatprep.subr.bf16.mxu0 0
        %2176 = vmatpush1.bf16.xpose.msra.mxu0 0
        %2177 = vmatprep.subr.bf16.mxu0 0
        %2178 = vmatpush1.bf16.xpose.msra.mxu0 0
        %2179 = vmatprep.subr.bf16.mxu0 0
        %2180 = vmatpush1.bf16.xpose.msra.mxu0 0
        %2181 = vmatprep.subr.bf16.mxu0 0
        %2182 = vmatpush1.bf16.xpose.msra.mxu0 0
        %2183 = vmatprep.subr.bf16.mxu0 0
        %2184 = vmatpush1.bf16.xpose.msra.mxu0 0
        %2185 = vmatprep.subr.bf16.mxu0 0
        %2186 = vmatpush1.bf16.xpose.msra.mxu0 0
        %2187 = vmatprep.subr.bf16.mxu0 0
        %2188 = vmatpush1.bf16.xpose.msra.mxu0 0
        %2189 = vmatprep.subr.bf16.mxu0 0
        %2190 = vmatpush1.bf16.xpose.msra.mxu0 0
        %2191 = vmatprep.subr.bf16.mxu0 0
        %2192 = vmatpush1.bf16.xpose.msra.mxu0 0
        %2193 = vmatprep.subr.bf16.mxu0 0
        %2194 = vmatpush1.bf16.xpose.msra.mxu0 0
        %2195 = vmatprep.subr.bf16.mxu0 0
        %2196 = vmatpush1.bf16.xpose.msra.mxu0 0
        %2197 = vmatprep.subr.bf16.mxu0 0
        %2198 = vmatpush1.bf16.xpose.msra.mxu0 0
        %2199 = vmatprep.subr.bf16.mxu0 0
        %2200 = vmatpush1.bf16.xpose.msra.mxu0 0
        %2201 = vmatprep.subr.bf16.mxu0 0
        %2202 = vmatpush1.bf16.xpose.msra.mxu0 0
        %2203 = vmatprep.mubr.bf16.mxu0 0
        %2204 = vmatmul.mubr.bf16.gmra.mrb[0].mxu0 %v2166
        %v2205 = vpop.f32.mrb[0].mxu0
        %v2206 = vadd.f32 0.0, %v2205
        %v2207 = vpop.f32.mrb[0].mxu0
        %v2208 = vpop.f32.mrb[0].mxu0
        %v2209 = vpop.f32.mrb[0].mxu0
        %2210 = vdwg.mxu0
        %2212 = vrot.lane.b32.xlu0 %v1026, 96
        %v2213 = vpop.permute.xlu0 %2212
        %v2215 = vsel %vm1037, %v1026, 0
        %v2218 = vsel %vm1037, %v2213, 0
        %2220 = vmatprep.subr.bf16.mxu0 0
        %2221 = vmatpush1.bf16.xpose.msra.mxu0 %v2218
        %2222 = vmatprep.subr.bf16.mxu0 0
        %2223 = vmatpush1.bf16.xpose.msra.mxu0 0
        %2224 = vmatprep.subr.bf16.mxu0 0
        %2225 = vmatpush1.bf16.xpose.msra.mxu0 0
        %2226 = vmatprep.subr.bf16.mxu0 0
        %2227 = vmatpush1.bf16.xpose.msra.mxu0 0
        %2228 = vmatprep.subr.bf16.mxu0 0
        %2229 = vmatpush1.bf16.xpose.msra.mxu0 0
        %2230 = vmatprep.subr.bf16.mxu0 0
        %2231 = vmatpush1.bf16.xpose.msra.mxu0 0
        %2232 = vmatprep.subr.bf16.mxu0 0
        %2233 = vmatpush1.bf16.xpose.msra.mxu0 0
        %2234 = vmatprep.subr.bf16.mxu0 0
        %2235 = vmatpush1.bf16.xpose.msra.mxu0 0
        %2236 = vmatprep.subr.bf16.mxu0 0
        %2237 = vmatpush1.bf16.xpose.msra.mxu0 0
        %2238 = vmatprep.subr.bf16.mxu0 0
        %2239 = vmatpush1.bf16.xpose.msra.mxu0 0
        %2240 = vmatprep.subr.bf16.mxu0 0
        %2241 = vmatpush1.bf16.xpose.msra.mxu0 0
        %2242 = vmatprep.subr.bf16.mxu0 0
        %2243 = vmatpush1.bf16.xpose.msra.mxu0 0
        %2244 = vmatprep.subr.bf16.mxu0 0
        %2245 = vmatpush1.bf16.xpose.msra.mxu0 0
        %2246 = vmatprep.subr.bf16.mxu0 0
        %2247 = vmatpush1.bf16.xpose.msra.mxu0 0
        %2248 = vmatprep.subr.bf16.mxu0 0
        %2249 = vmatpush1.bf16.xpose.msra.mxu0 0
        %2250 = vmatprep.subr.bf16.mxu0 0
        %2251 = vmatpush1.bf16.xpose.msra.mxu0 0
        %2252 = vmatprep.mubr.bf16.mxu0 0
        %2253 = vmatmul.mubr.bf16.gmra.mrb[0].mxu0 %v2215
        %v2254 = vpop.f32.mrb[0].mxu0
        %v2255 = vadd.f32 0.0, %v2254
        %v2256 = vpop.f32.mrb[0].mxu0
        %v2257 = vpop.f32.mrb[0].mxu0
        %v2258 = vpop.f32.mrb[0].mxu0
        %2259 = vdwg.mxu0
        %2261 = vrot.lane.b32.xlu0 %v1027, 96
        %v2262 = vpop.permute.xlu0 %2261
        %v2264 = vsel %vm1037, %v1027, 0
        %v2267 = vsel %vm1037, %v2262, 0
        %2269 = vmatprep.subr.bf16.mxu0 0
        %2270 = vmatpush1.bf16.xpose.msra.mxu0 %v2267
        %2271 = vmatprep.subr.bf16.mxu0 0
        %2272 = vmatpush1.bf16.xpose.msra.mxu0 0
        %2273 = vmatprep.subr.bf16.mxu0 0
        %2274 = vmatpush1.bf16.xpose.msra.mxu0 0
        %2275 = vmatprep.subr.bf16.mxu0 0
        %2276 = vmatpush1.bf16.xpose.msra.mxu0 0
        %2277 = vmatprep.subr.bf16.mxu0 0
        %2278 = vmatpush1.bf16.xpose.msra.mxu0 0
        %2279 = vmatprep.subr.bf16.mxu0 0
        %2280 = vmatpush1.bf16.xpose.msra.mxu0 0
        %2281 = vmatprep.subr.bf16.mxu0 0
        %2282 = vmatpush1.bf16.xpose.msra.mxu0 0
        %2283 = vmatprep.subr.bf16.mxu0 0
        %2284 = vmatpush1.bf16.xpose.msra.mxu0 0
        %2285 = vmatprep.subr.bf16.mxu0 0
        %2286 = vmatpush1.bf16.xpose.msra.mxu0 0
        %2287 = vmatprep.subr.bf16.mxu0 0
        %2288 = vmatpush1.bf16.xpose.msra.mxu0 0
        %2289 = vmatprep.subr.bf16.mxu0 0
        %2290 = vmatpush1.bf16.xpose.msra.mxu0 0
        %2291 = vmatprep.subr.bf16.mxu0 0
        %2292 = vmatpush1.bf16.xpose.msra.mxu0 0
        %2293 = vmatprep.subr.bf16.mxu0 0
        %2294 = vmatpush1.bf16.xpose.msra.mxu0 0
        %2295 = vmatprep.subr.bf16.mxu0 0
        %2296 = vmatpush1.bf16.xpose.msra.mxu0 0
        %2297 = vmatprep.subr.bf16.mxu0 0
        %2298 = vmatpush1.bf16.xpose.msra.mxu0 0
        %2299 = vmatprep.subr.bf16.mxu0 0
        %2300 = vmatpush1.bf16.xpose.msra.mxu0 0
        %2301 = vmatprep.mubr.bf16.mxu0 0
        %2302 = vmatmul.mubr.bf16.gmra.mrb[0].mxu0 %v2264
        %v2303 = vpop.f32.mrb[0].mxu0
        %v2304 = vadd.f32 0.0, %v2303
        %v2305 = vpop.f32.mrb[0].mxu0
        %v2306 = vpop.f32.mrb[0].mxu0
        %v2307 = vpop.f32.mrb[0].mxu0
        %2308 = vdwg.mxu0
        %2310 = vrot.lane.b32.xlu0 %v1028, 96
        %v2311 = vpop.permute.xlu0 %2310
        %v2313 = vsel %vm1037, %v1028, 0
        %v2316 = vsel %vm1037, %v2311, 0
        %2318 = vmatprep.subr.bf16.mxu0 0
        %2319 = vmatpush1.bf16.xpose.msra.mxu0 %v2316
        %2320 = vmatprep.subr.bf16.mxu0 0
        %2321 = vmatpush1.bf16.xpose.msra.mxu0 0
        %2322 = vmatprep.subr.bf16.mxu0 0
        %2323 = vmatpush1.bf16.xpose.msra.mxu0 0
        %2324 = vmatprep.subr.bf16.mxu0 0
        %2325 = vmatpush1.bf16.xpose.msra.mxu0 0
        %2326 = vmatprep.subr.bf16.mxu0 0
        %2327 = vmatpush1.bf16.xpose.msra.mxu0 0
        %2328 = vmatprep.subr.bf16.mxu0 0
        %2329 = vmatpush1.bf16.xpose.msra.mxu0 0
        %2330 = vmatprep.subr.bf16.mxu0 0
        %2331 = vmatpush1.bf16.xpose.msra.mxu0 0
        %2332 = vmatprep.subr.bf16.mxu0 0
        %2333 = vmatpush1.bf16.xpose.msra.mxu0 0
        %2334 = vmatprep.subr.bf16.mxu0 0
        %2335 = vmatpush1.bf16.xpose.msra.mxu0 0
        %2336 = vmatprep.subr.bf16.mxu0 0
        %2337 = vmatpush1.bf16.xpose.msra.mxu0 0
        %2338 = vmatprep.subr.bf16.mxu0 0
        %2339 = vmatpush1.bf16.xpose.msra.mxu0 0
        %2340 = vmatprep.subr.bf16.mxu0 0
        %2341 = vmatpush1.bf16.xpose.msra.mxu0 0
        %2342 = vmatprep.subr.bf16.mxu0 0
        %2343 = vmatpush1.bf16.xpose.msra.mxu0 0
        %2344 = vmatprep.subr.bf16.mxu0 0
        %2345 = vmatpush1.bf16.xpose.msra.mxu0 0
        %2346 = vmatprep.subr.bf16.mxu0 0
        %2347 = vmatpush1.bf16.xpose.msra.mxu0 0
        %2348 = vmatprep.subr.bf16.mxu0 0
        %2349 = vmatpush1.bf16.xpose.msra.mxu0 0
        %2350 = vmatprep.mubr.bf16.mxu0 0
        %2351 = vmatmul.mubr.bf16.gmra.mrb[0].mxu0 %v2313
        %v2352 = vpop.f32.mrb[0].mxu0
        %v2353 = vadd.f32 0.0, %v2352
        %v2354 = vpop.f32.mrb[0].mxu0
        %v2355 = vpop.f32.mrb[0].mxu0
        %v2356 = vpop.f32.mrb[0].mxu0
        %2357 = vdwg.mxu0
        %2359 = vrot.lane.b32.xlu0 %v1029, 96
        %v2360 = vpop.permute.xlu0 %2359
        %v2362 = vsel %vm1037, %v1029, 0
        %v2365 = vsel %vm1037, %v2360, 0
        %2367 = vmatprep.subr.bf16.mxu0 0
        %2368 = vmatpush1.bf16.xpose.msra.mxu0 %v2365
        %2369 = vmatprep.subr.bf16.mxu0 0
        %2370 = vmatpush1.bf16.xpose.msra.mxu0 0
        %2371 = vmatprep.subr.bf16.mxu0 0
        %2372 = vmatpush1.bf16.xpose.msra.mxu0 0
        %2373 = vmatprep.subr.bf16.mxu0 0
        %2374 = vmatpush1.bf16.xpose.msra.mxu0 0
        %2375 = vmatprep.subr.bf16.mxu0 0
        %2376 = vmatpush1.bf16.xpose.msra.mxu0 0
        %2377 = vmatprep.subr.bf16.mxu0 0
        %2378 = vmatpush1.bf16.xpose.msra.mxu0 0
        %2379 = vmatprep.subr.bf16.mxu0 0
        %2380 = vmatpush1.bf16.xpose.msra.mxu0 0
        %2381 = vmatprep.subr.bf16.mxu0 0
        %2382 = vmatpush1.bf16.xpose.msra.mxu0 0
        %2383 = vmatprep.subr.bf16.mxu0 0
        %2384 = vmatpush1.bf16.xpose.msra.mxu0 0
        %2385 = vmatprep.subr.bf16.mxu0 0
        %2386 = vmatpush1.bf16.xpose.msra.mxu0 0
        %2387 = vmatprep.subr.bf16.mxu0 0
        %2388 = vmatpush1.bf16.xpose.msra.mxu0 0
        %2389 = vmatprep.subr.bf16.mxu0 0
        %2390 = vmatpush1.bf16.xpose.msra.mxu0 0
        %2391 = vmatprep.subr.bf16.mxu0 0
        %2392 = vmatpush1.bf16.xpose.msra.mxu0 0
        %2393 = vmatprep.subr.bf16.mxu0 0
        %2394 = vmatpush1.bf16.xpose.msra.mxu0 0
        %2395 = vmatprep.subr.bf16.mxu0 0
        %2396 = vmatpush1.bf16.xpose.msra.mxu0 0
        %2397 = vmatprep.subr.bf16.mxu0 0
        %2398 = vmatpush1.bf16.xpose.msra.mxu0 0
        %2399 = vmatprep.mubr.bf16.mxu0 0
        %2400 = vmatmul.mubr.bf16.gmra.mrb[0].mxu0 %v2362
        %v2401 = vpop.f32.mrb[0].mxu0
        %v2402 = vadd.f32 0.0, %v2401
        %v2403 = vpop.f32.mrb[0].mxu0
        %v2404 = vpop.f32.mrb[0].mxu0
        %v2405 = vpop.f32.mrb[0].mxu0
        %2406 = vdwg.mxu0
        %2408 = vrot.lane.b32.xlu0 %v1030, 96
        %v2409 = vpop.permute.xlu0 %2408
        %v2411 = vsel %vm1037, %v1030, 0
        %v2414 = vsel %vm1037, %v2409, 0
        %2416 = vmatprep.subr.bf16.mxu0 0
        %2417 = vmatpush1.bf16.xpose.msra.mxu0 %v2414
        %2418 = vmatprep.subr.bf16.mxu0 0
        %2419 = vmatpush1.bf16.xpose.msra.mxu0 0
        %2420 = vmatprep.subr.bf16.mxu0 0
        %2421 = vmatpush1.bf16.xpose.msra.mxu0 0
        %2422 = vmatprep.subr.bf16.mxu0 0
        %2423 = vmatpush1.bf16.xpose.msra.mxu0 0
        %2424 = vmatprep.subr.bf16.mxu0 0
        %2425 = vmatpush1.bf16.xpose.msra.mxu0 0
        %2426 = vmatprep.subr.bf16.mxu0 0
        %2427 = vmatpush1.bf16.xpose.msra.mxu0 0
        %2428 = vmatprep.subr.bf16.mxu0 0
        %2429 = vmatpush1.bf16.xpose.msra.mxu0 0
        %2430 = vmatprep.subr.bf16.mxu0 0
        %2431 = vmatpush1.bf16.xpose.msra.mxu0 0
        %2432 = vmatprep.subr.bf16.mxu0 0
        %2433 = vmatpush1.bf16.xpose.msra.mxu0 0
        %2434 = vmatprep.subr.bf16.mxu0 0
        %2435 = vmatpush1.bf16.xpose.msra.mxu0 0
        %2436 = vmatprep.subr.bf16.mxu0 0
        %2437 = vmatpush1.bf16.xpose.msra.mxu0 0
        %2438 = vmatprep.subr.bf16.mxu0 0
        %2439 = vmatpush1.bf16.xpose.msra.mxu0 0
        %2440 = vmatprep.subr.bf16.mxu0 0
        %2441 = vmatpush1.bf16.xpose.msra.mxu0 0
        %2442 = vmatprep.subr.bf16.mxu0 0
        %2443 = vmatpush1.bf16.xpose.msra.mxu0 0
        %2444 = vmatprep.subr.bf16.mxu0 0
        %2445 = vmatpush1.bf16.xpose.msra.mxu0 0
        %2446 = vmatprep.subr.bf16.mxu0 0
        %2447 = vmatpush1.bf16.xpose.msra.mxu0 0
        %2448 = vmatprep.mubr.bf16.mxu0 0
        %2449 = vmatmul.mubr.bf16.gmra.mrb[0].mxu0 %v2411
        %v2450 = vpop.f32.mrb[0].mxu0
        %v2451 = vadd.f32 0.0, %v2450
        %v2452 = vpop.f32.mrb[0].mxu0
        %v2453 = vpop.f32.mrb[0].mxu0
        %v2454 = vpop.f32.mrb[0].mxu0
        %2455 = vdwg.mxu0
        %2457 = vrot.lane.b32.xlu0 %v1031, 96
        %v2458 = vpop.permute.xlu0 %2457
        %v2460 = vsel %vm1037, %v1031, 0
        %v2463 = vsel %vm1037, %v2458, 0
        %2465 = vmatprep.subr.bf16.mxu0 0
        %2466 = vmatpush1.bf16.xpose.msra.mxu0 %v2463
        %2467 = vmatprep.subr.bf16.mxu0 0
        %2468 = vmatpush1.bf16.xpose.msra.mxu0 0
        %2469 = vmatprep.subr.bf16.mxu0 0
        %2470 = vmatpush1.bf16.xpose.msra.mxu0 0
        %2471 = vmatprep.subr.bf16.mxu0 0
        %2472 = vmatpush1.bf16.xpose.msra.mxu0 0
        %2473 = vmatprep.subr.bf16.mxu0 0
        %2474 = vmatpush1.bf16.xpose.msra.mxu0 0
        %2475 = vmatprep.subr.bf16.mxu0 0
        %2476 = vmatpush1.bf16.xpose.msra.mxu0 0
        %2477 = vmatprep.subr.bf16.mxu0 0
        %2478 = vmatpush1.bf16.xpose.msra.mxu0 0
        %2479 = vmatprep.subr.bf16.mxu0 0
        %2480 = vmatpush1.bf16.xpose.msra.mxu0 0
        %2481 = vmatprep.subr.bf16.mxu0 0
        %2482 = vmatpush1.bf16.xpose.msra.mxu0 0
        %2483 = vmatprep.subr.bf16.mxu0 0
        %2484 = vmatpush1.bf16.xpose.msra.mxu0 0
        %2485 = vmatprep.subr.bf16.mxu0 0
        %2486 = vmatpush1.bf16.xpose.msra.mxu0 0
        %2487 = vmatprep.subr.bf16.mxu0 0
        %2488 = vmatpush1.bf16.xpose.msra.mxu0 0
        %2489 = vmatprep.subr.bf16.mxu0 0
        %2490 = vmatpush1.bf16.xpose.msra.mxu0 0
        %2491 = vmatprep.subr.bf16.mxu0 0
        %2492 = vmatpush1.bf16.xpose.msra.mxu0 0
        %2493 = vmatprep.subr.bf16.mxu0 0
        %2494 = vmatpush1.bf16.xpose.msra.mxu0 0
        %2495 = vmatprep.subr.bf16.mxu0 0
        %2496 = vmatpush1.bf16.xpose.msra.mxu0 0
        %2497 = vmatprep.mubr.bf16.mxu0 0
        %2498 = vmatmul.mubr.bf16.gmra.mrb[0].mxu0 %v2460
        %v2499 = vpop.f32.mrb[0].mxu0
        %v2500 = vadd.f32 0.0, %v2499
        %v2501 = vpop.f32.mrb[0].mxu0
        %v2502 = vpop.f32.mrb[0].mxu0
        %v2503 = vpop.f32.mrb[0].mxu0
        %2504 = vdwg.mxu0
        %2506 = vrot.lane.b32.xlu0 %v1032, 96
        %v2507 = vpop.permute.xlu0 %2506
        %v2509 = vsel %vm1037, %v1032, 0
        %v2512 = vsel %vm1037, %v2507, 0
        %2514 = vmatprep.subr.bf16.mxu0 0
        %2515 = vmatpush1.bf16.xpose.msra.mxu0 %v2512
        %2516 = vmatprep.subr.bf16.mxu0 0
        %2517 = vmatpush1.bf16.xpose.msra.mxu0 0
        %2518 = vmatprep.subr.bf16.mxu0 0
        %2519 = vmatpush1.bf16.xpose.msra.mxu0 0
        %2520 = vmatprep.subr.bf16.mxu0 0
        %2521 = vmatpush1.bf16.xpose.msra.mxu0 0
        %2522 = vmatprep.subr.bf16.mxu0 0
        %2523 = vmatpush1.bf16.xpose.msra.mxu0 0
        %2524 = vmatprep.subr.bf16.mxu0 0
        %2525 = vmatpush1.bf16.xpose.msra.mxu0 0
        %2526 = vmatprep.subr.bf16.mxu0 0
        %2527 = vmatpush1.bf16.xpose.msra.mxu0 0
        %2528 = vmatprep.subr.bf16.mxu0 0
        %2529 = vmatpush1.bf16.xpose.msra.mxu0 0
        %2530 = vmatprep.subr.bf16.mxu0 0
        %2531 = vmatpush1.bf16.xpose.msra.mxu0 0
        %2532 = vmatprep.subr.bf16.mxu0 0
        %2533 = vmatpush1.bf16.xpose.msra.mxu0 0
        %2534 = vmatprep.subr.bf16.mxu0 0
        %2535 = vmatpush1.bf16.xpose.msra.mxu0 0
        %2536 = vmatprep.subr.bf16.mxu0 0
        %2537 = vmatpush1.bf16.xpose.msra.mxu0 0
        %2538 = vmatprep.subr.bf16.mxu0 0
        %2539 = vmatpush1.bf16.xpose.msra.mxu0 0
        %2540 = vmatprep.subr.bf16.mxu0 0
        %2541 = vmatpush1.bf16.xpose.msra.mxu0 0
        %2542 = vmatprep.subr.bf16.mxu0 0
        %2543 = vmatpush1.bf16.xpose.msra.mxu0 0
        %2544 = vmatprep.subr.bf16.mxu0 0
        %2545 = vmatpush1.bf16.xpose.msra.mxu0 0
        %2546 = vmatprep.mubr.bf16.mxu0 0
        %2547 = vmatmul.mubr.bf16.gmra.mrb[0].mxu0 %v2509
        %v2548 = vpop.f32.mrb[0].mxu0
        %v2549 = vadd.f32 0.0, %v2548
        %v2550 = vpop.f32.mrb[0].mxu0
        %v2551 = vpop.f32.mrb[0].mxu0
        %v2552 = vpop.f32.mrb[0].mxu0
        %2553 = vdwg.mxu0
        %2555 = vrot.lane.b32.xlu0 %v1033, 96
        %v2556 = vpop.permute.xlu0 %2555
        %v2558 = vsel %vm1037, %v1033, 0
        %v2561 = vsel %vm1037, %v2556, 0
        %2563 = vmatprep.subr.bf16.mxu0 0
        %2564 = vmatpush1.bf16.xpose.msra.mxu0 %v2561
        %2565 = vmatprep.subr.bf16.mxu0 0
        %2566 = vmatpush1.bf16.xpose.msra.mxu0 0
        %2567 = vmatprep.subr.bf16.mxu0 0
        %2568 = vmatpush1.bf16.xpose.msra.mxu0 0
        %2569 = vmatprep.subr.bf16.mxu0 0
        %2570 = vmatpush1.bf16.xpose.msra.mxu0 0
        %2571 = vmatprep.subr.bf16.mxu0 0
        %2572 = vmatpush1.bf16.xpose.msra.mxu0 0
        %2573 = vmatprep.subr.bf16.mxu0 0
        %2574 = vmatpush1.bf16.xpose.msra.mxu0 0
        %2575 = vmatprep.subr.bf16.mxu0 0
        %2576 = vmatpush1.bf16.xpose.msra.mxu0 0
        %2577 = vmatprep.subr.bf16.mxu0 0
        %2578 = vmatpush1.bf16.xpose.msra.mxu0 0
        %2579 = vmatprep.subr.bf16.mxu0 0
        %2580 = vmatpush1.bf16.xpose.msra.mxu0 0
        %2581 = vmatprep.subr.bf16.mxu0 0
        %2582 = vmatpush1.bf16.xpose.msra.mxu0 0
        %2583 = vmatprep.subr.bf16.mxu0 0
        %2584 = vmatpush1.bf16.xpose.msra.mxu0 0
        %2585 = vmatprep.subr.bf16.mxu0 0
        %2586 = vmatpush1.bf16.xpose.msra.mxu0 0
        %2587 = vmatprep.subr.bf16.mxu0 0
        %2588 = vmatpush1.bf16.xpose.msra.mxu0 0
        %2589 = vmatprep.subr.bf16.mxu0 0
        %2590 = vmatpush1.bf16.xpose.msra.mxu0 0
        %2591 = vmatprep.subr.bf16.mxu0 0
        %2592 = vmatpush1.bf16.xpose.msra.mxu0 0
        %2593 = vmatprep.subr.bf16.mxu0 0
        %2594 = vmatpush1.bf16.xpose.msra.mxu0 0
        %2595 = vmatprep.mubr.bf16.mxu0 0
        %2596 = vmatmul.mubr.bf16.gmra.mrb[0].mxu0 %v2558
        %v2597 = vpop.f32.mrb[0].mxu0
        %v2598 = vadd.f32 0.0, %v2597
        %v2599 = vpop.f32.mrb[0].mxu0
        %v2600 = vpop.f32.mrb[0].mxu0
        %v2601 = vpop.f32.mrb[0].mxu0
        %2602 = vdwg.mxu0
        %v2603 = vlaneseq
        %v2604 = vshrl.u32 %v2603, 7
        %v2605 = vlaneseq
        %v2606 = vand.u32 %v2605, 127
        %vm2607 = vcmp.ge.s32.totalorder %v2604, %v2606
        %v2608 = vsel %vm2607, 1, 0
        %vm2609 = vcmp.eq.s32.totalorder %v2608, 1
        %v2610 = vsel %vm2609, %v1079, -inf
        %v2611 = vsel %vm2609, %v1128, -inf
        %v2612 = vsel %vm2609, %v1177, -inf
        %v2613 = vsel %vm2609, %v1226, -inf
        %v2614 = vsel %vm2609, %v1275, -inf
        %v2615 = vsel %vm2609, %v1324, -inf
        %v2616 = vsel %vm2609, %v1373, -inf
        %v2617 = vsel %vm2609, %v1422, -inf
        %v2618 = vsel %vm2609, %v1471, -inf
        %v2619 = vsel %vm2609, %v1520, -inf
        %v2620 = vsel %vm2609, %v1569, -inf
        %v2621 = vsel %vm2609, %v1618, -inf
        %v2622 = vsel %vm2609, %v1667, -inf
        %v2623 = vsel %vm2609, %v1716, -inf
        %v2624 = vsel %vm2609, %v1765, -inf
        %v2625 = vsel %vm2609, %v1814, -inf
        %v2626 = vsel %vm2609, %v1863, -inf
        %v2627 = vsel %vm2609, %v1912, -inf
        %v2628 = vsel %vm2609, %v1961, -inf
        %v2629 = vsel %vm2609, %v2010, -inf
        %v2630 = vsel %vm2609, %v2059, -inf
        %v2631 = vsel %vm2609, %v2108, -inf
        %v2632 = vsel %vm2609, %v2157, -inf
        %v2633 = vsel %vm2609, %v2206, -inf
        %v2634 = vsel %vm2609, %v2255, -inf
        %v2635 = vsel %vm2609, %v2304, -inf
        %v2636 = vsel %vm2609, %v2353, -inf
        %v2637 = vsel %vm2609, %v2402, -inf
        %v2638 = vsel %vm2609, %v2451, -inf
        %v2639 = vsel %vm2609, %v2500, -inf
        %v2640 = vsel %vm2609, %v2549, -inf
        %v2641 = vsel %vm2609, %v2598, -inf
        %vm2642 = vcmask 64512
        %v2643 = vsel %vm2642, %v2610, -inf
        %2644 = vmax.xlane.f32.xlu0 %v2643
        %v2645 = vpop.xlane.xlu0 %2644
        %v2646 = vsel %vm2642, %v2611, -inf
        %2647 = vmax.xlane.f32.xlu0 %v2646
        %v2648 = vpop.xlane.xlu0 %2647
        %v2649 = vsel %vm2642, %v2612, -inf
        %2650 = vmax.xlane.f32.xlu0 %v2649
        %v2651 = vpop.xlane.xlu0 %2650
        %v2652 = vsel %vm2642, %v2613, -inf
        %2653 = vmax.xlane.f32.xlu0 %v2652
        %v2654 = vpop.xlane.xlu0 %2653
        %v2655 = vsel %vm2642, %v2614, -inf
        %2656 = vmax.xlane.f32.xlu0 %v2655
        %v2657 = vpop.xlane.xlu0 %2656
        %v2658 = vsel %vm2642, %v2615, -inf
        %2659 = vmax.xlane.f32.xlu0 %v2658
        %v2660 = vpop.xlane.xlu0 %2659
        %v2661 = vsel %vm2642, %v2616, -inf
        %2662 = vmax.xlane.f32.xlu0 %v2661
        %v2663 = vpop.xlane.xlu0 %2662
        %v2664 = vsel %vm2642, %v2617, -inf
        %2665 = vmax.xlane.f32.xlu0 %v2664
        %v2666 = vpop.xlane.xlu0 %2665
        %v2667 = vsel %vm2642, %v2618, -inf
        %2668 = vmax.xlane.f32.xlu0 %v2667
        %v2669 = vpop.xlane.xlu0 %2668
        %v2670 = vsel %vm2642, %v2619, -inf
        %2671 = vmax.xlane.f32.xlu0 %v2670
        %v2672 = vpop.xlane.xlu0 %2671
        %v2673 = vsel %vm2642, %v2620, -inf
        %2674 = vmax.xlane.f32.xlu0 %v2673
        %v2675 = vpop.xlane.xlu0 %2674
        %v2676 = vsel %vm2642, %v2621, -inf
        %2677 = vmax.xlane.f32.xlu0 %v2676
        %v2678 = vpop.xlane.xlu0 %2677
        %v2679 = vsel %vm2642, %v2622, -inf
        %2680 = vmax.xlane.f32.xlu0 %v2679
        %v2681 = vpop.xlane.xlu0 %2680
        %v2682 = vsel %vm2642, %v2623, -inf
        %2683 = vmax.xlane.f32.xlu0 %v2682
        %v2684 = vpop.xlane.xlu0 %2683
        %v2685 = vsel %vm2642, %v2624, -inf
        %2686 = vmax.xlane.f32.xlu0 %v2685
        %v2687 = vpop.xlane.xlu0 %2686
        %v2688 = vsel %vm2642, %v2625, -inf
        %2689 = vmax.xlane.f32.xlu0 %v2688
        %v2690 = vpop.xlane.xlu0 %2689
        %v2691 = vsel %vm2642, %v2626, -inf
        %2692 = vmax.xlane.f32.xlu0 %v2691
        %v2693 = vpop.xlane.xlu0 %2692
        %v2694 = vsel %vm2642, %v2627, -inf
        %2695 = vmax.xlane.f32.xlu0 %v2694
        %v2696 = vpop.xlane.xlu0 %2695
        %v2697 = vsel %vm2642, %v2628, -inf
        %2698 = vmax.xlane.f32.xlu0 %v2697
        %v2699 = vpop.xlane.xlu0 %2698
        %v2700 = vsel %vm2642, %v2629, -inf
        %2701 = vmax.xlane.f32.xlu0 %v2700
        %v2702 = vpop.xlane.xlu0 %2701
        %v2703 = vsel %vm2642, %v2630, -inf
        %2704 = vmax.xlane.f32.xlu0 %v2703
        %v2705 = vpop.xlane.xlu0 %2704
        %v2706 = vsel %vm2642, %v2631, -inf
        %2707 = vmax.xlane.f32.xlu0 %v2706
        %v2708 = vpop.xlane.xlu0 %2707
        %v2709 = vsel %vm2642, %v2632, -inf
        %2710 = vmax.xlane.f32.xlu0 %v2709
        %v2711 = vpop.xlane.xlu0 %2710
        %v2712 = vsel %vm2642, %v2633, -inf
        %2713 = vmax.xlane.f32.xlu0 %v2712
        %v2714 = vpop.xlane.xlu0 %2713
        %v2715 = vsel %vm2642, %v2634, -inf
        %2716 = vmax.xlane.f32.xlu0 %v2715
        %v2717 = vpop.xlane.xlu0 %2716
        %v2718 = vsel %vm2642, %v2635, -inf
        %2719 = vmax.xlane.f32.xlu0 %v2718
        %v2720 = vpop.xlane.xlu0 %2719
        %v2721 = vsel %vm2642, %v2636, -inf
        %2722 = vmax.xlane.f32.xlu0 %v2721
        %v2723 = vpop.xlane.xlu0 %2722
        %v2724 = vsel %vm2642, %v2637, -inf
        %2725 = vmax.xlane.f32.xlu0 %v2724
        %v2726 = vpop.xlane.xlu0 %2725
        %v2727 = vsel %vm2642, %v2638, -inf
        %2728 = vmax.xlane.f32.xlu0 %v2727
        %v2729 = vpop.xlane.xlu0 %2728
        %v2730 = vsel %vm2642, %v2639, -inf
        %2731 = vmax.xlane.f32.xlu0 %v2730
        %v2732 = vpop.xlane.xlu0 %2731
        %v2733 = vsel %vm2642, %v2640, -inf
        %2734 = vmax.xlane.f32.xlu0 %v2733
        %v2735 = vpop.xlane.xlu0 %2734
        %v2736 = vsel %vm2642, %v2641, -inf
        %2737 = vmax.xlane.f32.xlu0 %v2736
        %v2738 = vpop.xlane.xlu0 %2737
        %v2739 = vsub.f32 %v2610, %v2645
        %v2740 = vsub.f32 %v2611, %v2648
        %v2741 = vsub.f32 %v2612, %v2651
        %v2742 = vsub.f32 %v2613, %v2654
        %v2743 = vsub.f32 %v2614, %v2657
        %v2744 = vsub.f32 %v2615, %v2660
        %v2745 = vsub.f32 %v2616, %v2663
        %v2746 = vsub.f32 %v2617, %v2666
        %v2747 = vsub.f32 %v2618, %v2669
        %v2748 = vsub.f32 %v2619, %v2672
        %v2749 = vsub.f32 %v2620, %v2675
        %v2750 = vsub.f32 %v2621, %v2678
        %v2751 = vsub.f32 %v2622, %v2681
        %v2752 = vsub.f32 %v2623, %v2684
        %v2753 = vsub.f32 %v2624, %v2687
        %v2754 = vsub.f32 %v2625, %v2690
        %v2755 = vsub.f32 %v2626, %v2693
        %v2756 = vsub.f32 %v2627, %v2696
        %v2757 = vsub.f32 %v2628, %v2699
        %v2758 = vsub.f32 %v2629, %v2702
        %v2759 = vsub.f32 %v2630, %v2705
        %v2760 = vsub.f32 %v2631, %v2708
        %v2761 = vsub.f32 %v2632, %v2711
        %v2762 = vsub.f32 %v2633, %v2714
        %v2763 = vsub.f32 %v2634, %v2717
        %v2764 = vsub.f32 %v2635, %v2720
        %v2765 = vsub.f32 %v2636, %v2723
        %v2766 = vsub.f32 %v2637, %v2726
        %v2767 = vsub.f32 %v2638, %v2729
        %v2768 = vsub.f32 %v2639, %v2732
        %v2769 = vsub.f32 %v2640, %v2735
        %v2770 = vsub.f32 %v2641, %v2738
        %v2771 = vmul.f32 %v2739, 1.442695
        %v2772 = vpow.pop %v2771
        %v2773 = vmul.f32 %v2740, 1.442695
        %v2774 = vpow.pop %v2773
        %v2775 = vmul.f32 %v2741, 1.442695
        %v2776 = vpow.pop %v2775
        %v2777 = vmul.f32 %v2742, 1.442695
        %v2778 = vpow.pop %v2777
        %v2779 = vmul.f32 %v2743, 1.442695
        %v2780 = vpow.pop %v2779
        %v2781 = vmul.f32 %v2744, 1.442695
        %v2782 = vpow.pop %v2781
        %v2783 = vmul.f32 %v2745, 1.442695
        %v2784 = vpow.pop %v2783
        %v2785 = vmul.f32 %v2746, 1.442695
        %v2786 = vpow.pop %v2785
        %v2787 = vmul.f32 %v2747, 1.442695
        %v2788 = vpow.pop %v2787
        %v2789 = vmul.f32 %v2748, 1.442695
        %v2790 = vpow.pop %v2789
        %v2791 = vmul.f32 %v2749, 1.442695
        %v2792 = vpow.pop %v2791
        %v2793 = vmul.f32 %v2750, 1.442695
        %v2794 = vpow.pop %v2793
        %v2795 = vmul.f32 %v2751, 1.442695
        %v2796 = vpow.pop %v2795
        %v2797 = vmul.f32 %v2752, 1.442695
        %v2798 = vpow.pop %v2797
        %v2799 = vmul.f32 %v2753, 1.442695
        %v2800 = vpow.pop %v2799
        %v2801 = vmul.f32 %v2754, 1.442695
        %v2802 = vpow.pop %v2801
        %v2803 = vmul.f32 %v2755, 1.442695
        %v2804 = vpow.pop %v2803
        %v2805 = vmul.f32 %v2756, 1.442695
        %v2806 = vpow.pop %v2805
        %v2807 = vmul.f32 %v2757, 1.442695
        %v2808 = vpow.pop %v2807
        %v2809 = vmul.f32 %v2758, 1.442695
        %v2810 = vpow.pop %v2809
        %v2811 = vmul.f32 %v2759, 1.442695
        %v2812 = vpow.pop %v2811
        %v2813 = vmul.f32 %v2760, 1.442695
        %v2814 = vpow.pop %v2813
        %v2815 = vmul.f32 %v2761, 1.442695
        %v2816 = vpow.pop %v2815
        %v2817 = vmul.f32 %v2762, 1.442695
        %v2818 = vpow.pop %v2817
        %v2819 = vmul.f32 %v2763, 1.442695
        %v2820 = vpow.pop %v2819
        %v2821 = vmul.f32 %v2764, 1.442695
        %v2822 = vpow.pop %v2821
        %v2823 = vmul.f32 %v2765, 1.442695
        %v2824 = vpow.pop %v2823
        %v2825 = vmul.f32 %v2766, 1.442695
        %v2826 = vpow.pop %v2825
        %v2827 = vmul.f32 %v2767, 1.442695
        %v2828 = vpow.pop %v2827
        %v2829 = vmul.f32 %v2768, 1.442695
        %v2830 = vpow.pop %v2829
        %v2831 = vmul.f32 %v2769, 1.442695
        %v2832 = vpow.pop %v2831
        %v2833 = vmul.f32 %v2770, 1.442695
        %v2834 = vpow.pop %v2833
        %v2835 = vsel %vm2642, %v2772, 0.0
        %2836 = vadd.xlane.f32.xlu0 %v2835
        %v2837 = vpop.xlane.xlu0 %2836
        %v2838 = vsel %vm2642, %v2774, 0.0
        %2839 = vadd.xlane.f32.xlu0 %v2838
        %v2840 = vpop.xlane.xlu0 %2839
        %v2841 = vsel %vm2642, %v2776, 0.0
        %2842 = vadd.xlane.f32.xlu0 %v2841
        %v2843 = vpop.xlane.xlu0 %2842
        %v2844 = vsel %vm2642, %v2778, 0.0
        %2845 = vadd.xlane.f32.xlu0 %v2844
        %v2846 = vpop.xlane.xlu0 %2845
        %v2847 = vsel %vm2642, %v2780, 0.0
        %2848 = vadd.xlane.f32.xlu0 %v2847
        %v2849 = vpop.xlane.xlu0 %2848
        %v2850 = vsel %vm2642, %v2782, 0.0
        %2851 = vadd.xlane.f32.xlu0 %v2850
        %v2852 = vpop.xlane.xlu0 %2851
        %v2853 = vsel %vm2642, %v2784, 0.0
        %2854 = vadd.xlane.f32.xlu0 %v2853
        %v2855 = vpop.xlane.xlu0 %2854
        %v2856 = vsel %vm2642, %v2786, 0.0
        %2857 = vadd.xlane.f32.xlu0 %v2856
        %v2858 = vpop.xlane.xlu0 %2857
        %v2859 = vsel %vm2642, %v2788, 0.0
        %2860 = vadd.xlane.f32.xlu0 %v2859
        %v2861 = vpop.xlane.xlu0 %2860
        %v2862 = vsel %vm2642, %v2790, 0.0
        %2863 = vadd.xlane.f32.xlu0 %v2862
        %v2864 = vpop.xlane.xlu0 %2863
        %v2865 = vsel %vm2642, %v2792, 0.0
        %2866 = vadd.xlane.f32.xlu0 %v2865
        %v2867 = vpop.xlane.xlu0 %2866
        %v2868 = vsel %vm2642, %v2794, 0.0
        %2869 = vadd.xlane.f32.xlu0 %v2868
        %v2870 = vpop.xlane.xlu0 %2869
        %v2871 = vsel %vm2642, %v2796, 0.0
        %2872 = vadd.xlane.f32.xlu0 %v2871
        %v2873 = vpop.xlane.xlu0 %2872
        %v2874 = vsel %vm2642, %v2798, 0.0
        %2875 = vadd.xlane.f32.xlu0 %v2874
        %v2876 = vpop.xlane.xlu0 %2875
        %v2877 = vsel %vm2642, %v2800, 0.0
        %2878 = vadd.xlane.f32.xlu0 %v2877
        %v2879 = vpop.xlane.xlu0 %2878
        %v2880 = vsel %vm2642, %v2802, 0.0
        %2881 = vadd.xlane.f32.xlu0 %v2880
        %v2882 = vpop.xlane.xlu0 %2881
        %v2883 = vsel %vm2642, %v2804, 0.0
        %2884 = vadd.xlane.f32.xlu0 %v2883
        %v2885 = vpop.xlane.xlu0 %2884
        %v2886 = vsel %vm2642, %v2806, 0.0
        %2887 = vadd.xlane.f32.xlu0 %v2886
        %v2888 = vpop.xlane.xlu0 %2887
        %v2889 = vsel %vm2642, %v2808, 0.0
        %2890 = vadd.xlane.f32.xlu0 %v2889
        %v2891 = vpop.xlane.xlu0 %2890
        %v2892 = vsel %vm2642, %v2810, 0.0
        %2893 = vadd.xlane.f32.xlu0 %v2892
        %v2894 = vpop.xlane.xlu0 %2893
        %v2895 = vsel %vm2642, %v2812, 0.0
        %2896 = vadd.xlane.f32.xlu0 %v2895
        %v2897 = vpop.xlane.xlu0 %2896
        %v2898 = vsel %vm2642, %v2814, 0.0
        %2899 = vadd.xlane.f32.xlu0 %v2898
        %v2900 = vpop.xlane.xlu0 %2899
        %v2901 = vsel %vm2642, %v2816, 0.0
        %2902 = vadd.xlane.f32.xlu0 %v2901
        %v2903 = vpop.xlane.xlu0 %2902
        %v2904 = vsel %vm2642, %v2818, 0.0
        %2905 = vadd.xlane.f32.xlu0 %v2904
        %v2906 = vpop.xlane.xlu0 %2905
        %v2907 = vsel %vm2642, %v2820, 0.0
        %2908 = vadd.xlane.f32.xlu0 %v2907
        %v2909 = vpop.xlane.xlu0 %2908
        %v2910 = vsel %vm2642, %v2822, 0.0
        %2911 = vadd.xlane.f32.xlu0 %v2910
        %v2912 = vpop.xlane.xlu0 %2911
        %v2913 = vsel %vm2642, %v2824, 0.0
        %2914 = vadd.xlane.f32.xlu0 %v2913
        %v2915 = vpop.xlane.xlu0 %2914
        %v2916 = vsel %vm2642, %v2826, 0.0
        %2917 = vadd.xlane.f32.xlu0 %v2916
        %v2918 = vpop.xlane.xlu0 %2917
        %v2919 = vsel %vm2642, %v2828, 0.0
        %2920 = vadd.xlane.f32.xlu0 %v2919
        %v2921 = vpop.xlane.xlu0 %2920
        %v2922 = vsel %vm2642, %v2830, 0.0
        %2923 = vadd.xlane.f32.xlu0 %v2922
        %v2924 = vpop.xlane.xlu0 %2923
        %v2925 = vsel %vm2642, %v2832, 0.0
        %2926 = vadd.xlane.f32.xlu0 %v2925
        %v2927 = vpop.xlane.xlu0 %2926
        %v2928 = vsel %vm2642, %v2834, 0.0
        %2929 = vadd.xlane.f32.xlu0 %v2928
        %v2930 = vpop.xlane.xlu0 %2929
        %v2931 = vrcp.pop %v2837
        %v2932 = vrcp.pop %v2840
        %v2933 = vrcp.pop %v2843
        %v2934 = vrcp.pop %v2846
        %v2935 = vrcp.pop %v2849
        %v2936 = vrcp.pop %v2852
        %v2937 = vrcp.pop %v2855
        %v2938 = vrcp.pop %v2858
        %v2939 = vrcp.pop %v2861
        %v2940 = vrcp.pop %v2864
        %v2941 = vrcp.pop %v2867
        %v2942 = vrcp.pop %v2870
        %v2943 = vrcp.pop %v2873
        %v2944 = vrcp.pop %v2876
        %v2945 = vrcp.pop %v2879
        %v2946 = vrcp.pop %v2882
        %v2947 = vrcp.pop %v2885
        %v2948 = vrcp.pop %v2888
        %v2949 = vrcp.pop %v2891
        %v2950 = vrcp.pop %v2894
        %v2951 = vrcp.pop %v2897
        %v2952 = vrcp.pop %v2900
        %v2953 = vrcp.pop %v2903
        %v2954 = vrcp.pop %v2906
        %v2955 = vrcp.pop %v2909
        %v2956 = vrcp.pop %v2912
        %v2957 = vrcp.pop %v2915
        %v2958 = vrcp.pop %v2918
        %v2959 = vrcp.pop %v2921
        %v2960 = vrcp.pop %v2924
        %v2961 = vrcp.pop %v2927
        %v2962 = vrcp.pop %v2930
        %v2963 = vmul.f32 %v2772, %v2931
        %v2964 = vmul.f32 %v2774, %v2932
        %v2965 = vmul.f32 %v2776, %v2933
        %v2966 = vmul.f32 %v2778, %v2934
        %v2967 = vmul.f32 %v2780, %v2935
        %v2968 = vmul.f32 %v2782, %v2936
        %v2969 = vmul.f32 %v2784, %v2937
        %v2970 = vmul.f32 %v2786, %v2938
        %v2971 = vmul.f32 %v2788, %v2939
        %v2972 = vmul.f32 %v2790, %v2940
        %v2973 = vmul.f32 %v2792, %v2941
        %v2974 = vmul.f32 %v2794, %v2942
        %v2975 = vmul.f32 %v2796, %v2943
        %v2976 = vmul.f32 %v2798, %v2944
        %v2977 = vmul.f32 %v2800, %v2945
        %v2978 = vmul.f32 %v2802, %v2946
        %v2979 = vmul.f32 %v2804, %v2947
        %v2980 = vmul.f32 %v2806, %v2948
        %v2981 = vmul.f32 %v2808, %v2949
        %v2982 = vmul.f32 %v2810, %v2950
        %v2983 = vmul.f32 %v2812, %v2951
        %v2984 = vmul.f32 %v2814, %v2952
        %v2985 = vmul.f32 %v2816, %v2953
        %v2986 = vmul.f32 %v2818, %v2954
        %v2987 = vmul.f32 %v2820, %v2955
        %v2988 = vmul.f32 %v2822, %v2956
        %v2989 = vmul.f32 %v2824, %v2957
        %v2990 = vmul.f32 %v2826, %v2958
        %v2991 = vmul.f32 %v2828, %v2959
        %v2992 = vmul.f32 %v2830, %v2960
        %v2993 = vmul.f32 %v2832, %v2961
        %v2994 = vmul.f32 %v2834, %v2962
        %v2995 = vpack.c.bf16 %v2963, %v2963
        %v2996 = vpack.c.bf16 %v2964, %v2964
        %v2997 = vpack.c.bf16 %v2965, %v2965
        %v2998 = vpack.c.bf16 %v2966, %v2966
        %v2999 = vpack.c.bf16 %v2967, %v2967
        %v3000 = vpack.c.bf16 %v2968, %v2968
        %v3001 = vpack.c.bf16 %v2969, %v2969
        %v3002 = vpack.c.bf16 %v2970, %v2970
        %v3003 = vpack.c.bf16 %v2971, %v2971
        %v3004 = vpack.c.bf16 %v2972, %v2972
        %v3005 = vpack.c.bf16 %v2973, %v2973
        %v3006 = vpack.c.bf16 %v2974, %v2974
        %v3007 = vpack.c.bf16 %v2975, %v2975
        %v3008 = vpack.c.bf16 %v2976, %v2976
        %v3009 = vpack.c.bf16 %v2977, %v2977
        %v3010 = vpack.c.bf16 %v2978, %v2978
        %v3011 = vpack.c.bf16 %v2979, %v2979
        %v3012 = vpack.c.bf16 %v2980, %v2980
        %v3013 = vpack.c.bf16 %v2981, %v2981
        %v3014 = vpack.c.bf16 %v2982, %v2982
        %v3015 = vpack.c.bf16 %v2983, %v2983
        %v3016 = vpack.c.bf16 %v2984, %v2984
        %v3017 = vpack.c.bf16 %v2985, %v2985
        %v3018 = vpack.c.bf16 %v2986, %v2986
        %v3019 = vpack.c.bf16 %v2987, %v2987
        %v3020 = vpack.c.bf16 %v2988, %v2988
        %v3021 = vpack.c.bf16 %v2989, %v2989
        %v3022 = vpack.c.bf16 %v2990, %v2990
        %v3023 = vpack.c.bf16 %v2991, %v2991
        %v3024 = vpack.c.bf16 %v2992, %v2992
        %v3025 = vpack.c.bf16 %v2993, %v2993
        %v3026 = vpack.c.bf16 %v2994, %v2994
        %3027 = vrot.lane.b32.xlu0 %v1002, 64
        %v3028 = vpop.permute.xlu0 %3027
        %v3030 = vsel %vm2642, %v2995, 0
        %vm3032 = vcmask 1043456
        %v3034 = vsel %vm3032, %v3028, 0
        %3036 = vmatprep.subr.bf16.mxu0 0
        %3037 = vmatpush1.bf16.msra.mxu0 %v3034
        %3038 = vmatprep.subr.bf16.mxu0 0
        %3039 = vmatpush1.bf16.msra.mxu0 0
        %3040 = vmatprep.subr.bf16.mxu0 0
        %3041 = vmatpush1.bf16.msra.mxu0 0
        %3042 = vmatprep.subr.bf16.mxu0 0
        %3043 = vmatpush1.bf16.msra.mxu0 0
        %3044 = vmatprep.subr.bf16.mxu0 0
        %3045 = vmatpush1.bf16.msra.mxu0 0
        %3046 = vmatprep.subr.bf16.mxu0 0
        %3047 = vmatpush1.bf16.msra.mxu0 0
        %3048 = vmatprep.subr.bf16.mxu0 0
        %3049 = vmatpush1.bf16.msra.mxu0 0
        %3050 = vmatprep.subr.bf16.mxu0 0
        %3051 = vmatpush1.bf16.msra.mxu0 0
        %3052 = vmatprep.subr.bf16.mxu0 0
        %3053 = vmatpush1.bf16.msra.mxu0 0
        %3054 = vmatprep.subr.bf16.mxu0 0
        %3055 = vmatpush1.bf16.msra.mxu0 0
        %3056 = vmatprep.subr.bf16.mxu0 0
        %3057 = vmatpush1.bf16.msra.mxu0 0
        %3058 = vmatprep.subr.bf16.mxu0 0
        %3059 = vmatpush1.bf16.msra.mxu0 0
        %3060 = vmatprep.subr.bf16.mxu0 0
        %3061 = vmatpush1.bf16.msra.mxu0 0
        %3062 = vmatprep.subr.bf16.mxu0 0
        %3063 = vmatpush1.bf16.msra.mxu0 0
        %3064 = vmatprep.subr.bf16.mxu0 0
        %3065 = vmatpush1.bf16.msra.mxu0 0
        %3066 = vmatprep.subr.bf16.mxu0 0
        %3067 = vmatpush1.bf16.msra.mxu0 0
        %3068 = vmatprep.mubr.bf16.mxu0 0
        %3069 = vmatmul.mubr.bf16.gmra.mrb[0].mxu0 %v3030
        %v3070 = vpop.f32.mrb[0].mxu0
        %v3071 = vadd.f32 0.0, %v3070
        %v3072 = vpop.f32.mrb[0].mxu0
        %v3073 = vpop.f32.mrb[0].mxu0
        %v3074 = vpop.f32.mrb[0].mxu0
        %3075 = vdwg.mxu0
        %3076 = vrot.lane.b32.xlu0 %v1003, 64
        %v3077 = vpop.permute.xlu0 %3076
        %v3079 = vsel %vm2642, %v2996, 0
        %v3082 = vsel %vm3032, %v3077, 0
        %3084 = vmatprep.subr.bf16.mxu0 0
        %3085 = vmatpush1.bf16.msra.mxu0 %v3082
        %3086 = vmatprep.subr.bf16.mxu0 0
        %3087 = vmatpush1.bf16.msra.mxu0 0
        %3088 = vmatprep.subr.bf16.mxu0 0
        %3089 = vmatpush1.bf16.msra.mxu0 0
        %3090 = vmatprep.subr.bf16.mxu0 0
        %3091 = vmatpush1.bf16.msra.mxu0 0
        %3092 = vmatprep.subr.bf16.mxu0 0
        %3093 = vmatpush1.bf16.msra.mxu0 0
        %3094 = vmatprep.subr.bf16.mxu0 0
        %3095 = vmatpush1.bf16.msra.mxu0 0
        %3096 = vmatprep.subr.bf16.mxu0 0
        %3097 = vmatpush1.bf16.msra.mxu0 0
        %3098 = vmatprep.subr.bf16.mxu0 0
        %3099 = vmatpush1.bf16.msra.mxu0 0
        %3100 = vmatprep.subr.bf16.mxu0 0
        %3101 = vmatpush1.bf16.msra.mxu0 0
        %3102 = vmatprep.subr.bf16.mxu0 0
        %3103 = vmatpush1.bf16.msra.mxu0 0
        %3104 = vmatprep.subr.bf16.mxu0 0
        %3105 = vmatpush1.bf16.msra.mxu0 0
        %3106 = vmatprep.subr.bf16.mxu0 0
        %3107 = vmatpush1.bf16.msra.mxu0 0
        %3108 = vmatprep.subr.bf16.mxu0 0
        %3109 = vmatpush1.bf16.msra.mxu0 0
        %3110 = vmatprep.subr.bf16.mxu0 0
        %3111 = vmatpush1.bf16.msra.mxu0 0
        %3112 = vmatprep.subr.bf16.mxu0 0
        %3113 = vmatpush1.bf16.msra.mxu0 0
        %3114 = vmatprep.subr.bf16.mxu0 0
        %3115 = vmatpush1.bf16.msra.mxu0 0
        %3116 = vmatprep.mubr.bf16.mxu0 0
        %3117 = vmatmul.mubr.bf16.gmra.mrb[0].mxu0 %v3079
        %v3118 = vpop.f32.mrb[0].mxu0
        %v3119 = vadd.f32 0.0, %v3118
        %v3120 = vpop.f32.mrb[0].mxu0
        %v3121 = vpop.f32.mrb[0].mxu0
        %v3122 = vpop.f32.mrb[0].mxu0
        %3123 = vdwg.mxu0
        %3124 = vrot.lane.b32.xlu0 %v1004, 64
        %v3125 = vpop.permute.xlu0 %3124
        %v3127 = vsel %vm2642, %v2997, 0
        %v3130 = vsel %vm3032, %v3125, 0
        %3132 = vmatprep.subr.bf16.mxu0 0
        %3133 = vmatpush1.bf16.msra.mxu0 %v3130
        %3134 = vmatprep.subr.bf16.mxu0 0
        %3135 = vmatpush1.bf16.msra.mxu0 0
        %3136 = vmatprep.subr.bf16.mxu0 0
        %3137 = vmatpush1.bf16.msra.mxu0 0
        %3138 = vmatprep.subr.bf16.mxu0 0
        %3139 = vmatpush1.bf16.msra.mxu0 0
        %3140 = vmatprep.subr.bf16.mxu0 0
        %3141 = vmatpush1.bf16.msra.mxu0 0
        %3142 = vmatprep.subr.bf16.mxu0 0
        %3143 = vmatpush1.bf16.msra.mxu0 0
        %3144 = vmatprep.subr.bf16.mxu0 0
        %3145 = vmatpush1.bf16.msra.mxu0 0
        %3146 = vmatprep.subr.bf16.mxu0 0
        %3147 = vmatpush1.bf16.msra.mxu0 0
        %3148 = vmatprep.subr.bf16.mxu0 0
        %3149 = vmatpush1.bf16.msra.mxu0 0
        %3150 = vmatprep.subr.bf16.mxu0 0
        %3151 = vmatpush1.bf16.msra.mxu0 0
        %3152 = vmatprep.subr.bf16.mxu0 0
        %3153 = vmatpush1.bf16.msra.mxu0 0
        %3154 = vmatprep.subr.bf16.mxu0 0
        %3155 = vmatpush1.bf16.msra.mxu0 0
        %3156 = vmatprep.subr.bf16.mxu0 0
        %3157 = vmatpush1.bf16.msra.mxu0 0
        %3158 = vmatprep.subr.bf16.mxu0 0
        %3159 = vmatpush1.bf16.msra.mxu0 0
        %3160 = vmatprep.subr.bf16.mxu0 0
        %3161 = vmatpush1.bf16.msra.mxu0 0
        %3162 = vmatprep.subr.bf16.mxu0 0
        %3163 = vmatpush1.bf16.msra.mxu0 0
        %3164 = vmatprep.mubr.bf16.mxu0 0
        %3165 = vmatmul.mubr.bf16.gmra.mrb[0].mxu0 %v3127
        %v3166 = vpop.f32.mrb[0].mxu0
        %v3167 = vadd.f32 0.0, %v3166
        %v3168 = vpop.f32.mrb[0].mxu0
        %v3169 = vpop.f32.mrb[0].mxu0
        %v3170 = vpop.f32.mrb[0].mxu0
        %3171 = vdwg.mxu0
        %3172 = vrot.lane.b32.xlu0 %v1005, 64
        %v3173 = vpop.permute.xlu0 %3172
        %v3175 = vsel %vm2642, %v2998, 0
        %v3178 = vsel %vm3032, %v3173, 0
        %3180 = vmatprep.subr.bf16.mxu0 0
        %3181 = vmatpush1.bf16.msra.mxu0 %v3178
        %3182 = vmatprep.subr.bf16.mxu0 0
        %3183 = vmatpush1.bf16.msra.mxu0 0
        %3184 = vmatprep.subr.bf16.mxu0 0
        %3185 = vmatpush1.bf16.msra.mxu0 0
        %3186 = vmatprep.subr.bf16.mxu0 0
        %3187 = vmatpush1.bf16.msra.mxu0 0
        %3188 = vmatprep.subr.bf16.mxu0 0
        %3189 = vmatpush1.bf16.msra.mxu0 0
        %3190 = vmatprep.subr.bf16.mxu0 0
        %3191 = vmatpush1.bf16.msra.mxu0 0
        %3192 = vmatprep.subr.bf16.mxu0 0
        %3193 = vmatpush1.bf16.msra.mxu0 0
        %3194 = vmatprep.subr.bf16.mxu0 0
        %3195 = vmatpush1.bf16.msra.mxu0 0
        %3196 = vmatprep.subr.bf16.mxu0 0
        %3197 = vmatpush1.bf16.msra.mxu0 0
        %3198 = vmatprep.subr.bf16.mxu0 0
        %3199 = vmatpush1.bf16.msra.mxu0 0
        %3200 = vmatprep.subr.bf16.mxu0 0
        %3201 = vmatpush1.bf16.msra.mxu0 0
        %3202 = vmatprep.subr.bf16.mxu0 0
        %3203 = vmatpush1.bf16.msra.mxu0 0
        %3204 = vmatprep.subr.bf16.mxu0 0
        %3205 = vmatpush1.bf16.msra.mxu0 0
        %3206 = vmatprep.subr.bf16.mxu0 0
        %3207 = vmatpush1.bf16.msra.mxu0 0
        %3208 = vmatprep.subr.bf16.mxu0 0
        %3209 = vmatpush1.bf16.msra.mxu0 0
        %3210 = vmatprep.subr.bf16.mxu0 0
        %3211 = vmatpush1.bf16.msra.mxu0 0
        %3212 = vmatprep.mubr.bf16.mxu0 0
        %3213 = vmatmul.mubr.bf16.gmra.mrb[0].mxu0 %v3175
        %v3214 = vpop.f32.mrb[0].mxu0
        %v3215 = vadd.f32 0.0, %v3214
        %v3216 = vpop.f32.mrb[0].mxu0
        %v3217 = vpop.f32.mrb[0].mxu0
        %v3218 = vpop.f32.mrb[0].mxu0
        %3219 = vdwg.mxu0
        %3220 = vrot.lane.b32.xlu0 %v1006, 64
        %v3221 = vpop.permute.xlu0 %3220
        %v3223 = vsel %vm2642, %v2999, 0
        %v3226 = vsel %vm3032, %v3221, 0
        %3228 = vmatprep.subr.bf16.mxu0 0
        %3229 = vmatpush1.bf16.msra.mxu0 %v3226
        %3230 = vmatprep.subr.bf16.mxu0 0
        %3231 = vmatpush1.bf16.msra.mxu0 0
        %3232 = vmatprep.subr.bf16.mxu0 0
        %3233 = vmatpush1.bf16.msra.mxu0 0
        %3234 = vmatprep.subr.bf16.mxu0 0
        %3235 = vmatpush1.bf16.msra.mxu0 0
        %3236 = vmatprep.subr.bf16.mxu0 0
        %3237 = vmatpush1.bf16.msra.mxu0 0
        %3238 = vmatprep.subr.bf16.mxu0 0
        %3239 = vmatpush1.bf16.msra.mxu0 0
        %3240 = vmatprep.subr.bf16.mxu0 0
        %3241 = vmatpush1.bf16.msra.mxu0 0
        %3242 = vmatprep.subr.bf16.mxu0 0
        %3243 = vmatpush1.bf16.msra.mxu0 0
        %3244 = vmatprep.subr.bf16.mxu0 0
        %3245 = vmatpush1.bf16.msra.mxu0 0
        %3246 = vmatprep.subr.bf16.mxu0 0
        %3247 = vmatpush1.bf16.msra.mxu0 0
        %3248 = vmatprep.subr.bf16.mxu0 0
        %3249 = vmatpush1.bf16.msra.mxu0 0
        %3250 = vmatprep.subr.bf16.mxu0 0
        %3251 = vmatpush1.bf16.msra.mxu0 0
        %3252 = vmatprep.subr.bf16.mxu0 0
        %3253 = vmatpush1.bf16.msra.mxu0 0
        %3254 = vmatprep.subr.bf16.mxu0 0
        %3255 = vmatpush1.bf16.msra.mxu0 0
        %3256 = vmatprep.subr.bf16.mxu0 0
        %3257 = vmatpush1.bf16.msra.mxu0 0
        %3258 = vmatprep.subr.bf16.mxu0 0
        %3259 = vmatpush1.bf16.msra.mxu0 0
        %3260 = vmatprep.mubr.bf16.mxu0 0
        %3261 = vmatmul.mubr.bf16.gmra.mrb[0].mxu0 %v3223
        %v3262 = vpop.f32.mrb[0].mxu0
        %v3263 = vadd.f32 0.0, %v3262
        %v3264 = vpop.f32.mrb[0].mxu0
        %v3265 = vpop.f32.mrb[0].mxu0
        %v3266 = vpop.f32.mrb[0].mxu0
        %3267 = vdwg.mxu0
        %3268 = vrot.lane.b32.xlu0 %v1007, 64
        %v3269 = vpop.permute.xlu0 %3268
        %v3271 = vsel %vm2642, %v3000, 0
        %v3274 = vsel %vm3032, %v3269, 0
        %3276 = vmatprep.subr.bf16.mxu0 0
        %3277 = vmatpush1.bf16.msra.mxu0 %v3274
        %3278 = vmatprep.subr.bf16.mxu0 0
        %3279 = vmatpush1.bf16.msra.mxu0 0
        %3280 = vmatprep.subr.bf16.mxu0 0
        %3281 = vmatpush1.bf16.msra.mxu0 0
        %3282 = vmatprep.subr.bf16.mxu0 0
        %3283 = vmatpush1.bf16.msra.mxu0 0
        %3284 = vmatprep.subr.bf16.mxu0 0
        %3285 = vmatpush1.bf16.msra.mxu0 0
        %3286 = vmatprep.subr.bf16.mxu0 0
        %3287 = vmatpush1.bf16.msra.mxu0 0
        %3288 = vmatprep.subr.bf16.mxu0 0
        %3289 = vmatpush1.bf16.msra.mxu0 0
        %3290 = vmatprep.subr.bf16.mxu0 0
        %3291 = vmatpush1.bf16.msra.mxu0 0
        %3292 = vmatprep.subr.bf16.mxu0 0
        %3293 = vmatpush1.bf16.msra.mxu0 0
        %3294 = vmatprep.subr.bf16.mxu0 0
        %3295 = vmatpush1.bf16.msra.mxu0 0
        %3296 = vmatprep.subr.bf16.mxu0 0
        %3297 = vmatpush1.bf16.msra.mxu0 0
        %3298 = vmatprep.subr.bf16.mxu0 0
        %3299 = vmatpush1.bf16.msra.mxu0 0
        %3300 = vmatprep.subr.bf16.mxu0 0
        %3301 = vmatpush1.bf16.msra.mxu0 0
        %3302 = vmatprep.subr.bf16.mxu0 0
        %3303 = vmatpush1.bf16.msra.mxu0 0
        %3304 = vmatprep.subr.bf16.mxu0 0
        %3305 = vmatpush1.bf16.msra.mxu0 0
        %3306 = vmatprep.subr.bf16.mxu0 0
        %3307 = vmatpush1.bf16.msra.mxu0 0
        %3308 = vmatprep.mubr.bf16.mxu0 0
        %3309 = vmatmul.mubr.bf16.gmra.mrb[0].mxu0 %v3271
        %v3310 = vpop.f32.mrb[0].mxu0
        %v3311 = vadd.f32 0.0, %v3310
        %v3312 = vpop.f32.mrb[0].mxu0
        %v3313 = vpop.f32.mrb[0].mxu0
        %v3314 = vpop.f32.mrb[0].mxu0
        %3315 = vdwg.mxu0
        %3316 = vrot.lane.b32.xlu0 %v1008, 64
        %v3317 = vpop.permute.xlu0 %3316
        %v3319 = vsel %vm2642, %v3001, 0
        %v3322 = vsel %vm3032, %v3317, 0
        %3324 = vmatprep.subr.bf16.mxu0 0
        %3325 = vmatpush1.bf16.msra.mxu0 %v3322
        %3326 = vmatprep.subr.bf16.mxu0 0
        %3327 = vmatpush1.bf16.msra.mxu0 0
        %3328 = vmatprep.subr.bf16.mxu0 0
        %3329 = vmatpush1.bf16.msra.mxu0 0
        %3330 = vmatprep.subr.bf16.mxu0 0
        %3331 = vmatpush1.bf16.msra.mxu0 0
        %3332 = vmatprep.subr.bf16.mxu0 0
        %3333 = vmatpush1.bf16.msra.mxu0 0
        %3334 = vmatprep.subr.bf16.mxu0 0
        %3335 = vmatpush1.bf16.msra.mxu0 0
        %3336 = vmatprep.subr.bf16.mxu0 0
        %3337 = vmatpush1.bf16.msra.mxu0 0
        %3338 = vmatprep.subr.bf16.mxu0 0
        %3339 = vmatpush1.bf16.msra.mxu0 0
        %3340 = vmatprep.subr.bf16.mxu0 0
        %3341 = vmatpush1.bf16.msra.mxu0 0
        %3342 = vmatprep.subr.bf16.mxu0 0
        %3343 = vmatpush1.bf16.msra.mxu0 0
        %3344 = vmatprep.subr.bf16.mxu0 0
        %3345 = vmatpush1.bf16.msra.mxu0 0
        %3346 = vmatprep.subr.bf16.mxu0 0
        %3347 = vmatpush1.bf16.msra.mxu0 0
        %3348 = vmatprep.subr.bf16.mxu0 0
        %3349 = vmatpush1.bf16.msra.mxu0 0
        %3350 = vmatprep.subr.bf16.mxu0 0
        %3351 = vmatpush1.bf16.msra.mxu0 0
        %3352 = vmatprep.subr.bf16.mxu0 0
        %3353 = vmatpush1.bf16.msra.mxu0 0
        %3354 = vmatprep.subr.bf16.mxu0 0
        %3355 = vmatpush1.bf16.msra.mxu0 0
        %3356 = vmatprep.mubr.bf16.mxu0 0
        %3357 = vmatmul.mubr.bf16.gmra.mrb[0].mxu0 %v3319
        %v3358 = vpop.f32.mrb[0].mxu0
        %v3359 = vadd.f32 0.0, %v3358
        %v3360 = vpop.f32.mrb[0].mxu0
        %v3361 = vpop.f32.mrb[0].mxu0
        %v3362 = vpop.f32.mrb[0].mxu0
        %3363 = vdwg.mxu0
        %3364 = vrot.lane.b32.xlu0 %v1009, 64
        %v3365 = vpop.permute.xlu0 %3364
        %v3367 = vsel %vm2642, %v3002, 0
        %v3370 = vsel %vm3032, %v3365, 0
        %3372 = vmatprep.subr.bf16.mxu0 0
        %3373 = vmatpush1.bf16.msra.mxu0 %v3370
        %3374 = vmatprep.subr.bf16.mxu0 0
        %3375 = vmatpush1.bf16.msra.mxu0 0
        %3376 = vmatprep.subr.bf16.mxu0 0
        %3377 = vmatpush1.bf16.msra.mxu0 0
        %3378 = vmatprep.subr.bf16.mxu0 0
        %3379 = vmatpush1.bf16.msra.mxu0 0
        %3380 = vmatprep.subr.bf16.mxu0 0
        %3381 = vmatpush1.bf16.msra.mxu0 0
        %3382 = vmatprep.subr.bf16.mxu0 0
        %3383 = vmatpush1.bf16.msra.mxu0 0
        %3384 = vmatprep.subr.bf16.mxu0 0
        %3385 = vmatpush1.bf16.msra.mxu0 0
        %3386 = vmatprep.subr.bf16.mxu0 0
        %3387 = vmatpush1.bf16.msra.mxu0 0
        %3388 = vmatprep.subr.bf16.mxu0 0
        %3389 = vmatpush1.bf16.msra.mxu0 0
        %3390 = vmatprep.subr.bf16.mxu0 0
        %3391 = vmatpush1.bf16.msra.mxu0 0
        %3392 = vmatprep.subr.bf16.mxu0 0
        %3393 = vmatpush1.bf16.msra.mxu0 0
        %3394 = vmatprep.subr.bf16.mxu0 0
        %3395 = vmatpush1.bf16.msra.mxu0 0
        %3396 = vmatprep.subr.bf16.mxu0 0
        %3397 = vmatpush1.bf16.msra.mxu0 0
        %3398 = vmatprep.subr.bf16.mxu0 0
        %3399 = vmatpush1.bf16.msra.mxu0 0
        %3400 = vmatprep.subr.bf16.mxu0 0
        %3401 = vmatpush1.bf16.msra.mxu0 0
        %3402 = vmatprep.subr.bf16.mxu0 0
        %3403 = vmatpush1.bf16.msra.mxu0 0
        %3404 = vmatprep.mubr.bf16.mxu0 0
        %3405 = vmatmul.mubr.bf16.gmra.mrb[0].mxu0 %v3367
        %v3406 = vpop.f32.mrb[0].mxu0
        %v3407 = vadd.f32 0.0, %v3406
        %v3408 = vpop.f32.mrb[0].mxu0
        %v3409 = vpop.f32.mrb[0].mxu0
        %v3410 = vpop.f32.mrb[0].mxu0
        %3411 = vdwg.mxu0
        %3412 = vrot.lane.b32.xlu0 %v1010, 64
        %v3413 = vpop.permute.xlu0 %3412
        %v3415 = vsel %vm2642, %v3003, 0
        %v3418 = vsel %vm3032, %v3413, 0
        %3420 = vmatprep.subr.bf16.mxu0 0
        %3421 = vmatpush1.bf16.msra.mxu0 %v3418
        %3422 = vmatprep.subr.bf16.mxu0 0
        %3423 = vmatpush1.bf16.msra.mxu0 0
        %3424 = vmatprep.subr.bf16.mxu0 0
        %3425 = vmatpush1.bf16.msra.mxu0 0
        %3426 = vmatprep.subr.bf16.mxu0 0
        %3427 = vmatpush1.bf16.msra.mxu0 0
        %3428 = vmatprep.subr.bf16.mxu0 0
        %3429 = vmatpush1.bf16.msra.mxu0 0
        %3430 = vmatprep.subr.bf16.mxu0 0
        %3431 = vmatpush1.bf16.msra.mxu0 0
        %3432 = vmatprep.subr.bf16.mxu0 0
        %3433 = vmatpush1.bf16.msra.mxu0 0
        %3434 = vmatprep.subr.bf16.mxu0 0
        %3435 = vmatpush1.bf16.msra.mxu0 0
        %3436 = vmatprep.subr.bf16.mxu0 0
        %3437 = vmatpush1.bf16.msra.mxu0 0
        %3438 = vmatprep.subr.bf16.mxu0 0
        %3439 = vmatpush1.bf16.msra.mxu0 0
        %3440 = vmatprep.subr.bf16.mxu0 0
        %3441 = vmatpush1.bf16.msra.mxu0 0
        %3442 = vmatprep.subr.bf16.mxu0 0
        %3443 = vmatpush1.bf16.msra.mxu0 0
        %3444 = vmatprep.subr.bf16.mxu0 0
        %3445 = vmatpush1.bf16.msra.mxu0 0
        %3446 = vmatprep.subr.bf16.mxu0 0
        %3447 = vmatpush1.bf16.msra.mxu0 0
        %3448 = vmatprep.subr.bf16.mxu0 0
        %3449 = vmatpush1.bf16.msra.mxu0 0
        %3450 = vmatprep.subr.bf16.mxu0 0
        %3451 = vmatpush1.bf16.msra.mxu0 0
        %3452 = vmatprep.mubr.bf16.mxu0 0
        %3453 = vmatmul.mubr.bf16.gmra.mrb[0].mxu0 %v3415
        %v3454 = vpop.f32.mrb[0].mxu0
        %v3455 = vadd.f32 0.0, %v3454
        %v3456 = vpop.f32.mrb[0].mxu0
        %v3457 = vpop.f32.mrb[0].mxu0
        %v3458 = vpop.f32.mrb[0].mxu0
        %3459 = vdwg.mxu0
        %3460 = vrot.lane.b32.xlu0 %v1011, 64
        %v3461 = vpop.permute.xlu0 %3460
        %v3463 = vsel %vm2642, %v3004, 0
        %v3466 = vsel %vm3032, %v3461, 0
        %3468 = vmatprep.subr.bf16.mxu0 0
        %3469 = vmatpush1.bf16.msra.mxu0 %v3466
        %3470 = vmatprep.subr.bf16.mxu0 0
        %3471 = vmatpush1.bf16.msra.mxu0 0
        %3472 = vmatprep.subr.bf16.mxu0 0
        %3473 = vmatpush1.bf16.msra.mxu0 0
        %3474 = vmatprep.subr.bf16.mxu0 0
        %3475 = vmatpush1.bf16.msra.mxu0 0
        %3476 = vmatprep.subr.bf16.mxu0 0
        %3477 = vmatpush1.bf16.msra.mxu0 0
        %3478 = vmatprep.subr.bf16.mxu0 0
        %3479 = vmatpush1.bf16.msra.mxu0 0
        %3480 = vmatprep.subr.bf16.mxu0 0
        %3481 = vmatpush1.bf16.msra.mxu0 0
        %3482 = vmatprep.subr.bf16.mxu0 0
        %3483 = vmatpush1.bf16.msra.mxu0 0
        %3484 = vmatprep.subr.bf16.mxu0 0
        %3485 = vmatpush1.bf16.msra.mxu0 0
        %3486 = vmatprep.subr.bf16.mxu0 0
        %3487 = vmatpush1.bf16.msra.mxu0 0
        %3488 = vmatprep.subr.bf16.mxu0 0
        %3489 = vmatpush1.bf16.msra.mxu0 0
        %3490 = vmatprep.subr.bf16.mxu0 0
        %3491 = vmatpush1.bf16.msra.mxu0 0
        %3492 = vmatprep.subr.bf16.mxu0 0
        %3493 = vmatpush1.bf16.msra.mxu0 0
        %3494 = vmatprep.subr.bf16.mxu0 0
        %3495 = vmatpush1.bf16.msra.mxu0 0
        %3496 = vmatprep.subr.bf16.mxu0 0
        %3497 = vmatpush1.bf16.msra.mxu0 0
        %3498 = vmatprep.subr.bf16.mxu0 0
        %3499 = vmatpush1.bf16.msra.mxu0 0
        %3500 = vmatprep.mubr.bf16.mxu0 0
        %3501 = vmatmul.mubr.bf16.gmra.mrb[0].mxu0 %v3463
        %v3502 = vpop.f32.mrb[0].mxu0
        %v3503 = vadd.f32 0.0, %v3502
        %v3504 = vpop.f32.mrb[0].mxu0
        %v3505 = vpop.f32.mrb[0].mxu0
        %v3506 = vpop.f32.mrb[0].mxu0
        %3507 = vdwg.mxu0
        %3508 = vrot.lane.b32.xlu0 %v1012, 64
        %v3509 = vpop.permute.xlu0 %3508
        %v3511 = vsel %vm2642, %v3005, 0
        %v3514 = vsel %vm3032, %v3509, 0
        %3516 = vmatprep.subr.bf16.mxu0 0
        %3517 = vmatpush1.bf16.msra.mxu0 %v3514
        %3518 = vmatprep.subr.bf16.mxu0 0
        %3519 = vmatpush1.bf16.msra.mxu0 0
        %3520 = vmatprep.subr.bf16.mxu0 0
        %3521 = vmatpush1.bf16.msra.mxu0 0
        %3522 = vmatprep.subr.bf16.mxu0 0
        %3523 = vmatpush1.bf16.msra.mxu0 0
        %3524 = vmatprep.subr.bf16.mxu0 0
        %3525 = vmatpush1.bf16.msra.mxu0 0
        %3526 = vmatprep.subr.bf16.mxu0 0
        %3527 = vmatpush1.bf16.msra.mxu0 0
        %3528 = vmatprep.subr.bf16.mxu0 0
        %3529 = vmatpush1.bf16.msra.mxu0 0
        %3530 = vmatprep.subr.bf16.mxu0 0
        %3531 = vmatpush1.bf16.msra.mxu0 0
        %3532 = vmatprep.subr.bf16.mxu0 0
        %3533 = vmatpush1.bf16.msra.mxu0 0
        %3534 = vmatprep.subr.bf16.mxu0 0
        %3535 = vmatpush1.bf16.msra.mxu0 0
        %3536 = vmatprep.subr.bf16.mxu0 0
        %3537 = vmatpush1.bf16.msra.mxu0 0
        %3538 = vmatprep.subr.bf16.mxu0 0
        %3539 = vmatpush1.bf16.msra.mxu0 0
        %3540 = vmatprep.subr.bf16.mxu0 0
        %3541 = vmatpush1.bf16.msra.mxu0 0
        %3542 = vmatprep.subr.bf16.mxu0 0
        %3543 = vmatpush1.bf16.msra.mxu0 0
        %3544 = vmatprep.subr.bf16.mxu0 0
        %3545 = vmatpush1.bf16.msra.mxu0 0
        %3546 = vmatprep.subr.bf16.mxu0 0
        %3547 = vmatpush1.bf16.msra.mxu0 0
        %3548 = vmatprep.mubr.bf16.mxu0 0
        %3549 = vmatmul.mubr.bf16.gmra.mrb[0].mxu0 %v3511
        %v3550 = vpop.f32.mrb[0].mxu0
        %v3551 = vadd.f32 0.0, %v3550
        %v3552 = vpop.f32.mrb[0].mxu0
        %v3553 = vpop.f32.mrb[0].mxu0
        %v3554 = vpop.f32.mrb[0].mxu0
        %3555 = vdwg.mxu0
        %3556 = vrot.lane.b32.xlu0 %v1013, 64
        %v3557 = vpop.permute.xlu0 %3556
        %v3559 = vsel %vm2642, %v3006, 0
        %v3562 = vsel %vm3032, %v3557, 0
        %3564 = vmatprep.subr.bf16.mxu0 0
        %3565 = vmatpush1.bf16.msra.mxu0 %v3562
        %3566 = vmatprep.subr.bf16.mxu0 0
        %3567 = vmatpush1.bf16.msra.mxu0 0
        %3568 = vmatprep.subr.bf16.mxu0 0
        %3569 = vmatpush1.bf16.msra.mxu0 0
        %3570 = vmatprep.subr.bf16.mxu0 0
        %3571 = vmatpush1.bf16.msra.mxu0 0
        %3572 = vmatprep.subr.bf16.mxu0 0
        %3573 = vmatpush1.bf16.msra.mxu0 0
        %3574 = vmatprep.subr.bf16.mxu0 0
        %3575 = vmatpush1.bf16.msra.mxu0 0
        %3576 = vmatprep.subr.bf16.mxu0 0
        %3577 = vmatpush1.bf16.msra.mxu0 0
        %3578 = vmatprep.subr.bf16.mxu0 0
        %3579 = vmatpush1.bf16.msra.mxu0 0
        %3580 = vmatprep.subr.bf16.mxu0 0
        %3581 = vmatpush1.bf16.msra.mxu0 0
        %3582 = vmatprep.subr.bf16.mxu0 0
        %3583 = vmatpush1.bf16.msra.mxu0 0
        %3584 = vmatprep.subr.bf16.mxu0 0
        %3585 = vmatpush1.bf16.msra.mxu0 0
        %3586 = vmatprep.subr.bf16.mxu0 0
        %3587 = vmatpush1.bf16.msra.mxu0 0
        %3588 = vmatprep.subr.bf16.mxu0 0
        %3589 = vmatpush1.bf16.msra.mxu0 0
        %3590 = vmatprep.subr.bf16.mxu0 0
        %3591 = vmatpush1.bf16.msra.mxu0 0
        %3592 = vmatprep.subr.bf16.mxu0 0
        %3593 = vmatpush1.bf16.msra.mxu0 0
        %3594 = vmatprep.subr.bf16.mxu0 0
        %3595 = vmatpush1.bf16.msra.mxu0 0
        %3596 = vmatprep.mubr.bf16.mxu0 0
        %3597 = vmatmul.mubr.bf16.gmra.mrb[0].mxu0 %v3559
        %v3598 = vpop.f32.mrb[0].mxu0
        %v3599 = vadd.f32 0.0, %v3598
        %v3600 = vpop.f32.mrb[0].mxu0
        %v3601 = vpop.f32.mrb[0].mxu0
        %v3602 = vpop.f32.mrb[0].mxu0
        %3603 = vdwg.mxu0
        %3604 = vrot.lane.b32.xlu0 %v1014, 64
        %v3605 = vpop.permute.xlu0 %3604
        %v3607 = vsel %vm2642, %v3007, 0
        %v3610 = vsel %vm3032, %v3605, 0
        %3612 = vmatprep.subr.bf16.mxu0 0
        %3613 = vmatpush1.bf16.msra.mxu0 %v3610
        %3614 = vmatprep.subr.bf16.mxu0 0
        %3615 = vmatpush1.bf16.msra.mxu0 0
        %3616 = vmatprep.subr.bf16.mxu0 0
        %3617 = vmatpush1.bf16.msra.mxu0 0
        %3618 = vmatprep.subr.bf16.mxu0 0
        %3619 = vmatpush1.bf16.msra.mxu0 0
        %3620 = vmatprep.subr.bf16.mxu0 0
        %3621 = vmatpush1.bf16.msra.mxu0 0
        %3622 = vmatprep.subr.bf16.mxu0 0
        %3623 = vmatpush1.bf16.msra.mxu0 0
        %3624 = vmatprep.subr.bf16.mxu0 0
        %3625 = vmatpush1.bf16.msra.mxu0 0
        %3626 = vmatprep.subr.bf16.mxu0 0
        %3627 = vmatpush1.bf16.msra.mxu0 0
        %3628 = vmatprep.subr.bf16.mxu0 0
        %3629 = vmatpush1.bf16.msra.mxu0 0
        %3630 = vmatprep.subr.bf16.mxu0 0
        %3631 = vmatpush1.bf16.msra.mxu0 0
        %3632 = vmatprep.subr.bf16.mxu0 0
        %3633 = vmatpush1.bf16.msra.mxu0 0
        %3634 = vmatprep.subr.bf16.mxu0 0
        %3635 = vmatpush1.bf16.msra.mxu0 0
        %3636 = vmatprep.subr.bf16.mxu0 0
        %3637 = vmatpush1.bf16.msra.mxu0 0
        %3638 = vmatprep.subr.bf16.mxu0 0
        %3639 = vmatpush1.bf16.msra.mxu0 0
        %3640 = vmatprep.subr.bf16.mxu0 0
        %3641 = vmatpush1.bf16.msra.mxu0 0
        %3642 = vmatprep.subr.bf16.mxu0 0
        %3643 = vmatpush1.bf16.msra.mxu0 0
        %3644 = vmatprep.mubr.bf16.mxu0 0
        %3645 = vmatmul.mubr.bf16.gmra.mrb[0].mxu0 %v3607
        %v3646 = vpop.f32.mrb[0].mxu0
        %v3647 = vadd.f32 0.0, %v3646
        %v3648 = vpop.f32.mrb[0].mxu0
        %v3649 = vpop.f32.mrb[0].mxu0
        %v3650 = vpop.f32.mrb[0].mxu0
        %3651 = vdwg.mxu0
        %3652 = vrot.lane.b32.xlu0 %v1015, 64
        %v3653 = vpop.permute.xlu0 %3652
        %v3655 = vsel %vm2642, %v3008, 0
        %v3658 = vsel %vm3032, %v3653, 0
        %3660 = vmatprep.subr.bf16.mxu0 0
        %3661 = vmatpush1.bf16.msra.mxu0 %v3658
        %3662 = vmatprep.subr.bf16.mxu0 0
        %3663 = vmatpush1.bf16.msra.mxu0 0
        %3664 = vmatprep.subr.bf16.mxu0 0
        %3665 = vmatpush1.bf16.msra.mxu0 0
        %3666 = vmatprep.subr.bf16.mxu0 0
        %3667 = vmatpush1.bf16.msra.mxu0 0
        %3668 = vmatprep.subr.bf16.mxu0 0
        %3669 = vmatpush1.bf16.msra.mxu0 0
        %3670 = vmatprep.subr.bf16.mxu0 0
        %3671 = vmatpush1.bf16.msra.mxu0 0
        %3672 = vmatprep.subr.bf16.mxu0 0
        %3673 = vmatpush1.bf16.msra.mxu0 0
        %3674 = vmatprep.subr.bf16.mxu0 0
        %3675 = vmatpush1.bf16.msra.mxu0 0
        %3676 = vmatprep.subr.bf16.mxu0 0
        %3677 = vmatpush1.bf16.msra.mxu0 0
        %3678 = vmatprep.subr.bf16.mxu0 0
        %3679 = vmatpush1.bf16.msra.mxu0 0
        %3680 = vmatprep.subr.bf16.mxu0 0
        %3681 = vmatpush1.bf16.msra.mxu0 0
        %3682 = vmatprep.subr.bf16.mxu0 0
        %3683 = vmatpush1.bf16.msra.mxu0 0
        %3684 = vmatprep.subr.bf16.mxu0 0
        %3685 = vmatpush1.bf16.msra.mxu0 0
        %3686 = vmatprep.subr.bf16.mxu0 0
        %3687 = vmatpush1.bf16.msra.mxu0 0
        %3688 = vmatprep.subr.bf16.mxu0 0
        %3689 = vmatpush1.bf16.msra.mxu0 0
        %3690 = vmatprep.subr.bf16.mxu0 0
        %3691 = vmatpush1.bf16.msra.mxu0 0
        %3692 = vmatprep.mubr.bf16.mxu0 0
        %3693 = vmatmul.mubr.bf16.gmra.mrb[0].mxu0 %v3655
        %v3694 = vpop.f32.mrb[0].mxu0
        %v3695 = vadd.f32 0.0, %v3694
        %v3696 = vpop.f32.mrb[0].mxu0
        %v3697 = vpop.f32.mrb[0].mxu0
        %v3698 = vpop.f32.mrb[0].mxu0
        %3699 = vdwg.mxu0
        %3700 = vrot.lane.b32.xlu0 %v1016, 64
        %v3701 = vpop.permute.xlu0 %3700
        %v3703 = vsel %vm2642, %v3009, 0
        %v3706 = vsel %vm3032, %v3701, 0
        %3708 = vmatprep.subr.bf16.mxu0 0
        %3709 = vmatpush1.bf16.msra.mxu0 %v3706
        %3710 = vmatprep.subr.bf16.mxu0 0
        %3711 = vmatpush1.bf16.msra.mxu0 0
        %3712 = vmatprep.subr.bf16.mxu0 0
        %3713 = vmatpush1.bf16.msra.mxu0 0
        %3714 = vmatprep.subr.bf16.mxu0 0
        %3715 = vmatpush1.bf16.msra.mxu0 0
        %3716 = vmatprep.subr.bf16.mxu0 0
        %3717 = vmatpush1.bf16.msra.mxu0 0
        %3718 = vmatprep.subr.bf16.mxu0 0
        %3719 = vmatpush1.bf16.msra.mxu0 0
        %3720 = vmatprep.subr.bf16.mxu0 0
        %3721 = vmatpush1.bf16.msra.mxu0 0
        %3722 = vmatprep.subr.bf16.mxu0 0
        %3723 = vmatpush1.bf16.msra.mxu0 0
        %3724 = vmatprep.subr.bf16.mxu0 0
        %3725 = vmatpush1.bf16.msra.mxu0 0
        %3726 = vmatprep.subr.bf16.mxu0 0
        %3727 = vmatpush1.bf16.msra.mxu0 0
        %3728 = vmatprep.subr.bf16.mxu0 0
        %3729 = vmatpush1.bf16.msra.mxu0 0
        %3730 = vmatprep.subr.bf16.mxu0 0
        %3731 = vmatpush1.bf16.msra.mxu0 0
        %3732 = vmatprep.subr.bf16.mxu0 0
        %3733 = vmatpush1.bf16.msra.mxu0 0
        %3734 = vmatprep.subr.bf16.mxu0 0
        %3735 = vmatpush1.bf16.msra.mxu0 0
        %3736 = vmatprep.subr.bf16.mxu0 0
        %3737 = vmatpush1.bf16.msra.mxu0 0
        %3738 = vmatprep.subr.bf16.mxu0 0
        %3739 = vmatpush1.bf16.msra.mxu0 0
        %3740 = vmatprep.mubr.bf16.mxu0 0
        %3741 = vmatmul.mubr.bf16.gmra.mrb[0].mxu0 %v3703
        %v3742 = vpop.f32.mrb[0].mxu0
        %v3743 = vadd.f32 0.0, %v3742
        %v3744 = vpop.f32.mrb[0].mxu0
        %v3745 = vpop.f32.mrb[0].mxu0
        %v3746 = vpop.f32.mrb[0].mxu0
        %3747 = vdwg.mxu0
        %3748 = vrot.lane.b32.xlu0 %v1017, 64
        %v3749 = vpop.permute.xlu0 %3748
        %v3751 = vsel %vm2642, %v3010, 0
        %v3754 = vsel %vm3032, %v3749, 0
        %3756 = vmatprep.subr.bf16.mxu0 0
        %3757 = vmatpush1.bf16.msra.mxu0 %v3754
        %3758 = vmatprep.subr.bf16.mxu0 0
        %3759 = vmatpush1.bf16.msra.mxu0 0
        %3760 = vmatprep.subr.bf16.mxu0 0
        %3761 = vmatpush1.bf16.msra.mxu0 0
        %3762 = vmatprep.subr.bf16.mxu0 0
        %3763 = vmatpush1.bf16.msra.mxu0 0
        %3764 = vmatprep.subr.bf16.mxu0 0
        %3765 = vmatpush1.bf16.msra.mxu0 0
        %3766 = vmatprep.subr.bf16.mxu0 0
        %3767 = vmatpush1.bf16.msra.mxu0 0
        %3768 = vmatprep.subr.bf16.mxu0 0
        %3769 = vmatpush1.bf16.msra.mxu0 0
        %3770 = vmatprep.subr.bf16.mxu0 0
        %3771 = vmatpush1.bf16.msra.mxu0 0
        %3772 = vmatprep.subr.bf16.mxu0 0
        %3773 = vmatpush1.bf16.msra.mxu0 0
        %3774 = vmatprep.subr.bf16.mxu0 0
        %3775 = vmatpush1.bf16.msra.mxu0 0
        %3776 = vmatprep.subr.bf16.mxu0 0
        %3777 = vmatpush1.bf16.msra.mxu0 0
        %3778 = vmatprep.subr.bf16.mxu0 0
        %3779 = vmatpush1.bf16.msra.mxu0 0
        %3780 = vmatprep.subr.bf16.mxu0 0
        %3781 = vmatpush1.bf16.msra.mxu0 0
        %3782 = vmatprep.subr.bf16.mxu0 0
        %3783 = vmatpush1.bf16.msra.mxu0 0
        %3784 = vmatprep.subr.bf16.mxu0 0
        %3785 = vmatpush1.bf16.msra.mxu0 0
        %3786 = vmatprep.subr.bf16.mxu0 0
        %3787 = vmatpush1.bf16.msra.mxu0 0
        %3788 = vmatprep.mubr.bf16.mxu0 0
        %3789 = vmatmul.mubr.bf16.gmra.mrb[0].mxu0 %v3751
        %v3790 = vpop.f32.mrb[0].mxu0
        %v3791 = vadd.f32 0.0, %v3790
        %v3792 = vpop.f32.mrb[0].mxu0
        %v3793 = vpop.f32.mrb[0].mxu0
        %v3794 = vpop.f32.mrb[0].mxu0
        %3795 = vdwg.mxu0
        %3796 = vrot.lane.b32.xlu0 %v1018, 64
        %v3797 = vpop.permute.xlu0 %3796
        %v3799 = vsel %vm2642, %v3011, 0
        %v3802 = vsel %vm3032, %v3797, 0
        %3804 = vmatprep.subr.bf16.mxu0 0
        %3805 = vmatpush1.bf16.msra.mxu0 %v3802
        %3806 = vmatprep.subr.bf16.mxu0 0
        %3807 = vmatpush1.bf16.msra.mxu0 0
        %3808 = vmatprep.subr.bf16.mxu0 0
        %3809 = vmatpush1.bf16.msra.mxu0 0
        %3810 = vmatprep.subr.bf16.mxu0 0
        %3811 = vmatpush1.bf16.msra.mxu0 0
        %3812 = vmatprep.subr.bf16.mxu0 0
        %3813 = vmatpush1.bf16.msra.mxu0 0
        %3814 = vmatprep.subr.bf16.mxu0 0
        %3815 = vmatpush1.bf16.msra.mxu0 0
        %3816 = vmatprep.subr.bf16.mxu0 0
        %3817 = vmatpush1.bf16.msra.mxu0 0
        %3818 = vmatprep.subr.bf16.mxu0 0
        %3819 = vmatpush1.bf16.msra.mxu0 0
        %3820 = vmatprep.subr.bf16.mxu0 0
        %3821 = vmatpush1.bf16.msra.mxu0 0
        %3822 = vmatprep.subr.bf16.mxu0 0
        %3823 = vmatpush1.bf16.msra.mxu0 0
        %3824 = vmatprep.subr.bf16.mxu0 0
        %3825 = vmatpush1.bf16.msra.mxu0 0
        %3826 = vmatprep.subr.bf16.mxu0 0
        %3827 = vmatpush1.bf16.msra.mxu0 0
        %3828 = vmatprep.subr.bf16.mxu0 0
        %3829 = vmatpush1.bf16.msra.mxu0 0
        %3830 = vmatprep.subr.bf16.mxu0 0
        %3831 = vmatpush1.bf16.msra.mxu0 0
        %3832 = vmatprep.subr.bf16.mxu0 0
        %3833 = vmatpush1.bf16.msra.mxu0 0
        %3834 = vmatprep.subr.bf16.mxu0 0
        %3835 = vmatpush1.bf16.msra.mxu0 0
        %3836 = vmatprep.mubr.bf16.mxu0 0
        %3837 = vmatmul.mubr.bf16.gmra.mrb[0].mxu0 %v3799
        %v3838 = vpop.f32.mrb[0].mxu0
        %v3839 = vadd.f32 0.0, %v3838
        %v3840 = vpop.f32.mrb[0].mxu0
        %v3841 = vpop.f32.mrb[0].mxu0
        %v3842 = vpop.f32.mrb[0].mxu0
        %3843 = vdwg.mxu0
        %3844 = vrot.lane.b32.xlu0 %v1019, 64
        %v3845 = vpop.permute.xlu0 %3844
        %v3847 = vsel %vm2642, %v3012, 0
        %v3850 = vsel %vm3032, %v3845, 0
        %3852 = vmatprep.subr.bf16.mxu0 0
        %3853 = vmatpush1.bf16.msra.mxu0 %v3850
        %3854 = vmatprep.subr.bf16.mxu0 0
        %3855 = vmatpush1.bf16.msra.mxu0 0
        %3856 = vmatprep.subr.bf16.mxu0 0
        %3857 = vmatpush1.bf16.msra.mxu0 0
        %3858 = vmatprep.subr.bf16.mxu0 0
        %3859 = vmatpush1.bf16.msra.mxu0 0
        %3860 = vmatprep.subr.bf16.mxu0 0
        %3861 = vmatpush1.bf16.msra.mxu0 0
        %3862 = vmatprep.subr.bf16.mxu0 0
        %3863 = vmatpush1.bf16.msra.mxu0 0
        %3864 = vmatprep.subr.bf16.mxu0 0
        %3865 = vmatpush1.bf16.msra.mxu0 0
        %3866 = vmatprep.subr.bf16.mxu0 0
        %3867 = vmatpush1.bf16.msra.mxu0 0
        %3868 = vmatprep.subr.bf16.mxu0 0
        %3869 = vmatpush1.bf16.msra.mxu0 0
        %3870 = vmatprep.subr.bf16.mxu0 0
        %3871 = vmatpush1.bf16.msra.mxu0 0
        %3872 = vmatprep.subr.bf16.mxu0 0
        %3873 = vmatpush1.bf16.msra.mxu0 0
        %3874 = vmatprep.subr.bf16.mxu0 0
        %3875 = vmatpush1.bf16.msra.mxu0 0
        %3876 = vmatprep.subr.bf16.mxu0 0
        %3877 = vmatpush1.bf16.msra.mxu0 0
        %3878 = vmatprep.subr.bf16.mxu0 0
        %3879 = vmatpush1.bf16.msra.mxu0 0
        %3880 = vmatprep.subr.bf16.mxu0 0
        %3881 = vmatpush1.bf16.msra.mxu0 0
        %3882 = vmatprep.subr.bf16.mxu0 0
        %3883 = vmatpush1.bf16.msra.mxu0 0
        %3884 = vmatprep.mubr.bf16.mxu0 0
        %3885 = vmatmul.mubr.bf16.gmra.mrb[0].mxu0 %v3847
        %v3886 = vpop.f32.mrb[0].mxu0
        %v3887 = vadd.f32 0.0, %v3886
        %v3888 = vpop.f32.mrb[0].mxu0
        %v3889 = vpop.f32.mrb[0].mxu0
        %v3890 = vpop.f32.mrb[0].mxu0
        %3891 = vdwg.mxu0
        %3892 = vrot.lane.b32.xlu0 %v1020, 64
        %v3893 = vpop.permute.xlu0 %3892
        %v3895 = vsel %vm2642, %v3013, 0
        %v3898 = vsel %vm3032, %v3893, 0
        %3900 = vmatprep.subr.bf16.mxu0 0
        %3901 = vmatpush1.bf16.msra.mxu0 %v3898
        %3902 = vmatprep.subr.bf16.mxu0 0
        %3903 = vmatpush1.bf16.msra.mxu0 0
        %3904 = vmatprep.subr.bf16.mxu0 0
        %3905 = vmatpush1.bf16.msra.mxu0 0
        %3906 = vmatprep.subr.bf16.mxu0 0
        %3907 = vmatpush1.bf16.msra.mxu0 0
        %3908 = vmatprep.subr.bf16.mxu0 0
        %3909 = vmatpush1.bf16.msra.mxu0 0
        %3910 = vmatprep.subr.bf16.mxu0 0
        %3911 = vmatpush1.bf16.msra.mxu0 0
        %3912 = vmatprep.subr.bf16.mxu0 0
        %3913 = vmatpush1.bf16.msra.mxu0 0
        %3914 = vmatprep.subr.bf16.mxu0 0
        %3915 = vmatpush1.bf16.msra.mxu0 0
        %3916 = vmatprep.subr.bf16.mxu0 0
        %3917 = vmatpush1.bf16.msra.mxu0 0
        %3918 = vmatprep.subr.bf16.mxu0 0
        %3919 = vmatpush1.bf16.msra.mxu0 0
        %3920 = vmatprep.subr.bf16.mxu0 0
        %3921 = vmatpush1.bf16.msra.mxu0 0
        %3922 = vmatprep.subr.bf16.mxu0 0
        %3923 = vmatpush1.bf16.msra.mxu0 0
        %3924 = vmatprep.subr.bf16.mxu0 0
        %3925 = vmatpush1.bf16.msra.mxu0 0
        %3926 = vmatprep.subr.bf16.mxu0 0
        %3927 = vmatpush1.bf16.msra.mxu0 0
        %3928 = vmatprep.subr.bf16.mxu0 0
        %3929 = vmatpush1.bf16.msra.mxu0 0
        %3930 = vmatprep.subr.bf16.mxu0 0
        %3931 = vmatpush1.bf16.msra.mxu0 0
        %3932 = vmatprep.mubr.bf16.mxu0 0
        %3933 = vmatmul.mubr.bf16.gmra.mrb[0].mxu0 %v3895
        %v3934 = vpop.f32.mrb[0].mxu0
        %v3935 = vadd.f32 0.0, %v3934
        %v3936 = vpop.f32.mrb[0].mxu0
        %v3937 = vpop.f32.mrb[0].mxu0
        %v3938 = vpop.f32.mrb[0].mxu0
        %3939 = vdwg.mxu0
        %3940 = vrot.lane.b32.xlu0 %v1021, 64
        %v3941 = vpop.permute.xlu0 %3940
        %v3943 = vsel %vm2642, %v3014, 0
        %v3946 = vsel %vm3032, %v3941, 0
        %3948 = vmatprep.subr.bf16.mxu0 0
        %3949 = vmatpush1.bf16.msra.mxu0 %v3946
        %3950 = vmatprep.subr.bf16.mxu0 0
        %3951 = vmatpush1.bf16.msra.mxu0 0
        %3952 = vmatprep.subr.bf16.mxu0 0
        %3953 = vmatpush1.bf16.msra.mxu0 0
        %3954 = vmatprep.subr.bf16.mxu0 0
        %3955 = vmatpush1.bf16.msra.mxu0 0
        %3956 = vmatprep.subr.bf16.mxu0 0
        %3957 = vmatpush1.bf16.msra.mxu0 0
        %3958 = vmatprep.subr.bf16.mxu0 0
        %3959 = vmatpush1.bf16.msra.mxu0 0
        %3960 = vmatprep.subr.bf16.mxu0 0
        %3961 = vmatpush1.bf16.msra.mxu0 0
        %3962 = vmatprep.subr.bf16.mxu0 0
        %3963 = vmatpush1.bf16.msra.mxu0 0
        %3964 = vmatprep.subr.bf16.mxu0 0
        %3965 = vmatpush1.bf16.msra.mxu0 0
        %3966 = vmatprep.subr.bf16.mxu0 0
        %3967 = vmatpush1.bf16.msra.mxu0 0
        %3968 = vmatprep.subr.bf16.mxu0 0
        %3969 = vmatpush1.bf16.msra.mxu0 0
        %3970 = vmatprep.subr.bf16.mxu0 0
        %3971 = vmatpush1.bf16.msra.mxu0 0
        %3972 = vmatprep.subr.bf16.mxu0 0
        %3973 = vmatpush1.bf16.msra.mxu0 0
        %3974 = vmatprep.subr.bf16.mxu0 0
        %3975 = vmatpush1.bf16.msra.mxu0 0
        %3976 = vmatprep.subr.bf16.mxu0 0
        %3977 = vmatpush1.bf16.msra.mxu0 0
        %3978 = vmatprep.subr.bf16.mxu0 0
        %3979 = vmatpush1.bf16.msra.mxu0 0
        %3980 = vmatprep.mubr.bf16.mxu0 0
        %3981 = vmatmul.mubr.bf16.gmra.mrb[0].mxu0 %v3943
        %v3982 = vpop.f32.mrb[0].mxu0
        %v3983 = vadd.f32 0.0, %v3982
        %v3984 = vpop.f32.mrb[0].mxu0
        %v3985 = vpop.f32.mrb[0].mxu0
        %v3986 = vpop.f32.mrb[0].mxu0
        %3987 = vdwg.mxu0
        %3988 = vrot.lane.b32.xlu0 %v1022, 64
        %v3989 = vpop.permute.xlu0 %3988
        %v3991 = vsel %vm2642, %v3015, 0
        %v3994 = vsel %vm3032, %v3989, 0
        %3996 = vmatprep.subr.bf16.mxu0 0
        %3997 = vmatpush1.bf16.msra.mxu0 %v3994
        %3998 = vmatprep.subr.bf16.mxu0 0
        %3999 = vmatpush1.bf16.msra.mxu0 0
        %4000 = vmatprep.subr.bf16.mxu0 0
        %4001 = vmatpush1.bf16.msra.mxu0 0
        %4002 = vmatprep.subr.bf16.mxu0 0
        %4003 = vmatpush1.bf16.msra.mxu0 0
        %4004 = vmatprep.subr.bf16.mxu0 0
        %4005 = vmatpush1.bf16.msra.mxu0 0
        %4006 = vmatprep.subr.bf16.mxu0 0
        %4007 = vmatpush1.bf16.msra.mxu0 0
        %4008 = vmatprep.subr.bf16.mxu0 0
        %4009 = vmatpush1.bf16.msra.mxu0 0
        %4010 = vmatprep.subr.bf16.mxu0 0
        %4011 = vmatpush1.bf16.msra.mxu0 0
        %4012 = vmatprep.subr.bf16.mxu0 0
        %4013 = vmatpush1.bf16.msra.mxu0 0
        %4014 = vmatprep.subr.bf16.mxu0 0
        %4015 = vmatpush1.bf16.msra.mxu0 0
        %4016 = vmatprep.subr.bf16.mxu0 0
        %4017 = vmatpush1.bf16.msra.mxu0 0
        %4018 = vmatprep.subr.bf16.mxu0 0
        %4019 = vmatpush1.bf16.msra.mxu0 0
        %4020 = vmatprep.subr.bf16.mxu0 0
        %4021 = vmatpush1.bf16.msra.mxu0 0
        %4022 = vmatprep.subr.bf16.mxu0 0
        %4023 = vmatpush1.bf16.msra.mxu0 0
        %4024 = vmatprep.subr.bf16.mxu0 0
        %4025 = vmatpush1.bf16.msra.mxu0 0
        %4026 = vmatprep.subr.bf16.mxu0 0
        %4027 = vmatpush1.bf16.msra.mxu0 0
        %4028 = vmatprep.mubr.bf16.mxu0 0
        %4029 = vmatmul.mubr.bf16.gmra.mrb[0].mxu0 %v3991
        %v4030 = vpop.f32.mrb[0].mxu0
        %v4031 = vadd.f32 0.0, %v4030
        %v4032 = vpop.f32.mrb[0].mxu0
        %v4033 = vpop.f32.mrb[0].mxu0
        %v4034 = vpop.f32.mrb[0].mxu0
        %4035 = vdwg.mxu0
        %4036 = vrot.lane.b32.xlu0 %v1023, 64
        %v4037 = vpop.permute.xlu0 %4036
        %v4039 = vsel %vm2642, %v3016, 0
        %v4042 = vsel %vm3032, %v4037, 0
        %4044 = vmatprep.subr.bf16.mxu0 0
        %4045 = vmatpush1.bf16.msra.mxu0 %v4042
        %4046 = vmatprep.subr.bf16.mxu0 0
        %4047 = vmatpush1.bf16.msra.mxu0 0
        %4048 = vmatprep.subr.bf16.mxu0 0
        %4049 = vmatpush1.bf16.msra.mxu0 0
        %4050 = vmatprep.subr.bf16.mxu0 0
        %4051 = vmatpush1.bf16.msra.mxu0 0
        %4052 = vmatprep.subr.bf16.mxu0 0
        %4053 = vmatpush1.bf16.msra.mxu0 0
        %4054 = vmatprep.subr.bf16.mxu0 0
        %4055 = vmatpush1.bf16.msra.mxu0 0
        %4056 = vmatprep.subr.bf16.mxu0 0
        %4057 = vmatpush1.bf16.msra.mxu0 0
        %4058 = vmatprep.subr.bf16.mxu0 0
        %4059 = vmatpush1.bf16.msra.mxu0 0
        %4060 = vmatprep.subr.bf16.mxu0 0
        %4061 = vmatpush1.bf16.msra.mxu0 0
        %4062 = vmatprep.subr.bf16.mxu0 0
        %4063 = vmatpush1.bf16.msra.mxu0 0
        %4064 = vmatprep.subr.bf16.mxu0 0
        %4065 = vmatpush1.bf16.msra.mxu0 0
        %4066 = vmatprep.subr.bf16.mxu0 0
        %4067 = vmatpush1.bf16.msra.mxu0 0
        %4068 = vmatprep.subr.bf16.mxu0 0
        %4069 = vmatpush1.bf16.msra.mxu0 0
        %4070 = vmatprep.subr.bf16.mxu0 0
        %4071 = vmatpush1.bf16.msra.mxu0 0
        %4072 = vmatprep.subr.bf16.mxu0 0
        %4073 = vmatpush1.bf16.msra.mxu0 0
        %4074 = vmatprep.subr.bf16.mxu0 0
        %4075 = vmatpush1.bf16.msra.mxu0 0
        %4076 = vmatprep.mubr.bf16.mxu0 0
        %4077 = vmatmul.mubr.bf16.gmra.mrb[0].mxu0 %v4039
        %v4078 = vpop.f32.mrb[0].mxu0
        %v4079 = vadd.f32 0.0, %v4078
        %v4080 = vpop.f32.mrb[0].mxu0
        %v4081 = vpop.f32.mrb[0].mxu0
        %v4082 = vpop.f32.mrb[0].mxu0
        %4083 = vdwg.mxu0
        %4084 = vrot.lane.b32.xlu0 %v1024, 64
        %v4085 = vpop.permute.xlu0 %4084
        %v4087 = vsel %vm2642, %v3017, 0
        %v4090 = vsel %vm3032, %v4085, 0
        %4092 = vmatprep.subr.bf16.mxu0 0
        %4093 = vmatpush1.bf16.msra.mxu0 %v4090
        %4094 = vmatprep.subr.bf16.mxu0 0
        %4095 = vmatpush1.bf16.msra.mxu0 0
        %4096 = vmatprep.subr.bf16.mxu0 0
        %4097 = vmatpush1.bf16.msra.mxu0 0
        %4098 = vmatprep.subr.bf16.mxu0 0
        %4099 = vmatpush1.bf16.msra.mxu0 0
        %4100 = vmatprep.subr.bf16.mxu0 0
        %4101 = vmatpush1.bf16.msra.mxu0 0
        %4102 = vmatprep.subr.bf16.mxu0 0
        %4103 = vmatpush1.bf16.msra.mxu0 0
        %4104 = vmatprep.subr.bf16.mxu0 0
        %4105 = vmatpush1.bf16.msra.mxu0 0
        %4106 = vmatprep.subr.bf16.mxu0 0
        %4107 = vmatpush1.bf16.msra.mxu0 0
        %4108 = vmatprep.subr.bf16.mxu0 0
        %4109 = vmatpush1.bf16.msra.mxu0 0
        %4110 = vmatprep.subr.bf16.mxu0 0
        %4111 = vmatpush1.bf16.msra.mxu0 0
        %4112 = vmatprep.subr.bf16.mxu0 0
        %4113 = vmatpush1.bf16.msra.mxu0 0
        %4114 = vmatprep.subr.bf16.mxu0 0
        %4115 = vmatpush1.bf16.msra.mxu0 0
        %4116 = vmatprep.subr.bf16.mxu0 0
        %4117 = vmatpush1.bf16.msra.mxu0 0
        %4118 = vmatprep.subr.bf16.mxu0 0
        %4119 = vmatpush1.bf16.msra.mxu0 0
        %4120 = vmatprep.subr.bf16.mxu0 0
        %4121 = vmatpush1.bf16.msra.mxu0 0
        %4122 = vmatprep.subr.bf16.mxu0 0
        %4123 = vmatpush1.bf16.msra.mxu0 0
        %4124 = vmatprep.mubr.bf16.mxu0 0
        %4125 = vmatmul.mubr.bf16.gmra.mrb[0].mxu0 %v4087
        %v4126 = vpop.f32.mrb[0].mxu0
        %v4127 = vadd.f32 0.0, %v4126
        %v4128 = vpop.f32.mrb[0].mxu0
        %v4129 = vpop.f32.mrb[0].mxu0
        %v4130 = vpop.f32.mrb[0].mxu0
        %4131 = vdwg.mxu0
        %4132 = vrot.lane.b32.xlu0 %v1025, 64
        %v4133 = vpop.permute.xlu0 %4132
        %v4135 = vsel %vm2642, %v3018, 0
        %v4138 = vsel %vm3032, %v4133, 0
        %4140 = vmatprep.subr.bf16.mxu0 0
        %4141 = vmatpush1.bf16.msra.mxu0 %v4138
        %4142 = vmatprep.subr.bf16.mxu0 0
        %4143 = vmatpush1.bf16.msra.mxu0 0
        %4144 = vmatprep.subr.bf16.mxu0 0
        %4145 = vmatpush1.bf16.msra.mxu0 0
        %4146 = vmatprep.subr.bf16.mxu0 0
        %4147 = vmatpush1.bf16.msra.mxu0 0
        %4148 = vmatprep.subr.bf16.mxu0 0
        %4149 = vmatpush1.bf16.msra.mxu0 0
        %4150 = vmatprep.subr.bf16.mxu0 0
        %4151 = vmatpush1.bf16.msra.mxu0 0
        %4152 = vmatprep.subr.bf16.mxu0 0
        %4153 = vmatpush1.bf16.msra.mxu0 0
        %4154 = vmatprep.subr.bf16.mxu0 0
        %4155 = vmatpush1.bf16.msra.mxu0 0
        %4156 = vmatprep.subr.bf16.mxu0 0
        %4157 = vmatpush1.bf16.msra.mxu0 0
        %4158 = vmatprep.subr.bf16.mxu0 0
        %4159 = vmatpush1.bf16.msra.mxu0 0
        %4160 = vmatprep.subr.bf16.mxu0 0
        %4161 = vmatpush1.bf16.msra.mxu0 0
        %4162 = vmatprep.subr.bf16.mxu0 0
        %4163 = vmatpush1.bf16.msra.mxu0 0
        %4164 = vmatprep.subr.bf16.mxu0 0
        %4165 = vmatpush1.bf16.msra.mxu0 0
        %4166 = vmatprep.subr.bf16.mxu0 0
        %4167 = vmatpush1.bf16.msra.mxu0 0
        %4168 = vmatprep.subr.bf16.mxu0 0
        %4169 = vmatpush1.bf16.msra.mxu0 0
        %4170 = vmatprep.subr.bf16.mxu0 0
        %4171 = vmatpush1.bf16.msra.mxu0 0
        %4172 = vmatprep.mubr.bf16.mxu0 0
        %4173 = vmatmul.mubr.bf16.gmra.mrb[0].mxu0 %v4135
        %v4174 = vpop.f32.mrb[0].mxu0
        %v4175 = vadd.f32 0.0, %v4174
        %v4176 = vpop.f32.mrb[0].mxu0
        %v4177 = vpop.f32.mrb[0].mxu0
        %v4178 = vpop.f32.mrb[0].mxu0
        %4179 = vdwg.mxu0
        %4180 = vrot.lane.b32.xlu0 %v1026, 64
        %v4181 = vpop.permute.xlu0 %4180
        %v4183 = vsel %vm2642, %v3019, 0
        %v4186 = vsel %vm3032, %v4181, 0
        %4188 = vmatprep.subr.bf16.mxu0 0
        %4189 = vmatpush1.bf16.msra.mxu0 %v4186
        %4190 = vmatprep.subr.bf16.mxu0 0
        %4191 = vmatpush1.bf16.msra.mxu0 0
        %4192 = vmatprep.subr.bf16.mxu0 0
        %4193 = vmatpush1.bf16.msra.mxu0 0
        %4194 = vmatprep.subr.bf16.mxu0 0
        %4195 = vmatpush1.bf16.msra.mxu0 0
        %4196 = vmatprep.subr.bf16.mxu0 0
        %4197 = vmatpush1.bf16.msra.mxu0 0
        %4198 = vmatprep.subr.bf16.mxu0 0
        %4199 = vmatpush1.bf16.msra.mxu0 0
        %4200 = vmatprep.subr.bf16.mxu0 0
        %4201 = vmatpush1.bf16.msra.mxu0 0
        %4202 = vmatprep.subr.bf16.mxu0 0
        %4203 = vmatpush1.bf16.msra.mxu0 0
        %4204 = vmatprep.subr.bf16.mxu0 0
        %4205 = vmatpush1.bf16.msra.mxu0 0
        %4206 = vmatprep.subr.bf16.mxu0 0
        %4207 = vmatpush1.bf16.msra.mxu0 0
        %4208 = vmatprep.subr.bf16.mxu0 0
        %4209 = vmatpush1.bf16.msra.mxu0 0
        %4210 = vmatprep.subr.bf16.mxu0 0
        %4211 = vmatpush1.bf16.msra.mxu0 0
        %4212 = vmatprep.subr.bf16.mxu0 0
        %4213 = vmatpush1.bf16.msra.mxu0 0
        %4214 = vmatprep.subr.bf16.mxu0 0
        %4215 = vmatpush1.bf16.msra.mxu0 0
        %4216 = vmatprep.subr.bf16.mxu0 0
        %4217 = vmatpush1.bf16.msra.mxu0 0
        %4218 = vmatprep.subr.bf16.mxu0 0
        %4219 = vmatpush1.bf16.msra.mxu0 0
        %4220 = vmatprep.mubr.bf16.mxu0 0
        %4221 = vmatmul.mubr.bf16.gmra.mrb[0].mxu0 %v4183
        %v4222 = vpop.f32.mrb[0].mxu0
        %v4223 = vadd.f32 0.0, %v4222
        %v4224 = vpop.f32.mrb[0].mxu0
        %v4225 = vpop.f32.mrb[0].mxu0
        %v4226 = vpop.f32.mrb[0].mxu0
        %4227 = vdwg.mxu0
        %4228 = vrot.lane.b32.xlu0 %v1027, 64
        %v4229 = vpop.permute.xlu0 %4228
        %v4231 = vsel %vm2642, %v3020, 0
        %v4234 = vsel %vm3032, %v4229, 0
        %4236 = vmatprep.subr.bf16.mxu0 0
        %4237 = vmatpush1.bf16.msra.mxu0 %v4234
        %4238 = vmatprep.subr.bf16.mxu0 0
        %4239 = vmatpush1.bf16.msra.mxu0 0
        %4240 = vmatprep.subr.bf16.mxu0 0
        %4241 = vmatpush1.bf16.msra.mxu0 0
        %4242 = vmatprep.subr.bf16.mxu0 0
        %4243 = vmatpush1.bf16.msra.mxu0 0
        %4244 = vmatprep.subr.bf16.mxu0 0
        %4245 = vmatpush1.bf16.msra.mxu0 0
        %4246 = vmatprep.subr.bf16.mxu0 0
        %4247 = vmatpush1.bf16.msra.mxu0 0
        %4248 = vmatprep.subr.bf16.mxu0 0
        %4249 = vmatpush1.bf16.msra.mxu0 0
        %4250 = vmatprep.subr.bf16.mxu0 0
        %4251 = vmatpush1.bf16.msra.mxu0 0
        %4252 = vmatprep.subr.bf16.mxu0 0
        %4253 = vmatpush1.bf16.msra.mxu0 0
        %4254 = vmatprep.subr.bf16.mxu0 0
        %4255 = vmatpush1.bf16.msra.mxu0 0
        %4256 = vmatprep.subr.bf16.mxu0 0
        %4257 = vmatpush1.bf16.msra.mxu0 0
        %4258 = vmatprep.subr.bf16.mxu0 0
        %4259 = vmatpush1.bf16.msra.mxu0 0
        %4260 = vmatprep.subr.bf16.mxu0 0
        %4261 = vmatpush1.bf16.msra.mxu0 0
        %4262 = vmatprep.subr.bf16.mxu0 0
        %4263 = vmatpush1.bf16.msra.mxu0 0
        %4264 = vmatprep.subr.bf16.mxu0 0
        %4265 = vmatpush1.bf16.msra.mxu0 0
        %4266 = vmatprep.subr.bf16.mxu0 0
        %4267 = vmatpush1.bf16.msra.mxu0 0
        %4268 = vmatprep.mubr.bf16.mxu0 0
        %4269 = vmatmul.mubr.bf16.gmra.mrb[0].mxu0 %v4231
        %v4270 = vpop.f32.mrb[0].mxu0
        %v4271 = vadd.f32 0.0, %v4270
        %v4272 = vpop.f32.mrb[0].mxu0
        %v4273 = vpop.f32.mrb[0].mxu0
        %v4274 = vpop.f32.mrb[0].mxu0
        %4275 = vdwg.mxu0
        %4276 = vrot.lane.b32.xlu0 %v1028, 64
        %v4277 = vpop.permute.xlu0 %4276
        %v4279 = vsel %vm2642, %v3021, 0
        %v4282 = vsel %vm3032, %v4277, 0
        %4284 = vmatprep.subr.bf16.mxu0 0
        %4285 = vmatpush1.bf16.msra.mxu0 %v4282
        %4286 = vmatprep.subr.bf16.mxu0 0
        %4287 = vmatpush1.bf16.msra.mxu0 0
        %4288 = vmatprep.subr.bf16.mxu0 0
        %4289 = vmatpush1.bf16.msra.mxu0 0
        %4290 = vmatprep.subr.bf16.mxu0 0
        %4291 = vmatpush1.bf16.msra.mxu0 0
        %4292 = vmatprep.subr.bf16.mxu0 0
        %4293 = vmatpush1.bf16.msra.mxu0 0
        %4294 = vmatprep.subr.bf16.mxu0 0
        %4295 = vmatpush1.bf16.msra.mxu0 0
        %4296 = vmatprep.subr.bf16.mxu0 0
        %4297 = vmatpush1.bf16.msra.mxu0 0
        %4298 = vmatprep.subr.bf16.mxu0 0
        %4299 = vmatpush1.bf16.msra.mxu0 0
        %4300 = vmatprep.subr.bf16.mxu0 0
        %4301 = vmatpush1.bf16.msra.mxu0 0
        %4302 = vmatprep.subr.bf16.mxu0 0
        %4303 = vmatpush1.bf16.msra.mxu0 0
        %4304 = vmatprep.subr.bf16.mxu0 0
        %4305 = vmatpush1.bf16.msra.mxu0 0
        %4306 = vmatprep.subr.bf16.mxu0 0
        %4307 = vmatpush1.bf16.msra.mxu0 0
        %4308 = vmatprep.subr.bf16.mxu0 0
        %4309 = vmatpush1.bf16.msra.mxu0 0
        %4310 = vmatprep.subr.bf16.mxu0 0
        %4311 = vmatpush1.bf16.msra.mxu0 0
        %4312 = vmatprep.subr.bf16.mxu0 0
        %4313 = vmatpush1.bf16.msra.mxu0 0
        %4314 = vmatprep.subr.bf16.mxu0 0
        %4315 = vmatpush1.bf16.msra.mxu0 0
        %4316 = vmatprep.mubr.bf16.mxu0 0
        %4317 = vmatmul.mubr.bf16.gmra.mrb[0].mxu0 %v4279
        %v4318 = vpop.f32.mrb[0].mxu0
        %v4319 = vadd.f32 0.0, %v4318
        %v4320 = vpop.f32.mrb[0].mxu0
        %v4321 = vpop.f32.mrb[0].mxu0
        %v4322 = vpop.f32.mrb[0].mxu0
        %4323 = vdwg.mxu0
        %4324 = vrot.lane.b32.xlu0 %v1029, 64
        %v4325 = vpop.permute.xlu0 %4324
        %v4327 = vsel %vm2642, %v3022, 0
        %v4330 = vsel %vm3032, %v4325, 0
        %4332 = vmatprep.subr.bf16.mxu0 0
        %4333 = vmatpush1.bf16.msra.mxu0 %v4330
        %4334 = vmatprep.subr.bf16.mxu0 0
        %4335 = vmatpush1.bf16.msra.mxu0 0
        %4336 = vmatprep.subr.bf16.mxu0 0
        %4337 = vmatpush1.bf16.msra.mxu0 0
        %4338 = vmatprep.subr.bf16.mxu0 0
        %4339 = vmatpush1.bf16.msra.mxu0 0
        %4340 = vmatprep.subr.bf16.mxu0 0
        %4341 = vmatpush1.bf16.msra.mxu0 0
        %4342 = vmatprep.subr.bf16.mxu0 0
        %4343 = vmatpush1.bf16.msra.mxu0 0
        %4344 = vmatprep.subr.bf16.mxu0 0
        %4345 = vmatpush1.bf16.msra.mxu0 0
        %4346 = vmatprep.subr.bf16.mxu0 0
        %4347 = vmatpush1.bf16.msra.mxu0 0
        %4348 = vmatprep.subr.bf16.mxu0 0
        %4349 = vmatpush1.bf16.msra.mxu0 0
        %4350 = vmatprep.subr.bf16.mxu0 0
        %4351 = vmatpush1.bf16.msra.mxu0 0
        %4352 = vmatprep.subr.bf16.mxu0 0
        %4353 = vmatpush1.bf16.msra.mxu0 0
        %4354 = vmatprep.subr.bf16.mxu0 0
        %4355 = vmatpush1.bf16.msra.mxu0 0
        %4356 = vmatprep.subr.bf16.mxu0 0
        %4357 = vmatpush1.bf16.msra.mxu0 0
        %4358 = vmatprep.subr.bf16.mxu0 0
        %4359 = vmatpush1.bf16.msra.mxu0 0
        %4360 = vmatprep.subr.bf16.mxu0 0
        %4361 = vmatpush1.bf16.msra.mxu0 0
        %4362 = vmatprep.subr.bf16.mxu0 0
        %4363 = vmatpush1.bf16.msra.mxu0 0
        %4364 = vmatprep.mubr.bf16.mxu0 0
        %4365 = vmatmul.mubr.bf16.gmra.mrb[0].mxu0 %v4327
        %v4366 = vpop.f32.mrb[0].mxu0
        %v4367 = vadd.f32 0.0, %v4366
        %v4368 = vpop.f32.mrb[0].mxu0
        %v4369 = vpop.f32.mrb[0].mxu0
        %v4370 = vpop.f32.mrb[0].mxu0
        %4371 = vdwg.mxu0
        %4372 = vrot.lane.b32.xlu0 %v1030, 64
        %v4373 = vpop.permute.xlu0 %4372
        %v4375 = vsel %vm2642, %v3023, 0
        %v4378 = vsel %vm3032, %v4373, 0
        %4380 = vmatprep.subr.bf16.mxu0 0
        %4381 = vmatpush1.bf16.msra.mxu0 %v4378
        %4382 = vmatprep.subr.bf16.mxu0 0
        %4383 = vmatpush1.bf16.msra.mxu0 0
        %4384 = vmatprep.subr.bf16.mxu0 0
        %4385 = vmatpush1.bf16.msra.mxu0 0
        %4386 = vmatprep.subr.bf16.mxu0 0
        %4387 = vmatpush1.bf16.msra.mxu0 0
        %4388 = vmatprep.subr.bf16.mxu0 0
        %4389 = vmatpush1.bf16.msra.mxu0 0
        %4390 = vmatprep.subr.bf16.mxu0 0
        %4391 = vmatpush1.bf16.msra.mxu0 0
        %4392 = vmatprep.subr.bf16.mxu0 0
        %4393 = vmatpush1.bf16.msra.mxu0 0
        %4394 = vmatprep.subr.bf16.mxu0 0
        %4395 = vmatpush1.bf16.msra.mxu0 0
        %4396 = vmatprep.subr.bf16.mxu0 0
        %4397 = vmatpush1.bf16.msra.mxu0 0
        %4398 = vmatprep.subr.bf16.mxu0 0
        %4399 = vmatpush1.bf16.msra.mxu0 0
        %4400 = vmatprep.subr.bf16.mxu0 0
        %4401 = vmatpush1.bf16.msra.mxu0 0
        %4402 = vmatprep.subr.bf16.mxu0 0
        %4403 = vmatpush1.bf16.msra.mxu0 0
        %4404 = vmatprep.subr.bf16.mxu0 0
        %4405 = vmatpush1.bf16.msra.mxu0 0
        %4406 = vmatprep.subr.bf16.mxu0 0
        %4407 = vmatpush1.bf16.msra.mxu0 0
        %4408 = vmatprep.subr.bf16.mxu0 0
        %4409 = vmatpush1.bf16.msra.mxu0 0
        %4410 = vmatprep.subr.bf16.mxu0 0
        %4411 = vmatpush1.bf16.msra.mxu0 0
        %4412 = vmatprep.mubr.bf16.mxu0 0
        %4413 = vmatmul.mubr.bf16.gmra.mrb[0].mxu0 %v4375
        %v4414 = vpop.f32.mrb[0].mxu0
        %v4415 = vadd.f32 0.0, %v4414
        %v4416 = vpop.f32.mrb[0].mxu0
        %v4417 = vpop.f32.mrb[0].mxu0
        %v4418 = vpop.f32.mrb[0].mxu0
        %4419 = vdwg.mxu0
        %4420 = vrot.lane.b32.xlu0 %v1031, 64
        %v4421 = vpop.permute.xlu0 %4420
        %v4423 = vsel %vm2642, %v3024, 0
        %v4426 = vsel %vm3032, %v4421, 0
        %4428 = vmatprep.subr.bf16.mxu0 0
        %4429 = vmatpush1.bf16.msra.mxu0 %v4426
        %4430 = vmatprep.subr.bf16.mxu0 0
        %4431 = vmatpush1.bf16.msra.mxu0 0
        %4432 = vmatprep.subr.bf16.mxu0 0
        %4433 = vmatpush1.bf16.msra.mxu0 0
        %4434 = vmatprep.subr.bf16.mxu0 0
        %4435 = vmatpush1.bf16.msra.mxu0 0
        %4436 = vmatprep.subr.bf16.mxu0 0
        %4437 = vmatpush1.bf16.msra.mxu0 0
        %4438 = vmatprep.subr.bf16.mxu0 0
        %4439 = vmatpush1.bf16.msra.mxu0 0
        %4440 = vmatprep.subr.bf16.mxu0 0
        %4441 = vmatpush1.bf16.msra.mxu0 0
        %4442 = vmatprep.subr.bf16.mxu0 0
        %4443 = vmatpush1.bf16.msra.mxu0 0
        %4444 = vmatprep.subr.bf16.mxu0 0
        %4445 = vmatpush1.bf16.msra.mxu0 0
        %4446 = vmatprep.subr.bf16.mxu0 0
        %4447 = vmatpush1.bf16.msra.mxu0 0
        %4448 = vmatprep.subr.bf16.mxu0 0
        %4449 = vmatpush1.bf16.msra.mxu0 0
        %4450 = vmatprep.subr.bf16.mxu0 0
        %4451 = vmatpush1.bf16.msra.mxu0 0
        %4452 = vmatprep.subr.bf16.mxu0 0
        %4453 = vmatpush1.bf16.msra.mxu0 0
        %4454 = vmatprep.subr.bf16.mxu0 0
        %4455 = vmatpush1.bf16.msra.mxu0 0
        %4456 = vmatprep.subr.bf16.mxu0 0
        %4457 = vmatpush1.bf16.msra.mxu0 0
        %4458 = vmatprep.subr.bf16.mxu0 0
        %4459 = vmatpush1.bf16.msra.mxu0 0
        %4460 = vmatprep.mubr.bf16.mxu0 0
        %4461 = vmatmul.mubr.bf16.gmra.mrb[0].mxu0 %v4423
        %v4462 = vpop.f32.mrb[0].mxu0
        %v4463 = vadd.f32 0.0, %v4462
        %v4464 = vpop.f32.mrb[0].mxu0
        %v4465 = vpop.f32.mrb[0].mxu0
        %v4466 = vpop.f32.mrb[0].mxu0
        %4467 = vdwg.mxu0
        %4468 = vrot.lane.b32.xlu0 %v1032, 64
        %v4469 = vpop.permute.xlu0 %4468
        %v4471 = vsel %vm2642, %v3025, 0
        %v4474 = vsel %vm3032, %v4469, 0
        %4476 = vmatprep.subr.bf16.mxu0 0
        %4477 = vmatpush1.bf16.msra.mxu0 %v4474
        %4478 = vmatprep.subr.bf16.mxu0 0
        %4479 = vmatpush1.bf16.msra.mxu0 0
        %4480 = vmatprep.subr.bf16.mxu0 0
        %4481 = vmatpush1.bf16.msra.mxu0 0
        %4482 = vmatprep.subr.bf16.mxu0 0
        %4483 = vmatpush1.bf16.msra.mxu0 0
        %4484 = vmatprep.subr.bf16.mxu0 0
        %4485 = vmatpush1.bf16.msra.mxu0 0
        %4486 = vmatprep.subr.bf16.mxu0 0
        %4487 = vmatpush1.bf16.msra.mxu0 0
        %4488 = vmatprep.subr.bf16.mxu0 0
        %4489 = vmatpush1.bf16.msra.mxu0 0
        %4490 = vmatprep.subr.bf16.mxu0 0
        %4491 = vmatpush1.bf16.msra.mxu0 0
        %4492 = vmatprep.subr.bf16.mxu0 0
        %4493 = vmatpush1.bf16.msra.mxu0 0
        %4494 = vmatprep.subr.bf16.mxu0 0
        %4495 = vmatpush1.bf16.msra.mxu0 0
        %4496 = vmatprep.subr.bf16.mxu0 0
        %4497 = vmatpush1.bf16.msra.mxu0 0
        %4498 = vmatprep.subr.bf16.mxu0 0
        %4499 = vmatpush1.bf16.msra.mxu0 0
        %4500 = vmatprep.subr.bf16.mxu0 0
        %4501 = vmatpush1.bf16.msra.mxu0 0
        %4502 = vmatprep.subr.bf16.mxu0 0
        %4503 = vmatpush1.bf16.msra.mxu0 0
        %4504 = vmatprep.subr.bf16.mxu0 0
        %4505 = vmatpush1.bf16.msra.mxu0 0
        %4506 = vmatprep.subr.bf16.mxu0 0
        %4507 = vmatpush1.bf16.msra.mxu0 0
        %4508 = vmatprep.mubr.bf16.mxu0 0
        %4509 = vmatmul.mubr.bf16.gmra.mrb[0].mxu0 %v4471
        %v4510 = vpop.f32.mrb[0].mxu0
        %v4511 = vadd.f32 0.0, %v4510
        %v4512 = vpop.f32.mrb[0].mxu0
        %v4513 = vpop.f32.mrb[0].mxu0
        %v4514 = vpop.f32.mrb[0].mxu0
        %4515 = vdwg.mxu0
        %4516 = vrot.lane.b32.xlu0 %v1033, 64
        %v4517 = vpop.permute.xlu0 %4516
        %v4519 = vsel %vm2642, %v3026, 0
        %v4522 = vsel %vm3032, %v4517, 0
        %4524 = vmatprep.subr.bf16.mxu0 0
        %4525 = vmatpush1.bf16.msra.mxu0 %v4522
        %4526 = vmatprep.subr.bf16.mxu0 0
        %4527 = vmatpush1.bf16.msra.mxu0 0
        %4528 = vmatprep.subr.bf16.mxu0 0
        %4529 = vmatpush1.bf16.msra.mxu0 0
        %4530 = vmatprep.subr.bf16.mxu0 0
        %4531 = vmatpush1.bf16.msra.mxu0 0
        %4532 = vmatprep.subr.bf16.mxu0 0
        %4533 = vmatpush1.bf16.msra.mxu0 0
        %4534 = vmatprep.subr.bf16.mxu0 0
        %4535 = vmatpush1.bf16.msra.mxu0 0
        %4536 = vmatprep.subr.bf16.mxu0 0
        %4537 = vmatpush1.bf16.msra.mxu0 0
        %4538 = vmatprep.subr.bf16.mxu0 0
        %4539 = vmatpush1.bf16.msra.mxu0 0
        %4540 = vmatprep.subr.bf16.mxu0 0
        %4541 = vmatpush1.bf16.msra.mxu0 0
        %4542 = vmatprep.subr.bf16.mxu0 0
        %4543 = vmatpush1.bf16.msra.mxu0 0
        %4544 = vmatprep.subr.bf16.mxu0 0
        %4545 = vmatpush1.bf16.msra.mxu0 0
        %4546 = vmatprep.subr.bf16.mxu0 0
        %4547 = vmatpush1.bf16.msra.mxu0 0
        %4548 = vmatprep.subr.bf16.mxu0 0
        %4549 = vmatpush1.bf16.msra.mxu0 0
        %4550 = vmatprep.subr.bf16.mxu0 0
        %4551 = vmatpush1.bf16.msra.mxu0 0
        %4552 = vmatprep.subr.bf16.mxu0 0
        %4553 = vmatpush1.bf16.msra.mxu0 0
        %4554 = vmatprep.subr.bf16.mxu0 0
        %4555 = vmatpush1.bf16.msra.mxu0 0
        %4556 = vmatprep.mubr.bf16.mxu0 0
        %4557 = vmatmul.mubr.bf16.gmra.mrb[0].mxu0 %v4519
        %v4558 = vpop.f32.mrb[0].mxu0
        %v4559 = vadd.f32 0.0, %v4558
        %v4560 = vpop.f32.mrb[0].mxu0
        %v4561 = vpop.f32.mrb[0].mxu0
        %v4562 = vpop.f32.mrb[0].mxu0
        %4563 = vdwg.mxu0
        %4564 = vst.msk [vmem:[%s165] sm:$0xff] %vm1037, %v3071
        %4565 = vst.msk [vmem:[%s165 + $0x8] sm:$0xff] %vm1037, %v3119
        %4566 = vst.msk [vmem:[%s165 + $0x10] sm:$0xff] %vm1037, %v3167
        %4567 = vst.msk [vmem:[%s165 + $0x18] sm:$0xff] %vm1037, %v3215
        %4568 = vst.msk [vmem:[%s165 + $0x20] sm:$0xff] %vm1037, %v3263
        %4569 = vst.msk [vmem:[%s165 + $0x28] sm:$0xff] %vm1037, %v3311
        %4570 = vst.msk [vmem:[%s165 + $0x30] sm:$0xff] %vm1037, %v3359
        %4571 = vst.msk [vmem:[%s165 + $0x38] sm:$0xff] %vm1037, %v3407
        %4572 = vst.msk [vmem:[%s165 + $0x40] sm:$0xff] %vm1037, %v3455
        %4573 = vst.msk [vmem:[%s165 + $0x48] sm:$0xff] %vm1037, %v3503
        %4574 = vst.msk [vmem:[%s165 + $0x50] sm:$0xff] %vm1037, %v3551
        %4575 = vst.msk [vmem:[%s165 + $0x58] sm:$0xff] %vm1037, %v3599
        %4576 = vst.msk [vmem:[%s165 + $0x60] sm:$0xff] %vm1037, %v3647
        %4577 = vst.msk [vmem:[%s165 + $0x68] sm:$0xff] %vm1037, %v3695
        %4578 = vst.msk [vmem:[%s165 + $0x70] sm:$0xff] %vm1037, %v3743
        %4579 = vst.msk [vmem:[%s165 + $0x78] sm:$0xff] %vm1037, %v3791
        %4580 = vst.msk [vmem:[%s165 + $0x80] sm:$0xff] %vm1037, %v3839
        %4581 = vst.msk [vmem:[%s165 + $0x88] sm:$0xff] %vm1037, %v3887
        %4582 = vst.msk [vmem:[%s165 + $0x90] sm:$0xff] %vm1037, %v3935
        %4583 = vst.msk [vmem:[%s165 + $0x98] sm:$0xff] %vm1037, %v3983
        %4584 = vst.msk [vmem:[%s165 + $0xa0] sm:$0xff] %vm1037, %v4031
        %4585 = vst.msk [vmem:[%s165 + $0xa8] sm:$0xff] %vm1037, %v4079
        %4586 = vst.msk [vmem:[%s165 + $0xb0] sm:$0xff] %vm1037, %v4127
        %4587 = vst.msk [vmem:[%s165 + $0xb8] sm:$0xff] %vm1037, %v4175
        %4588 = vst.msk [vmem:[%s165 + $0xc0] sm:$0xff] %vm1037, %v4223
        %4589 = vst.msk [vmem:[%s165 + $0xc8] sm:$0xff] %vm1037, %v4271
        %4590 = vst.msk [vmem:[%s165 + $0xd0] sm:$0xff] %vm1037, %v4319
        %4591 = vst.msk [vmem:[%s165 + $0xd8] sm:$0xff] %vm1037, %v4367
        %4592 = vst.msk [vmem:[%s165 + $0xe0] sm:$0xff] %vm1037, %v4415
        %4593 = vst.msk [vmem:[%s165 + $0xe8] sm:$0xff] %vm1037, %v4463
        %4594 = vst.msk [vmem:[%s165 + $0xf0] sm:$0xff] %vm1037, %v4511
        %4595 = vst.msk [vmem:[%s165 + $0xf8] sm:$0xff] %vm1037, %v4559
        %s4596 = smul.u32 32, %s16
        %p4597 = scmp.lt.s32.totalorder %s4596, 63
        %s4598 = scalar_select %p4597, %s4596, 63
        %s4599 = smul.addr %s4598, 8
        %s4600 = scalar_lea.vmem %s2, %s4599
        // Predicated region
        $region33: #{tpu_custom_call.1} parent=27 // pred_check
          %p4601 = pneg %p81
        $region34: #{tpu_custom_call.1} parent=27 // pred_check_branch
          %4603 = sbr.rel (%p4601) target = $region36
        $region35: #{tpu_custom_call.1} parent=27 // pred_region
          %s4604 = smul.u32 32, %s16
        $region36: #{tpu_custom_call.1} parent=27 // pred_fallthru
          _
      $region28: #{tpu_custom_call.1} parent=5 // pred_fallthru
        _
      %p4605 = scmp.le.s32.totalorder 2, %s11
      // Predicated region
      $region37: #{tpu_custom_call.1} parent=5 // pred_check
        %p4606 = pneg %p4605
      $region38: #{tpu_custom_call.1} parent=5 // pred_check_branch
        %4608 = sbr.rel (%p4606) target = $region40
      $region39: #{tpu_custom_call.1} parent=5 // pred_region
        %s4609 = ssub.s32 %s11, 2
        // Predicated region
        $region41: #{tpu_custom_call.1} parent=39 // pred_check
          %p4610 = pneg %p87
        $region42: #{tpu_custom_call.1} parent=39 // pred_check_branch
          %4612 = sbr.rel (%p4610) target = $region44
        $region43: #{tpu_custom_call.1} parent=39 // pred_region
          %s4613 = smul.u32 32, %s17
          %p4614 = scmp.lt.s32.totalorder %s4613, 63
          %s4615 = scalar_select %p4614, %s4613, 63
          %s4616 = smul.addr %s4615, 8
          %s4617 = scalar_lea.vmem %s2, %s4616
        $region44: #{tpu_custom_call.1} parent=39 // pred_fallthru
          _
      $region40: #{tpu_custom_call.1} parent=5 // pred_fallthru
        _
    $region6: #{tpu_custom_call.1} parent=1 // loop_footer
      %s15 = sadd.s32 1, %s11
    $region7: #{tpu_custom_call.1} parent=1 // loop_footer_branch
      %10 = sbr.rel target = $region3
    $region8: #{tpu_custom_call.1} parent=1 // loop_exit
      _
    %4618 = vsyncpa [#allocation3], 1
    %s4619 = scalar_lea.sflag [#allocation3], 1
    %4620 = vsyncpa %s4619, 1

</llo_original>
